<compile_context>
chip_gen: v7x
topology: tpu7x:2x2x1
jax: 0.10.0
libtpu: 0.0.40
codegen_flags: <defaults>
</compile_context>

<pallas_src>
import functools

import jax
import jax.numpy as jnp
from jax.experimental import pallas as pl
from jax.experimental.pallas import tpu as pltpu


def _round_up(x, m):
    return (x + m - 1) // m * m


def _mxu_256_deep():
    """True on chips with a 256-deep MXU (v6e / v7x); False on <= v5."""
    try:
        kind = jax.devices()[0].device_kind.lower()
    except Exception:
        return True
    return not any(v in kind for v in ("v2", "v3", "v4", "v5"))


def _vmem_capacity_bytes():
    try:
        return int(pltpu.get_tpu_info().vmem_capacity_bytes)
    except Exception:
        return 64 * 1024 * 1024          # v7x-safe fallback


def _inception_b_kernel(x_ref, pos_ref,
                        w01_ref, b01_ref,
                        w1b_ref, b1b_ref,
                        w1c_ref, b1c_ref,
                        wup_ref, bup_ref,
                        out_ref, *, scale, hid_pad, H, W,
                        offsets_b, offsets_c, paired_up):
    M = x_ref.shape[0]
    bf16 = jnp.bfloat16

    # packed per-row coordinates: pos = (h << 16) | w  (one lane-padded column)
    pos = pos_ref[...]
    wpos = jnp.bitwise_and(pos, 0xFFFF)
    hpos = pos >> 16

    # ---- fused 1x1 convs (branch_0 conv + branch_1 first conv): one matmul --
    t = jnp.dot(x_ref[...].astype(bf16), w01_ref[...],
                preferred_element_type=jnp.float32)
    t = jnp.maximum(t + b01_ref[...], 0.0)
    b0 = t[:, :hid_pad].astype(bf16)       # branch_0 output (bf16 right away)
    h = t[:, hid_pad:]                      # branch_1 hidden (f32, short-lived)

    def sep_conv7(a, w_ref, b_ref, pos1, extent, stride, offsets):
        # 7-tap conv along one spatial axis.  Tap offsets are applied to the
        # INPUT with XLU rolls + boundary masks, so every group is a straight
        # `acc += dot(...)` and the roll/select prep stays off the MXU path.
        a0 = a.astype(bf16)

        def tap(d):
            if d == 0:
                return a0
            s = pltpu.roll(a, shift=(-d * stride) % M, axis=0)
            valid = (pos1 + d < extent) if d > 0 else (pos1 + d >= 0)
            return jnp.where(valid, s, 0.0).astype(bf16)

        acc = None
        for g, offs in enumerate(offsets):
            parts = [tap(d) for d in offs]
            a_g = parts[0] if len(parts) == 1 else jnp.concatenate(parts, axis=1)
            y = jnp.dot(a_g, w_ref[g], preferred_element_type=jnp.float32)
            acc = y if acc is None else acc + y
        return jnp.maximum(acc + b_ref[...], 0.0)

    h = sep_conv7(h, w1b_ref, b1b_ref, wpos, W, 1, offsets_b)    # (1,7) along W
    b1 = sep_conv7(h, w1c_ref, b1c_ref, hpos, H, W, offsets_c)   # (7,1) along H
    b1 = b1.astype(bf16)

    # ---- up_conv on the (implicit) concat, then scale + residual + relu ----
    wup = wup_ref[...]
    if paired_up:
        up = jnp.dot(jnp.concatenate([b0, b1], axis=1), wup,
                     preferred_element_type=jnp.float32)
    else:
        up = (jnp.dot(b0, wup[:hid_pad], preferred_element_type=jnp.float32)
              + jnp.dot(b1, wup[hid_pad:], preferred_element_type=jnp.float32))
    out_ref[...] = jnp.maximum((up + bup_ref[...]) * scale + x_ref[...], 0.0)


def inception_b_block(x, params, *, scale=0.1, channels_last=False):
    """InceptionBBlock forward.  x: (N,C,H,W) f32 (PyTorch layout) unless
    channels_last=True, in which case (N,H,W,C) and boundary transposes are
    skipped."""
    if not channels_last:
        x = jnp.transpose(x, (0, 2, 3, 1))           # -> NHWC
    x = x.astype(jnp.float32)
    N, H, W, C = x.shape
    hid = params["w0"].shape[1]

    c_pad = _round_up(C, 128)
    hid_pad = _round_up(hid, 128)
    bf16, f32 = jnp.bfloat16, jnp.float32
    paired = _mxu_256_deep()

    # flatten + channel-pad once in the wrapper (lane-dense 2-D kernel blocks)
    x_p = x if c_pad == C else jnp.pad(x, ((0, 0), (0, 0), (0, 0), (0, c_pad - C)))
    x2 = x_p.reshape(N * H * W, c_pad)

    def pad2(a, rows, cols):
        return jnp.pad(a, ((0, rows - a.shape[0]), (0, cols - a.shape[1])))

    # fuse the two 1x1 convs along the output dim (>=256-wide MXU N)
    w01 = jnp.concatenate([pad2(params["w0"], c_pad, hid_pad),
                           pad2(params["w1a"], c_pad, hid_pad)], axis=1).astype(bf16)
    b01 = jnp.concatenate([pad2(params["b0"], 1, hid_pad),
                           pad2(params["b1a"], 1, hid_pad)], axis=1).astype(f32)

    def pack_sep(w):
        wp = jnp.pad(w, ((0, 0), (0, hid_pad - hid), (0, hid_pad - hid))).astype(bf16)
        if not paired:
            return wp, tuple((k - 3,) for k in range(7))          # 7 x K=hid_pad
        mats = [jnp.concatenate([wp[0], wp[1]], axis=0),
                jnp.concatenate([wp[2], wp[3]], axis=0),
                jnp.concatenate([wp[4], wp[5]], axis=0),
                jnp.concatenate([wp[6], jnp.zeros_like(wp[6])], axis=0)]
        offs = ((-3, -2), (-1, 0), (1, 2), (3, 0))   # last slot has zero weight
        return jnp.stack(mats, axis=0), offs                       # 4 x K=2*hid_pad

    w1b, offs_b = pack_sep(params["w1b"])
    b1b = pad2(params["b1b"], 1, hid_pad).astype(f32)
    w1c, offs_c = pack_sep(params["w1c"])
    b1c = pad2(params["b1c"], 1, hid_pad).astype(f32)

    # up_conv weight kept whole: rows [0:hid_pad) <- branch_0, [hid_pad:) <- branch_1
    wup = jnp.concatenate([pad2(params["wup"][:hid], hid_pad, c_pad),
                           pad2(params["wup"][hid:], hid_pad, c_pad)], axis=0).astype(bf16)
    bup = pad2(params["bup"], 1, c_pad).astype(f32)

    # ---- per-generation VMEM sizing / images per grid step ------------------
    vmem_cap = _vmem_capacity_bytes()
    vmem_limit = min(int(vmem_cap * 0.8), vmem_cap - 6 * 1024 * 1024)
    weight_bytes = sum(int(a.size) * a.dtype.itemsize
                       for a in (w01, b01, w1b, b1b, w1c, b1c, wup, bup))
    # bytes/row: double-buffered f32 in+out blocks, f32 t/up/out temporaries,
    # live bf16 tap/concat operands, and the lane-padded position column.
    per_row = (16 * c_pad + 8 * c_pad
               + 16 * hid_pad + 12 * hid_pad + 16 * hid_pad
               + 512)
    act_budget = max(vmem_limit - weight_bytes - 4 * 1024 * 1024,
                     per_row * H * W)
    nb = max(1, int(act_budget // (per_row * H * W)))
    nb = min(nb, N)
    if N >= 4:
        nb = min(nb, N // 4)     # >=4 steps: 2/TC on 2-core chips, overlap on 1-core
    elif N >= 2:
        nb = min(nb, N // 2)
    nb = max(nb, 1)
    while nb > 1 and (N % nb != 0 or (nb * H * W) % 8 != 0):
        nb -= 1
    if (nb * H * W) % 8 != 0 and nb != N:
        nb = N                   # single full block satisfies the (8,128) rule
    M_blk = nb * H * W

    # packed per-row (h, w) coordinates for the conv boundary masks; identical
    # for every grid step, so a single resident (M,1) i32 array suffices.
    wpos = jnp.tile(jnp.arange(W, dtype=jnp.int32), nb * H)
    hpos = jnp.tile(jnp.repeat(jnp.arange(H, dtype=jnp.int32), W), nb)
    pos = ((hpos << 16) | wpos).reshape(M_blk, 1)

    # whole-array VMEM operands are loaded once before the grid (single copy).
    vmem_spec = pl.BlockSpec(memory_space=pltpu.MemorySpace.VMEM)
    kernel = functools.partial(_inception_b_kernel, scale=scale, hid_pad=hid_pad,
                               H=H, W=W, offsets_b=offs_b, offsets_c=offs_c,
                               paired_up=paired)

    out2 = pl.pallas_call(
        kernel,
        out_shape=jax.ShapeDtypeStruct((N * H * W, c_pad), jnp.float32),
        grid=(N // nb,),
        in_specs=[
            pl.BlockSpec((M_blk, c_pad), lambda n: (n, 0)),   # x (2-D, lane-dense)
            vmem_spec,                                        # packed positions
            vmem_spec, vmem_spec,                             # w01, b01
            vmem_spec, vmem_spec,                             # w1b, b1b
            vmem_spec, vmem_spec,                             # w1c, b1c
            vmem_spec, vmem_spec,                             # wup, bup
        ],
        out_specs=pl.BlockSpec((M_blk, c_pad), lambda n: (n, 0)),
        compiler_params=pltpu.CompilerParams(
            dimension_semantics=("parallel",),
            vmem_limit_bytes=vmem_limit),
    )(x2, pos, w01, b01, w1b, b1b, w1c, b1c, wup, bup)

    out = out2.reshape(N, H, W, c_pad)
    if c_pad != C:
        out = out[..., :C]
    if not channels_last:
        out = jnp.transpose(out, (0, 3, 1, 2))       # back to NCHW
    return out


def init_params(key, dim, hidden_dim):
    ks = jax.random.split(key, 11)
    f = lambda k, shp: (0.1 * jax.random.normal(k, shp)).astype(jnp.float32)
    return {
        # 1x1 convs stored as (Cin, Cout); biases as (1, Cout)
        "w0":  f(ks[0], (dim, hidden_dim)),
        "b0":  f(ks[1], (1, hidden_dim)),
        "w1a": f(ks[2], (dim, hidden_dim)),
        "b1a": f(ks[3], (1, hidden_dim)),
        # (1,7) conv: tap k -> (Cin, Cout); i.e. W_torch[co, ci, 0, k] = w1b[k, ci, co]
        "w1b": f(ks[4], (7, hidden_dim, hidden_dim)),
        "b1b": f(ks[5], (1, hidden_dim)),
        # (7,1) conv: tap k -> (Cin, Cout)
        "w1c": f(ks[6], (7, hidden_dim, hidden_dim)),
        "b1c": f(ks[7], (1, hidden_dim)),
        "wup": f(ks[8], (2 * hidden_dim, dim)),
        "bup": f(ks[9], (1, dim)),
    }


def reference_forward(x_nchw, params, *, scale=0.1):
    """Pure-JAX f32 reference with the same semantics as the PyTorch module."""
    x = jnp.transpose(x_nchw, (0, 2, 3, 1)).astype(jnp.float32)
    N, H, W, C = x.shape
    relu = lambda v: jnp.maximum(v, 0.0)
    pconv = lambda a, w, b: jnp.einsum("nhwc,cd->nhwd", a, w) + b[0]

    b0 = relu(pconv(x, params["w0"], params["b0"]))
    h = relu(pconv(x, params["w1a"], params["b1a"]))

    hp = jnp.pad(h, ((0, 0), (0, 0), (3, 3), (0, 0)))
    acc = jnp.zeros_like(h) + params["b1b"][0]
    for k in range(7):
        acc = acc + jnp.einsum("nhwc,cd->nhwd", hp[:, :, k:k + W, :], params["w1b"][k])
    h = relu(acc)

    hp = jnp.pad(h, ((0, 0), (3, 3), (0, 0), (0, 0)))
    acc = jnp.zeros_like(h) + params["b1c"][0]
    for k in range(7):
        acc = acc + jnp.einsum("nhwc,cd->nhwd", hp[:, k:k + H, :, :], params["w1c"][k])
    b1 = relu(acc)

    cat = jnp.concatenate([b0, b1], axis=-1)
    up = jnp.einsum("nhwc,cd->nhwd", cat, params["wup"]) + params["bup"][0]
    out = relu(up * scale + x)
    return jnp.transpose(out, (0, 3, 1, 2))


if __name__ == "__main__":
    N, dim, hidden_dim, H, W = 4, 16, 16, 8, 8
    scale = 0.1

    key = jax.random.PRNGKey(0)
    kx, kp = jax.random.split(key)
    x = jax.random.normal(kx, (N, dim, H, W), dtype=jnp.float32)   # NCHW (PyTorch)
    params = init_params(kp, dim, hidden_dim)

    out = inception_b_block(x, params, scale=scale)
    out = jax.block_until_ready(out)

    ref = reference_forward(x, params, scale=scale)
    assert out.shape == (N, dim, H, W)
    err = float(jnp.max(jnp.abs(out - ref)))
    # bf16 MXU operands vs f32 reference -> loose-ish tolerance
    assert jnp.allclose(out, ref, atol=2e-2, rtol=2e-2), f"mismatch vs reference (max err {err})"

    print("KERNEL_OK")
</pallas_src>

<mosaic_0001>
module attributes {stable_mosaic.version = 11 : i64} {
  func.func @_inception_b_kernel(%arg0: i32, %arg1: memref<64x128xf32, #tpu.memory_space<vmem>>, %arg2: memref<64x1xi32, #tpu.memory_space<vmem>>, %arg3: memref<128x256xbf16, #tpu.memory_space<vmem>>, %arg4: memref<1x256xf32, #tpu.memory_space<vmem>>, %arg5: memref<4x256x128xbf16, #tpu.memory_space<vmem>>, %arg6: memref<1x128xf32, #tpu.memory_space<vmem>>, %arg7: memref<4x256x128xbf16, #tpu.memory_space<vmem>>, %arg8: memref<1x128xf32, #tpu.memory_space<vmem>>, %arg9: memref<256x128xbf16, #tpu.memory_space<vmem>>, %arg10: memref<1x128xf32, #tpu.memory_space<vmem>>, %arg11: memref<64x128xf32, #tpu.memory_space<vmem>>) attributes {dimension_semantics = [#tpu.dimension_semantics<parallel>], iteration_bounds = array<i64: 4>, scalar_prefetch = 0 : i64, scratch_operands = 0 : i64, tpu.core_type = #tpu.core_type<tc>, window_params = [{transform_indices = @transform_0, window_bounds = array<i64: 64, 128>}, {pipeline_mode = #tpu.pipeline_mode<synchronous>, transform_indices = @transform_1, window_bounds = array<i64: 64, 1>}, {pipeline_mode = #tpu.pipeline_mode<synchronous>, transform_indices = @transform_2, window_bounds = array<i64: 128, 256>}, {pipeline_mode = #tpu.pipeline_mode<synchronous>, transform_indices = @transform_3, window_bounds = array<i64: 1, 256>}, {pipeline_mode = #tpu.pipeline_mode<synchronous>, transform_indices = @transform_4, window_bounds = array<i64: 4, 256, 128>}, {pipeline_mode = #tpu.pipeline_mode<synchronous>, transform_indices = @transform_5, window_bounds = array<i64: 1, 128>}, {pipeline_mode = #tpu.pipeline_mode<synchronous>, transform_indices = @transform_6, window_bounds = array<i64: 4, 256, 128>}, {pipeline_mode = #tpu.pipeline_mode<synchronous>, transform_indices = @transform_7, window_bounds = array<i64: 1, 128>}, {pipeline_mode = #tpu.pipeline_mode<synchronous>, transform_indices = @transform_8, window_bounds = array<i64: 256, 128>}, {pipeline_mode = #tpu.pipeline_mode<synchronous>, transform_indices = @transform_9, window_bounds = array<i64: 1, 128>}, {transform_indices = @transform_10, window_bounds = array<i64: 64, 128>}]} {
    %c0 = arith.constant 0 : index
    %c0_0 = arith.constant 0 : index
    %0 = vector.load %arg2[%c0, %c0_0] : memref<64x1xi32, #tpu.memory_space<vmem>>, vector<64x1xi32>
    %c65535_i32 = arith.constant 65535 : i32
    %1 = vector.broadcast %c65535_i32 : i32 to vector<64x1xi32>
    %2 = arith.andi %0, %1 : vector<64x1xi32>
    %c16_i32 = arith.constant 16 : i32
    %3 = vector.broadcast %c16_i32 : i32 to vector<64x1xi32>
    %4 = arith.shrsi %0, %3 : vector<64x1xi32>
    %c0_1 = arith.constant 0 : index
    %c0_2 = arith.constant 0 : index
    %5 = vector.load %arg1[%c0_1, %c0_2] : memref<64x128xf32, #tpu.memory_space<vmem>>, vector<64x128xf32>
    %6 = arith.truncf %5 : vector<64x128xf32> to vector<64x128xbf16>
    %c0_3 = arith.constant 0 : index
    %c0_4 = arith.constant 0 : index
    %7 = vector.load %arg3[%c0_3, %c0_4] : memref<128x256xbf16, #tpu.memory_space<vmem>>, vector<128x256xbf16>
    %cst = arith.constant dense<0.000000e+00> : vector<64x256xf32>
    %8 = tpu.matmul %6, %7, %cst {dimension_numbers = #tpu.dot_dimension_numbers<[1], [0], [0], [1], [0, 0, 1, 1], [], []>} : vector<64x128xbf16>, vector<128x256xbf16>, vector<64x256xf32> -> vector<64x256xf32>
    %c0_5 = arith.constant 0 : index
    %c0_6 = arith.constant 0 : index
    %9 = vector.load %arg4[%c0_5, %c0_6] : memref<1x256xf32, #tpu.memory_space<vmem>>, vector<1x256xf32>
    %10 = vector.broadcast %9 : vector<1x256xf32> to vector<64x256xf32>
    %11 = arith.addf %8, %10 : vector<64x256xf32>
    %cst_7 = arith.constant 0.000000e+00 : f32
    %12 = vector.broadcast %cst_7 : f32 to vector<64x256xf32>
    %13 = arith.maximumf %11, %12 : vector<64x256xf32>
    %14 = vector.extract_strided_slice %13 {offsets = [0, 0], sizes = [64, 128], strides = [1, 1]} : vector<64x256xf32> to vector<64x128xf32>
    %15 = arith.truncf %14 : vector<64x128xf32> to vector<64x128xbf16>
    %16 = vector.extract_strided_slice %13 {offsets = [0, 128], sizes = [64, 128], strides = [1, 1]} : vector<64x256xf32> to vector<64x128xf32>
    %17 = arith.truncf %16 : vector<64x128xf32> to vector<64x128xbf16>
    %c3_i32 = arith.constant 3 : i32
    %18 = tpu.dynamic_rotate %16 by %c3_i32 dim 0 : vector<64x128xf32>, i32 -> vector<64x128xf32>
    %c-3_i32 = arith.constant -3 : i32
    %19 = vector.broadcast %c-3_i32 : i32 to vector<64x1xi32>
    %20 = arith.addi %2, %19 : vector<64x1xi32>
    %c0_i32 = arith.constant 0 : i32
    %21 = vector.broadcast %c0_i32 : i32 to vector<64x1xi32>
    %22 = arith.cmpi sge, %20, %21 : vector<64x1xi32>
    %cst_8 = arith.constant 0.000000e+00 : f32
    %23 = vector.shape_cast %22 : vector<64x1xi1> to vector<64x1xi1>
    %24 = vector.broadcast %23 : vector<64x1xi1> to vector<64x128xi1>
    %25 = vector.broadcast %cst_8 : f32 to vector<64x128xf32>
    %26 = arith.select %24, %18, %25 : vector<64x128xi1>, vector<64x128xf32>
    %27 = arith.truncf %26 : vector<64x128xf32> to vector<64x128xbf16>
    %c2_i32 = arith.constant 2 : i32
    %28 = tpu.dynamic_rotate %16 by %c2_i32 dim 0 : vector<64x128xf32>, i32 -> vector<64x128xf32>
    %c-2_i32 = arith.constant -2 : i32
    %29 = vector.broadcast %c-2_i32 : i32 to vector<64x1xi32>
    %30 = arith.addi %2, %29 : vector<64x1xi32>
    %c0_i32_9 = arith.constant 0 : i32
    %31 = vector.broadcast %c0_i32_9 : i32 to vector<64x1xi32>
    %32 = arith.cmpi sge, %30, %31 : vector<64x1xi32>
    %cst_10 = arith.constant 0.000000e+00 : f32
    %33 = vector.shape_cast %32 : vector<64x1xi1> to vector<64x1xi1>
    %34 = vector.broadcast %33 : vector<64x1xi1> to vector<64x128xi1>
    %35 = vector.broadcast %cst_10 : f32 to vector<64x128xf32>
    %36 = arith.select %34, %28, %35 : vector<64x128xi1>, vector<64x128xf32>
    %37 = arith.truncf %36 : vector<64x128xf32> to vector<64x128xbf16>
    %38 = tpu.concatenate %27, %37 in 1 : vector<64x128xbf16>, vector<64x128xbf16> -> vector<64x256xbf16>
    %c0_11 = arith.constant 0 : index
    %c0_12 = arith.constant 0 : index
    %c0_13 = arith.constant 0 : index
    %39 = vector.load %arg5[%c0_11, %c0_12, %c0_13] : memref<4x256x128xbf16, #tpu.memory_space<vmem>>, vector<1x256x128xbf16>
    %40 = vector.shape_cast %39 : vector<1x256x128xbf16> to vector<256x128xbf16>
    %cst_14 = arith.constant dense<0.000000e+00> : vector<64x128xf32>
    %41 = tpu.matmul %38, %40, %cst_14 {dimension_numbers = #tpu.dot_dimension_numbers<[1], [0], [0], [1], [0, 0, 1, 1], [], []>} : vector<64x256xbf16>, vector<256x128xbf16>, vector<64x128xf32> -> vector<64x128xf32>
    %c1_i32 = arith.constant 1 : i32
    %42 = tpu.dynamic_rotate %16 by %c1_i32 dim 0 : vector<64x128xf32>, i32 -> vector<64x128xf32>
    %c-1_i32 = arith.constant -1 : i32
    %43 = vector.broadcast %c-1_i32 : i32 to vector<64x1xi32>
    %44 = arith.addi %2, %43 : vector<64x1xi32>
    %c0_i32_15 = arith.constant 0 : i32
    %45 = vector.broadcast %c0_i32_15 : i32 to vector<64x1xi32>
    %46 = arith.cmpi sge, %44, %45 : vector<64x1xi32>
    %cst_16 = arith.constant 0.000000e+00 : f32
    %47 = vector.shape_cast %46 : vector<64x1xi1> to vector<64x1xi1>
    %48 = vector.broadcast %47 : vector<64x1xi1> to vector<64x128xi1>
    %49 = vector.broadcast %cst_16 : f32 to vector<64x128xf32>
    %50 = arith.select %48, %42, %49 : vector<64x128xi1>, vector<64x128xf32>
    %51 = arith.truncf %50 : vector<64x128xf32> to vector<64x128xbf16>
    %52 = tpu.concatenate %51, %17 in 1 : vector<64x128xbf16>, vector<64x128xbf16> -> vector<64x256xbf16>
    %c1 = arith.constant 1 : index
    %c0_17 = arith.constant 0 : index
    %c0_18 = arith.constant 0 : index
    %53 = vector.load %arg5[%c1, %c0_17, %c0_18] : memref<4x256x128xbf16, #tpu.memory_space<vmem>>, vector<1x256x128xbf16>
    %54 = vector.shape_cast %53 : vector<1x256x128xbf16> to vector<256x128xbf16>
    %cst_19 = arith.constant dense<0.000000e+00> : vector<64x128xf32>
    %55 = tpu.matmul %52, %54, %cst_19 {dimension_numbers = #tpu.dot_dimension_numbers<[1], [0], [0], [1], [0, 0, 1, 1], [], []>} : vector<64x256xbf16>, vector<256x128xbf16>, vector<64x128xf32> -> vector<64x128xf32>
    %56 = arith.addf %41, %55 : vector<64x128xf32>
    %c63_i32 = arith.constant 63 : i32
    %57 = tpu.dynamic_rotate %16 by %c63_i32 dim 0 : vector<64x128xf32>, i32 -> vector<64x128xf32>
    %c1_i32_20 = arith.constant 1 : i32
    %58 = vector.broadcast %c1_i32_20 : i32 to vector<64x1xi32>
    %59 = arith.addi %2, %58 : vector<64x1xi32>
    %c8_i32 = arith.constant 8 : i32
    %60 = vector.broadcast %c8_i32 : i32 to vector<64x1xi32>
    %61 = arith.cmpi slt, %59, %60 : vector<64x1xi32>
    %cst_21 = arith.constant 0.000000e+00 : f32
    %62 = vector.shape_cast %61 : vector<64x1xi1> to vector<64x1xi1>
    %63 = vector.broadcast %62 : vector<64x1xi1> to vector<64x128xi1>
    %64 = vector.broadcast %cst_21 : f32 to vector<64x128xf32>
    %65 = arith.select %63, %57, %64 : vector<64x128xi1>, vector<64x128xf32>
    %66 = arith.truncf %65 : vector<64x128xf32> to vector<64x128xbf16>
    %c62_i32 = arith.constant 62 : i32
    %67 = tpu.dynamic_rotate %16 by %c62_i32 dim 0 : vector<64x128xf32>, i32 -> vector<64x128xf32>
    %c2_i32_22 = arith.constant 2 : i32
    %68 = vector.broadcast %c2_i32_22 : i32 to vector<64x1xi32>
    %69 = arith.addi %2, %68 : vector<64x1xi32>
    %c8_i32_23 = arith.constant 8 : i32
    %70 = vector.broadcast %c8_i32_23 : i32 to vector<64x1xi32>
    %71 = arith.cmpi slt, %69, %70 : vector<64x1xi32>
    %cst_24 = arith.constant 0.000000e+00 : f32
    %72 = vector.shape_cast %71 : vector<64x1xi1> to vector<64x1xi1>
    %73 = vector.broadcast %72 : vector<64x1xi1> to vector<64x128xi1>
    %74 = vector.broadcast %cst_24 : f32 to vector<64x128xf32>
    %75 = arith.select %73, %67, %74 : vector<64x128xi1>, vector<64x128xf32>
    %76 = arith.truncf %75 : vector<64x128xf32> to vector<64x128xbf16>
    %77 = tpu.concatenate %66, %76 in 1 : vector<64x128xbf16>, vector<64x128xbf16> -> vector<64x256xbf16>
    %c2 = arith.constant 2 : index
    %c0_25 = arith.constant 0 : index
    %c0_26 = arith.constant 0 : index
    %78 = vector.load %arg5[%c2, %c0_25, %c0_26] : memref<4x256x128xbf16, #tpu.memory_space<vmem>>, vector<1x256x128xbf16>
    %79 = vector.shape_cast %78 : vector<1x256x128xbf16> to vector<256x128xbf16>
    %cst_27 = arith.constant dense<0.000000e+00> : vector<64x128xf32>
    %80 = tpu.matmul %77, %79, %cst_27 {dimension_numbers = #tpu.dot_dimension_numbers<[1], [0], [0], [1], [0, 0, 1, 1], [], []>} : vector<64x256xbf16>, vector<256x128xbf16>, vector<64x128xf32> -> vector<64x128xf32>
    %81 = arith.addf %56, %80 : vector<64x128xf32>
    %c61_i32 = arith.constant 61 : i32
    %82 = tpu.dynamic_rotate %16 by %c61_i32 dim 0 : vector<64x128xf32>, i32 -> vector<64x128xf32>
    %c3_i32_28 = arith.constant 3 : i32
    %83 = vector.broadcast %c3_i32_28 : i32 to vector<64x1xi32>
    %84 = arith.addi %2, %83 : vector<64x1xi32>
    %c8_i32_29 = arith.constant 8 : i32
    %85 = vector.broadcast %c8_i32_29 : i32 to vector<64x1xi32>
    %86 = arith.cmpi slt, %84, %85 : vector<64x1xi32>
    %cst_30 = arith.constant 0.000000e+00 : f32
    %87 = vector.shape_cast %86 : vector<64x1xi1> to vector<64x1xi1>
    %88 = vector.broadcast %87 : vector<64x1xi1> to vector<64x128xi1>
    %89 = vector.broadcast %cst_30 : f32 to vector<64x128xf32>
    %90 = arith.select %88, %82, %89 : vector<64x128xi1>, vector<64x128xf32>
    %91 = arith.truncf %90 : vector<64x128xf32> to vector<64x128xbf16>
    %92 = tpu.concatenate %91, %17 in 1 : vector<64x128xbf16>, vector<64x128xbf16> -> vector<64x256xbf16>
    %c3 = arith.constant 3 : index
    %c0_31 = arith.constant 0 : index
    %c0_32 = arith.constant 0 : index
    %93 = vector.load %arg5[%c3, %c0_31, %c0_32] : memref<4x256x128xbf16, #tpu.memory_space<vmem>>, vector<1x256x128xbf16>
    %94 = vector.shape_cast %93 : vector<1x256x128xbf16> to vector<256x128xbf16>
    %cst_33 = arith.constant dense<0.000000e+00> : vector<64x128xf32>
    %95 = tpu.matmul %92, %94, %cst_33 {dimension_numbers = #tpu.dot_dimension_numbers<[1], [0], [0], [1], [0, 0, 1, 1], [], []>} : vector<64x256xbf16>, vector<256x128xbf16>, vector<64x128xf32> -> vector<64x128xf32>
    %96 = arith.addf %81, %95 : vector<64x128xf32>
    %c0_34 = arith.constant 0 : index
    %c0_35 = arith.constant 0 : index
    %97 = vector.load %arg6[%c0_34, %c0_35] : memref<1x128xf32, #tpu.memory_space<vmem>>, vector<1x128xf32>
    %98 = vector.broadcast %97 : vector<1x128xf32> to vector<64x128xf32>
    %99 = arith.addf %96, %98 : vector<64x128xf32>
    %cst_36 = arith.constant 0.000000e+00 : f32
    %100 = vector.broadcast %cst_36 : f32 to vector<64x128xf32>
    %101 = arith.maximumf %99, %100 : vector<64x128xf32>
    %102 = arith.truncf %101 : vector<64x128xf32> to vector<64x128xbf16>
    %c24_i32 = arith.constant 24 : i32
    %103 = tpu.dynamic_rotate %101 by %c24_i32 dim 0 : vector<64x128xf32>, i32 -> vector<64x128xf32>
    %c-3_i32_37 = arith.constant -3 : i32
    %104 = vector.broadcast %c-3_i32_37 : i32 to vector<64x1xi32>
    %105 = arith.addi %4, %104 : vector<64x1xi32>
    %c0_i32_38 = arith.constant 0 : i32
    %106 = vector.broadcast %c0_i32_38 : i32 to vector<64x1xi32>
    %107 = arith.cmpi sge, %105, %106 : vector<64x1xi32>
    %cst_39 = arith.constant 0.000000e+00 : f32
    %108 = vector.shape_cast %107 : vector<64x1xi1> to vector<64x1xi1>
    %109 = vector.broadcast %108 : vector<64x1xi1> to vector<64x128xi1>
    %110 = vector.broadcast %cst_39 : f32 to vector<64x128xf32>
    %111 = arith.select %109, %103, %110 : vector<64x128xi1>, vector<64x128xf32>
    %112 = arith.truncf %111 : vector<64x128xf32> to vector<64x128xbf16>
    %c16_i32_40 = arith.constant 16 : i32
    %113 = tpu.dynamic_rotate %101 by %c16_i32_40 dim 0 : vector<64x128xf32>, i32 -> vector<64x128xf32>
    %c-2_i32_41 = arith.constant -2 : i32
    %114 = vector.broadcast %c-2_i32_41 : i32 to vector<64x1xi32>
    %115 = arith.addi %4, %114 : vector<64x1xi32>
    %c0_i32_42 = arith.constant 0 : i32
    %116 = vector.broadcast %c0_i32_42 : i32 to vector<64x1xi32>
    %117 = arith.cmpi sge, %115, %116 : vector<64x1xi32>
    %cst_43 = arith.constant 0.000000e+00 : f32
    %118 = vector.shape_cast %117 : vector<64x1xi1> to vector<64x1xi1>
    %119 = vector.broadcast %118 : vector<64x1xi1> to vector<64x128xi1>
    %120 = vector.broadcast %cst_43 : f32 to vector<64x128xf32>
    %121 = arith.select %119, %113, %120 : vector<64x128xi1>, vector<64x128xf32>
    %122 = arith.truncf %121 : vector<64x128xf32> to vector<64x128xbf16>
    %123 = tpu.concatenate %112, %122 in 1 : vector<64x128xbf16>, vector<64x128xbf16> -> vector<64x256xbf16>
    %c0_44 = arith.constant 0 : index
    %c0_45 = arith.constant 0 : index
    %c0_46 = arith.constant 0 : index
    %124 = vector.load %arg7[%c0_44, %c0_45, %c0_46] : memref<4x256x128xbf16, #tpu.memory_space<vmem>>, vector<1x256x128xbf16>
    %125 = vector.shape_cast %124 : vector<1x256x128xbf16> to vector<256x128xbf16>
    %cst_47 = arith.constant dense<0.000000e+00> : vector<64x128xf32>
    %126 = tpu.matmul %123, %125, %cst_47 {dimension_numbers = #tpu.dot_dimension_numbers<[1], [0], [0], [1], [0, 0, 1, 1], [], []>} : vector<64x256xbf16>, vector<256x128xbf16>, vector<64x128xf32> -> vector<64x128xf32>
    %c8_i32_48 = arith.constant 8 : i32
    %127 = tpu.dynamic_rotate %101 by %c8_i32_48 dim 0 : vector<64x128xf32>, i32 -> vector<64x128xf32>
    %c-1_i32_49 = arith.constant -1 : i32
    %128 = vector.broadcast %c-1_i32_49 : i32 to vector<64x1xi32>
    %129 = arith.addi %4, %128 : vector<64x1xi32>
    %c0_i32_50 = arith.constant 0 : i32
    %130 = vector.broadcast %c0_i32_50 : i32 to vector<64x1xi32>
    %131 = arith.cmpi sge, %129, %130 : vector<64x1xi32>
    %cst_51 = arith.constant 0.000000e+00 : f32
    %132 = vector.shape_cast %131 : vector<64x1xi1> to vector<64x1xi1>
    %133 = vector.broadcast %132 : vector<64x1xi1> to vector<64x128xi1>
    %134 = vector.broadcast %cst_51 : f32 to vector<64x128xf32>
    %135 = arith.select %133, %127, %134 : vector<64x128xi1>, vector<64x128xf32>
    %136 = arith.truncf %135 : vector<64x128xf32> to vector<64x128xbf16>
    %137 = tpu.concatenate %136, %102 in 1 : vector<64x128xbf16>, vector<64x128xbf16> -> vector<64x256xbf16>
    %c1_52 = arith.constant 1 : index
    %c0_53 = arith.constant 0 : index
    %c0_54 = arith.constant 0 : index
    %138 = vector.load %arg7[%c1_52, %c0_53, %c0_54] : memref<4x256x128xbf16, #tpu.memory_space<vmem>>, vector<1x256x128xbf16>
    %139 = vector.shape_cast %138 : vector<1x256x128xbf16> to vector<256x128xbf16>
    %cst_55 = arith.constant dense<0.000000e+00> : vector<64x128xf32>
    %140 = tpu.matmul %137, %139, %cst_55 {dimension_numbers = #tpu.dot_dimension_numbers<[1], [0], [0], [1], [0, 0, 1, 1], [], []>} : vector<64x256xbf16>, vector<256x128xbf16>, vector<64x128xf32> -> vector<64x128xf32>
    %141 = arith.addf %126, %140 : vector<64x128xf32>
    %c56_i32 = arith.constant 56 : i32
    %142 = tpu.dynamic_rotate %101 by %c56_i32 dim 0 : vector<64x128xf32>, i32 -> vector<64x128xf32>
    %c1_i32_56 = arith.constant 1 : i32
    %143 = vector.broadcast %c1_i32_56 : i32 to vector<64x1xi32>
    %144 = arith.addi %4, %143 : vector<64x1xi32>
    %c8_i32_57 = arith.constant 8 : i32
    %145 = vector.broadcast %c8_i32_57 : i32 to vector<64x1xi32>
    %146 = arith.cmpi slt, %144, %145 : vector<64x1xi32>
    %cst_58 = arith.constant 0.000000e+00 : f32
    %147 = vector.shape_cast %146 : vector<64x1xi1> to vector<64x1xi1>
    %148 = vector.broadcast %147 : vector<64x1xi1> to vector<64x128xi1>
    %149 = vector.broadcast %cst_58 : f32 to vector<64x128xf32>
    %150 = arith.select %148, %142, %149 : vector<64x128xi1>, vector<64x128xf32>
    %151 = arith.truncf %150 : vector<64x128xf32> to vector<64x128xbf16>
    %c48_i32 = arith.constant 48 : i32
    %152 = tpu.dynamic_rotate %101 by %c48_i32 dim 0 : vector<64x128xf32>, i32 -> vector<64x128xf32>
    %c2_i32_59 = arith.constant 2 : i32
    %153 = vector.broadcast %c2_i32_59 : i32 to vector<64x1xi32>
    %154 = arith.addi %4, %153 : vector<64x1xi32>
    %c8_i32_60 = arith.constant 8 : i32
    %155 = vector.broadcast %c8_i32_60 : i32 to vector<64x1xi32>
    %156 = arith.cmpi slt, %154, %155 : vector<64x1xi32>
    %cst_61 = arith.constant 0.000000e+00 : f32
    %157 = vector.shape_cast %156 : vector<64x1xi1> to vector<64x1xi1>
    %158 = vector.broadcast %157 : vector<64x1xi1> to vector<64x128xi1>
    %159 = vector.broadcast %cst_61 : f32 to vector<64x128xf32>
    %160 = arith.select %158, %152, %159 : vector<64x128xi1>, vector<64x128xf32>
    %161 = arith.truncf %160 : vector<64x128xf32> to vector<64x128xbf16>
    %162 = tpu.concatenate %151, %161 in 1 : vector<64x128xbf16>, vector<64x128xbf16> -> vector<64x256xbf16>
    %c2_62 = arith.constant 2 : index
    %c0_63 = arith.constant 0 : index
    %c0_64 = arith.constant 0 : index
    %163 = vector.load %arg7[%c2_62, %c0_63, %c0_64] : memref<4x256x128xbf16, #tpu.memory_space<vmem>>, vector<1x256x128xbf16>
    %164 = vector.shape_cast %163 : vector<1x256x128xbf16> to vector<256x128xbf16>
    %cst_65 = arith.constant dense<0.000000e+00> : vector<64x128xf32>
    %165 = tpu.matmul %162, %164, %cst_65 {dimension_numbers = #tpu.dot_dimension_numbers<[1], [0], [0], [1], [0, 0, 1, 1], [], []>} : vector<64x256xbf16>, vector<256x128xbf16>, vector<64x128xf32> -> vector<64x128xf32>
    %166 = arith.addf %141, %165 : vector<64x128xf32>
    %c40_i32 = arith.constant 40 : i32
    %167 = tpu.dynamic_rotate %101 by %c40_i32 dim 0 : vector<64x128xf32>, i32 -> vector<64x128xf32>
    %c3_i32_66 = arith.constant 3 : i32
    %168 = vector.broadcast %c3_i32_66 : i32 to vector<64x1xi32>
    %169 = arith.addi %4, %168 : vector<64x1xi32>
    %c8_i32_67 = arith.constant 8 : i32
    %170 = vector.broadcast %c8_i32_67 : i32 to vector<64x1xi32>
    %171 = arith.cmpi slt, %169, %170 : vector<64x1xi32>
    %cst_68 = arith.constant 0.000000e+00 : f32
    %172 = vector.shape_cast %171 : vector<64x1xi1> to vector<64x1xi1>
    %173 = vector.broadcast %172 : vector<64x1xi1> to vector<64x128xi1>
    %174 = vector.broadcast %cst_68 : f32 to vector<64x128xf32>
    %175 = arith.select %173, %167, %174 : vector<64x128xi1>, vector<64x128xf32>
    %176 = arith.truncf %175 : vector<64x128xf32> to vector<64x128xbf16>
    %177 = tpu.concatenate %176, %102 in 1 : vector<64x128xbf16>, vector<64x128xbf16> -> vector<64x256xbf16>
    %c3_69 = arith.constant 3 : index
    %c0_70 = arith.constant 0 : index
    %c0_71 = arith.constant 0 : index
    %178 = vector.load %arg7[%c3_69, %c0_70, %c0_71] : memref<4x256x128xbf16, #tpu.memory_space<vmem>>, vector<1x256x128xbf16>
    %179 = vector.shape_cast %178 : vector<1x256x128xbf16> to vector<256x128xbf16>
    %cst_72 = arith.constant dense<0.000000e+00> : vector<64x128xf32>
    %180 = tpu.matmul %177, %179, %cst_72 {dimension_numbers = #tpu.dot_dimension_numbers<[1], [0], [0], [1], [0, 0, 1, 1], [], []>} : vector<64x256xbf16>, vector<256x128xbf16>, vector<64x128xf32> -> vector<64x128xf32>
    %181 = arith.addf %166, %180 : vector<64x128xf32>
    %c0_73 = arith.constant 0 : index
    %c0_74 = arith.constant 0 : index
    %182 = vector.load %arg8[%c0_73, %c0_74] : memref<1x128xf32, #tpu.memory_space<vmem>>, vector<1x128xf32>
    %183 = vector.broadcast %182 : vector<1x128xf32> to vector<64x128xf32>
    %184 = arith.addf %181, %183 : vector<64x128xf32>
    %cst_75 = arith.constant 0.000000e+00 : f32
    %185 = vector.broadcast %cst_75 : f32 to vector<64x128xf32>
    %186 = arith.maximumf %184, %185 : vector<64x128xf32>
    %187 = arith.truncf %186 : vector<64x128xf32> to vector<64x128xbf16>
    %c0_76 = arith.constant 0 : index
    %c0_77 = arith.constant 0 : index
    %188 = vector.load %arg9[%c0_76, %c0_77] : memref<256x128xbf16, #tpu.memory_space<vmem>>, vector<256x128xbf16>
    %189 = tpu.concatenate %15, %187 in 1 : vector<64x128xbf16>, vector<64x128xbf16> -> vector<64x256xbf16>
    %cst_78 = arith.constant dense<0.000000e+00> : vector<64x128xf32>
    %190 = tpu.matmul %189, %188, %cst_78 {dimension_numbers = #tpu.dot_dimension_numbers<[1], [0], [0], [1], [0, 0, 1, 1], [], []>} : vector<64x256xbf16>, vector<256x128xbf16>, vector<64x128xf32> -> vector<64x128xf32>
    %c0_79 = arith.constant 0 : index
    %c0_80 = arith.constant 0 : index
    %191 = vector.load %arg10[%c0_79, %c0_80] : memref<1x128xf32, #tpu.memory_space<vmem>>, vector<1x128xf32>
    %192 = vector.broadcast %191 : vector<1x128xf32> to vector<64x128xf32>
    %193 = arith.addf %190, %192 : vector<64x128xf32>
    %cst_81 = arith.constant 1.000000e-01 : f32
    %194 = vector.broadcast %cst_81 : f32 to vector<64x128xf32>
    %195 = arith.mulf %193, %194 : vector<64x128xf32>
    %c0_82 = arith.constant 0 : index
    %c0_83 = arith.constant 0 : index
    %196 = vector.load %arg1[%c0_82, %c0_83] : memref<64x128xf32, #tpu.memory_space<vmem>>, vector<64x128xf32>
    %197 = arith.addf %195, %196 : vector<64x128xf32>
    %cst_84 = arith.constant 0.000000e+00 : f32
    %198 = vector.broadcast %cst_84 : f32 to vector<64x128xf32>
    %199 = arith.maximumf %197, %198 : vector<64x128xf32>
    %c0_85 = arith.constant 0 : index
    %c0_86 = arith.constant 0 : index
    %200 = vector.load %arg11[%c0_85, %c0_86] : memref<64x128xf32, #tpu.memory_space<vmem>>, vector<64x128xf32>
    tpu.vector_store %arg11[%c0_85, %c0_86], %199 {strides = array<i32>} : memref<64x128xf32, #tpu.memory_space<vmem>>, vector<64x128xf32>,
    return
  }
  func.func @transform_0(%arg0: i32) -> (i32, i32) {
    %c0_i32 = arith.constant 0 : i32
    %c0_i32_0 = arith.constant 0 : i32
    return %arg0, %c0_i32 : i32, i32
  }
  func.func @transform_1(%arg0: i32) -> (i32, i32) {
    %c0_i32 = arith.constant 0 : i32
    %c0_i32_0 = arith.constant 0 : i32
    %c0_i32_1 = arith.constant 0 : i32
    return %c0_i32, %c0_i32_0 : i32, i32
  }
  func.func @transform_2(%arg0: i32) -> (i32, i32) {
    %c0_i32 = arith.constant 0 : i32
    %c0_i32_0 = arith.constant 0 : i32
    %c0_i32_1 = arith.constant 0 : i32
    return %c0_i32, %c0_i32_0 : i32, i32
  }
  func.func @transform_3(%arg0: i32) -> (i32, i32) {
    %c0_i32 = arith.constant 0 : i32
    %c0_i32_0 = arith.constant 0 : i32
    %c0_i32_1 = arith.constant 0 : i32
    return %c0_i32, %c0_i32_0 : i32, i32
  }
  func.func @transform_4(%arg0: i32) -> (i32, i32, i32) {
    %c0_i32 = arith.constant 0 : i32
    %c0_i32_0 = arith.constant 0 : i32
    %c0_i32_1 = arith.constant 0 : i32
    %c0_i32_2 = arith.constant 0 : i32
    return %c0_i32, %c0_i32_0, %c0_i32_1 : i32, i32, i32
  }
  func.func @transform_5(%arg0: i32) -> (i32, i32) {
    %c0_i32 = arith.constant 0 : i32
    %c0_i32_0 = arith.constant 0 : i32
    %c0_i32_1 = arith.constant 0 : i32
    return %c0_i32, %c0_i32_0 : i32, i32
  }
  func.func @transform_6(%arg0: i32) -> (i32, i32, i32) {
    %c0_i32 = arith.constant 0 : i32
    %c0_i32_0 = arith.constant 0 : i32
    %c0_i32_1 = arith.constant 0 : i32
    %c0_i32_2 = arith.constant 0 : i32
    return %c0_i32, %c0_i32_0, %c0_i32_1 : i32, i32, i32
  }
  func.func @transform_7(%arg0: i32) -> (i32, i32) {
    %c0_i32 = arith.constant 0 : i32
    %c0_i32_0 = arith.constant 0 : i32
    %c0_i32_1 = arith.constant 0 : i32
    return %c0_i32, %c0_i32_0 : i32, i32
  }
  func.func @transform_8(%arg0: i32) -> (i32, i32) {
    %c0_i32 = arith.constant 0 : i32
    %c0_i32_0 = arith.constant 0 : i32
    %c0_i32_1 = arith.constant 0 : i32
    return %c0_i32, %c0_i32_0 : i32, i32
  }
  func.func @transform_9(%arg0: i32) -> (i32, i32) {
    %c0_i32 = arith.constant 0 : i32
    %c0_i32_0 = arith.constant 0 : i32
    %c0_i32_1 = arith.constant 0 : i32
    return %c0_i32, %c0_i32_0 : i32, i32
  }
  func.func @transform_10(%arg0: i32) -> (i32, i32) {
    %c0_i32 = arith.constant 0 : i32
    %c0_i32_0 = arith.constant 0 : i32
    return %arg0, %c0_i32 : i32, i32
  }
}

</mosaic_0001>

<llo_original>
// kernel: tpu_custom_call.1
$region0: #{tpu_custom_call.1}
  #allocation0 [shape = 'u32[]', space=smem, size = 0x4, offset = 0x4, fixed_abs, tag = 'smem constant byte address 0x4 - core index']
  #allocation1 [shape = 'u32[144,128]{1,0:T(1,128)}', space=vmem, size = 0x12000, scoped, tag = 'internal scratch']
  %s0 = inlined_call_operand.hbm [shape: f32[256,128], index: 0, kind: input, shape index: {}]
  %s1 = inlined_call_operand.vmem [shape: s32[64,1], index: 1, kind: input, shape index: {}]
  %s2 = inlined_call_operand.hbm [shape: bf16[128,256], index: 2, kind: input, shape index: {}]
  %s3 = inlined_call_operand.vmem [shape: f32[1,256], index: 3, kind: input, shape index: {}]
  %s4 = inlined_call_operand.hbm [shape: bf16[4,256,128], index: 4, kind: input, shape index: {}]
  %s5 = inlined_call_operand.vmem [shape: f32[1,128], index: 5, kind: input, shape index: {}]
  %s6 = inlined_call_operand.hbm [shape: bf16[4,256,128], index: 6, kind: input, shape index: {}]
  %s7 = inlined_call_operand.vmem [shape: f32[1,128], index: 7, kind: input, shape index: {}]
  %s8 = inlined_call_operand.hbm [shape: bf16[256,128], index: 8, kind: input, shape index: {}]
  %s9 = inlined_call_operand.vmem [shape: f32[1,128], index: 9, kind: input, shape index: {}]
  %s10 = inlined_call_operand.hbm [shape: f32[256,128], index: 10, kind: output, shape index: {}]
  %s11 = sld [smem:[#allocation0]]
  $region93: #{tpu_custom_call.1} parent=0
    _
  %s13 = ssub.s32 1, %s11
  %s14 = scalar_select 0, %s13, %s11
  $region1: #{tpu_custom_call.1} parent=0
    #allocation2 [shape = 'u8[65536]{0}', space=vmem, size = 0x10000, scoped, tag = 'input window, operand 0']
    #allocation3 [shape = 's32[2]{0}', space=sflag, size = 0x8, scoped, tag = 'scoped memory for tpu_custom_call.1']
    #allocation4 [shape = 's32[2]{0}', space=sflag, size = 0x8, scoped, tag = 'scoped memory for tpu_custom_call.1']
    #allocation5 [shape = 'u8[65536]{0}', space=vmem, size = 0x10000, scoped, tag = 'input window, operand 2, single buffered']
    #allocation6 [shape = 's32[1]{0}', space=sflag, size = 0x4, scoped, tag = 'scoped memory for tpu_custom_call.1']
    #allocation7 [shape = 'u8[262144]{0}', space=vmem, size = 0x40000, scoped, tag = 'input window, operand 4, single buffered']
    #allocation8 [shape = 'u8[262144]{0}', space=vmem, size = 0x40000, scoped, tag = 'input window, operand 6, single buffered']
    #allocation9 [shape = 's32[1]{0}', space=sflag, size = 0x4, scoped, tag = 'scoped memory for tpu_custom_call.1']
    #allocation10 [shape = 'u8[65536]{0}', space=vmem, size = 0x10000, scoped, tag = 'input window, operand 8, single buffered']
    #allocation11 [shape = 'u8[65536]{0}', space=vmem, size = 0x10000, scoped, tag = 'output window, operand 0']
    %15 = vsyncpa [#allocation3], 0
    %s16 = scalar_lea.sflag [#allocation3], 1
    %17 = vsyncpa %s16, 0
    %18 = vsyncpa [#allocation6], 0
    %19 = vsyncpa [#allocation9], 0
    %20 = vsyncpa [#allocation4], 0
    %s21 = scalar_lea.sflag [#allocation4], 1
    %22 = vsyncpa %s21, 0
    loop: start=0, step=1, limit=6
    $region2: #{tpu_custom_call.1} parent=1 // loop_pre_header
      _
    $region3: #{tpu_custom_call.1} parent=1 // loop_header
      %s24 = sphi 0, %s28
      %p25 = scmp.ge.s32.totalorder %s24, 6
      %s34 = sphi 0, %s36
      %s37 = sphi 0, %s34
      %s38 = sphi 0, %s37
      %s54 = sphi 0, %s38
      %s58 = sphi 0, %s58
      %s60 = sphi 0, %s58
      %s61 = sphi 0, %s60
      %s75 = sphi 0, %s61
      %s79 = sphi 0, %s79
      %s81 = sphi 0, %s79
      %s82 = sphi 0, %s81
      %s96 = sphi 0, %s82
      %s100 = sphi 0, %s100
      %s102 = sphi 0, %s100
      %s103 = sphi 0, %s102
      %s117 = sphi 0, %s103
      %s121 = sphi 0, %s121
      %s123 = sphi 0, %s121
      %s124 = sphi 0, %s123
      %s138 = sphi 0, %s124
      %s142 = sphi 0, %s142
      %s144 = sphi 0, %s142
      %s145 = sphi 0, %s144
      %s159 = sphi 0, %s145
      %s163 = sphi 0, %s163
      %s165 = sphi 0, %s163
      %s166 = sphi 0, %s165
      %s180 = sphi 0, %s166
      %s184 = sphi 0, %s184
      %s186 = sphi 0, %s184
      %s187 = sphi 0, %s186
      %s201 = sphi 0, %s187
      %s205 = sphi 0, %s205
      %s207 = sphi 0, %s205
      %s208 = sphi 0, %s207
      %s222 = sphi 0, %s208
      %s226 = sphi 0, %s226
      %s228 = sphi 0, %s226
      %s229 = sphi 0, %s228
      %s243 = sphi 0, %s229
      %s249 = sphi 0, %s251
      %s252 = sphi 0, %s249
      %s253 = sphi 0, %s252
      %s269 = sphi 0, %s253
    $region4: #{tpu_custom_call.1} parent=1 // loop_header_branch
      %27 = sbr.rel (%p25) target = $region8
    $region5: #{tpu_custom_call.1} parent=1 // loop_body
      %s29 = ssub.s32 %s24, 1
      %s30 = ssub.s32 %s24, 2
      %s31 = sadd.s32 %s24, 1
      %s32 = ssub.s32 %s24, %s31
      %p33 = scmp.eq.s32.totalorder %s32, 0
      %s35 = sadd.s32 %s34, 1
      %s36 = scalar_select %p33, %s34, %s35
      %p39 = pneg %p33
      %p40 = scmp.eq.s32.totalorder %s24, 3
      %p41 = por %p39, %p40
      %p42 = scmp.ne.s32.totalorder %s34, %s37
      %p43 = scmp.eq.s32.totalorder %s24, 0
      %p44 = por %p42, %p43
      %p45 = scmp.ne.s32.totalorder %s34, %s37
      %p46 = scmp.eq.s32.totalorder %s29, 3
      %p47 = por %p45, %p46
      %p48 = scmp.ne.s32.totalorder %s37, %s38
      %p49 = scmp.eq.s32.totalorder %s29, 0
      %p50 = por %p48, %p49
      %p51 = scmp.ne.s32.totalorder %s37, %s38
      %p52 = scmp.eq.s32.totalorder %s30, 3
      %p53 = por %p51, %p52
      %p55 = scmp.ne.s32.totalorder %s38, %s54
      %p56 = scmp.eq.s32.totalorder %s30, 0
      %p57 = por %p55, %p56
      %s59 = sadd.s32 %s58, 1
      %p62 = scmp.eq.s32.totalorder %s24, 3
      %p63 = scmp.ne.s32.totalorder %s58, %s60
      %p64 = scmp.eq.s32.totalorder %s24, 0
      %p65 = por %p63, %p64
      %p66 = scmp.ne.s32.totalorder %s58, %s60
      %p67 = scmp.eq.s32.totalorder %s29, 3
      %p68 = por %p66, %p67
      %p69 = scmp.ne.s32.totalorder %s60, %s61
      %p70 = scmp.eq.s32.totalorder %s29, 0
      %p71 = por %p69, %p70
      %p72 = scmp.ne.s32.totalorder %s60, %s61
      %p73 = scmp.eq.s32.totalorder %s30, 3
      %p74 = por %p72, %p73
      %p76 = scmp.ne.s32.totalorder %s61, %s75
      %p77 = scmp.eq.s32.totalorder %s30, 0
      %p78 = por %p76, %p77
      %s80 = sadd.s32 %s79, 1
      %p83 = scmp.eq.s32.totalorder %s24, 3
      %p84 = scmp.ne.s32.totalorder %s79, %s81
      %p85 = scmp.eq.s32.totalorder %s24, 0
      %p86 = por %p84, %p85
      %p87 = scmp.ne.s32.totalorder %s79, %s81
      %p88 = scmp.eq.s32.totalorder %s29, 3
      %p89 = por %p87, %p88
      %p90 = scmp.ne.s32.totalorder %s81, %s82
      %p91 = scmp.eq.s32.totalorder %s29, 0
      %p92 = por %p90, %p91
      %p93 = scmp.ne.s32.totalorder %s81, %s82
      %p94 = scmp.eq.s32.totalorder %s30, 3
      %p95 = por %p93, %p94
      %p97 = scmp.ne.s32.totalorder %s82, %s96
      %p98 = scmp.eq.s32.totalorder %s30, 0
      %p99 = por %p97, %p98
      %s101 = sadd.s32 %s100, 1
      %p104 = scmp.eq.s32.totalorder %s24, 3
      %p105 = scmp.ne.s32.totalorder %s100, %s102
      %p106 = scmp.eq.s32.totalorder %s24, 0
      %p107 = por %p105, %p106
      %p108 = scmp.ne.s32.totalorder %s100, %s102
      %p109 = scmp.eq.s32.totalorder %s29, 3
      %p110 = por %p108, %p109
      %p111 = scmp.ne.s32.totalorder %s102, %s103
      %p112 = scmp.eq.s32.totalorder %s29, 0
      %p113 = por %p111, %p112
      %p114 = scmp.ne.s32.totalorder %s102, %s103
      %p115 = scmp.eq.s32.totalorder %s30, 3
      %p116 = por %p114, %p115
      %p118 = scmp.ne.s32.totalorder %s103, %s117
      %p119 = scmp.eq.s32.totalorder %s30, 0
      %p120 = por %p118, %p119
      %s122 = sadd.s32 %s121, 1
      %p125 = scmp.eq.s32.totalorder %s24, 3
      %p126 = scmp.ne.s32.totalorder %s121, %s123
      %p127 = scmp.eq.s32.totalorder %s24, 0
      %p128 = por %p126, %p127
      %p129 = scmp.ne.s32.totalorder %s121, %s123
      %p130 = scmp.eq.s32.totalorder %s29, 3
      %p131 = por %p129, %p130
      %p132 = scmp.ne.s32.totalorder %s123, %s124
      %p133 = scmp.eq.s32.totalorder %s29, 0
      %p134 = por %p132, %p133
      %p135 = scmp.ne.s32.totalorder %s123, %s124
      %p136 = scmp.eq.s32.totalorder %s30, 3
      %p137 = por %p135, %p136
      %p139 = scmp.ne.s32.totalorder %s124, %s138
      %p140 = scmp.eq.s32.totalorder %s30, 0
      %p141 = por %p139, %p140
      %s143 = sadd.s32 %s142, 1
      %p146 = scmp.eq.s32.totalorder %s24, 3
      %p147 = scmp.ne.s32.totalorder %s142, %s144
      %p148 = scmp.eq.s32.totalorder %s24, 0
      %p149 = por %p147, %p148
      %p150 = scmp.ne.s32.totalorder %s142, %s144
      %p151 = scmp.eq.s32.totalorder %s29, 3
      %p152 = por %p150, %p151
      %p153 = scmp.ne.s32.totalorder %s144, %s145
      %p154 = scmp.eq.s32.totalorder %s29, 0
      %p155 = por %p153, %p154
      %p156 = scmp.ne.s32.totalorder %s144, %s145
      %p157 = scmp.eq.s32.totalorder %s30, 3
      %p158 = por %p156, %p157
      %p160 = scmp.ne.s32.totalorder %s145, %s159
      %p161 = scmp.eq.s32.totalorder %s30, 0
      %p162 = por %p160, %p161
      %s164 = sadd.s32 %s163, 1
      %p167 = scmp.eq.s32.totalorder %s24, 3
      %p168 = scmp.ne.s32.totalorder %s163, %s165
      %p169 = scmp.eq.s32.totalorder %s24, 0
      %p170 = por %p168, %p169
      %p171 = scmp.ne.s32.totalorder %s163, %s165
      %p172 = scmp.eq.s32.totalorder %s29, 3
      %p173 = por %p171, %p172
      %p174 = scmp.ne.s32.totalorder %s165, %s166
      %p175 = scmp.eq.s32.totalorder %s29, 0
      %p176 = por %p174, %p175
      %p177 = scmp.ne.s32.totalorder %s165, %s166
      %p178 = scmp.eq.s32.totalorder %s30, 3
      %p179 = por %p177, %p178
      %p181 = scmp.ne.s32.totalorder %s166, %s180
      %p182 = scmp.eq.s32.totalorder %s30, 0
      %p183 = por %p181, %p182
      %s185 = sadd.s32 %s184, 1
      %p188 = scmp.eq.s32.totalorder %s24, 3
      %p189 = scmp.ne.s32.totalorder %s184, %s186
      %p190 = scmp.eq.s32.totalorder %s24, 0
      %p191 = por %p189, %p190
      %p192 = scmp.ne.s32.totalorder %s184, %s186
      %p193 = scmp.eq.s32.totalorder %s29, 3
      %p194 = por %p192, %p193
      %p195 = scmp.ne.s32.totalorder %s186, %s187
      %p196 = scmp.eq.s32.totalorder %s29, 0
      %p197 = por %p195, %p196
      %p198 = scmp.ne.s32.totalorder %s186, %s187
      %p199 = scmp.eq.s32.totalorder %s30, 3
      %p200 = por %p198, %p199
      %p202 = scmp.ne.s32.totalorder %s187, %s201
      %p203 = scmp.eq.s32.totalorder %s30, 0
      %p204 = por %p202, %p203
      %s206 = sadd.s32 %s205, 1
      %p209 = scmp.eq.s32.totalorder %s24, 3
      %p210 = scmp.ne.s32.totalorder %s205, %s207
      %p211 = scmp.eq.s32.totalorder %s24, 0
      %p212 = por %p210, %p211
      %p213 = scmp.ne.s32.totalorder %s205, %s207
      %p214 = scmp.eq.s32.totalorder %s29, 3
      %p215 = por %p213, %p214
      %p216 = scmp.ne.s32.totalorder %s207, %s208
      %p217 = scmp.eq.s32.totalorder %s29, 0
      %p218 = por %p216, %p217
      %p219 = scmp.ne.s32.totalorder %s207, %s208
      %p220 = scmp.eq.s32.totalorder %s30, 3
      %p221 = por %p219, %p220
      %p223 = scmp.ne.s32.totalorder %s208, %s222
      %p224 = scmp.eq.s32.totalorder %s30, 0
      %p225 = por %p223, %p224
      %s227 = sadd.s32 %s226, 1
      %p230 = scmp.eq.s32.totalorder %s24, 3
      %p231 = scmp.ne.s32.totalorder %s226, %s228
      %p232 = scmp.eq.s32.totalorder %s24, 0
      %p233 = por %p231, %p232
      %p234 = scmp.ne.s32.totalorder %s226, %s228
      %p235 = scmp.eq.s32.totalorder %s29, 3
      %p236 = por %p234, %p235
      %p237 = scmp.ne.s32.totalorder %s228, %s229
      %p238 = scmp.eq.s32.totalorder %s29, 0
      %p239 = por %p237, %p238
      %p240 = scmp.ne.s32.totalorder %s228, %s229
      %p241 = scmp.eq.s32.totalorder %s30, 3
      %p242 = por %p240, %p241
      %p244 = scmp.ne.s32.totalorder %s229, %s243
      %p245 = scmp.eq.s32.totalorder %s30, 0
      %p246 = por %p244, %p245
      %s247 = ssub.s32 %s24, %s31
      %p248 = scmp.eq.s32.totalorder %s247, 0
      %s250 = sadd.s32 %s249, 1
      %s251 = scalar_select %p248, %s249, %s250
      %p254 = pneg %p248
      %p255 = scmp.eq.s32.totalorder %s24, 3
      %p256 = por %p254, %p255
      %p257 = scmp.ne.s32.totalorder %s249, %s252
      %p258 = scmp.eq.s32.totalorder %s24, 0
      %p259 = por %p257, %p258
      %p260 = scmp.ne.s32.totalorder %s249, %s252
      %p261 = scmp.eq.s32.totalorder %s29, 3
      %p262 = por %p260, %p261
      %p263 = scmp.ne.s32.totalorder %s252, %s253
      %p264 = scmp.eq.s32.totalorder %s29, 0
      %p265 = por %p263, %p264
      %p266 = scmp.ne.s32.totalorder %s252, %s253
      %p267 = scmp.eq.s32.totalorder %s30, 3
      %p268 = por %p266, %p267
      %p270 = scmp.ne.s32.totalorder %s253, %s269
      %p271 = scmp.eq.s32.totalorder %s30, 0
      %p272 = por %p270, %p271
      %p273 = scmp.le.s32.totalorder 1, %s24
      %p274 = scmp.lt.s32.totalorder %s24, 5
      %p275 = pnand %p273, %p274
      %p276 = pneg %p275
      // Predicated region
      $region9: #{tpu_custom_call.1} parent=5 // pred_check
        _
      $region10: #{tpu_custom_call.1} parent=5 // pred_check_branch
        %278 = sbr.rel (%p275) target = $region12
      $region11: #{tpu_custom_call.1} parent=5 // pred_region
        %s279 = ssub.s32 %s24, 1
        // Predicated region
        $region13: #{tpu_custom_call.1} parent=11 // pred_check
          %p280 = pneg %p71
        $region14: #{tpu_custom_call.1} parent=11 // pred_check_branch
          %282 = sbr.rel (%p280) target = $region16
        $region15: #{tpu_custom_call.1} parent=11 // pred_region
          _
        $region16: #{tpu_custom_call.1} parent=11 // pred_fallthru
          _
        // Predicated region
        $region17: #{tpu_custom_call.1} parent=11 // pred_check
          %p283 = pneg %p92
        $region18: #{tpu_custom_call.1} parent=11 // pred_check_branch
          %285 = sbr.rel (%p283) target = $region20
        $region19: #{tpu_custom_call.1} parent=11 // pred_region
          %s287 = ssub.s32 2048, 2048
          %288 = vsyncadd [#allocation6], %s287
          %s289 = sshll.u32 [#allocation5], 4
          %s290 = int_to_ptr.vmem [resolvable:$true] %s289
          %295 = dma.hbm_to_vmem [thread:$0]  %s2, 2048, %s290, [#allocation6], 128, 128, 8
        $region20: #{tpu_custom_call.1} parent=11 // pred_fallthru
          _
        // Predicated region
        $region21: #{tpu_custom_call.1} parent=11 // pred_check
          %p296 = pneg %p113
        $region22: #{tpu_custom_call.1} parent=11 // pred_check_branch
          %298 = sbr.rel (%p296) target = $region24
        $region23: #{tpu_custom_call.1} parent=11 // pred_region
          _
        $region24: #{tpu_custom_call.1} parent=11 // pred_fallthru
          _
        // Predicated region
        $region25: #{tpu_custom_call.1} parent=11 // pred_check
          %p299 = pneg %p134
        $region26: #{tpu_custom_call.1} parent=11 // pred_check_branch
          %301 = sbr.rel (%p299) target = $region28
        $region27: #{tpu_custom_call.1} parent=11 // pred_region
          %s303 = ssub.s32 8192, 8192
          %304 = vsyncadd [#allocation6], %s303
          %s305 = sshll.u32 [#allocation7], 4
          %s306 = int_to_ptr.vmem [resolvable:$true] %s305
          %311 = dma.hbm_to_vmem [thread:$0]  %s4, 8192, %s306, [#allocation6], 64, 64, 4
        $region28: #{tpu_custom_call.1} parent=11 // pred_fallthru
          _
        // Predicated region
        $region29: #{tpu_custom_call.1} parent=11 // pred_check
          %p312 = pneg %p155
        $region30: #{tpu_custom_call.1} parent=11 // pred_check_branch
          %314 = sbr.rel (%p312) target = $region32
        $region31: #{tpu_custom_call.1} parent=11 // pred_region
          _
        $region32: #{tpu_custom_call.1} parent=11 // pred_fallthru
          _
        // Predicated region
        $region33: #{tpu_custom_call.1} parent=11 // pred_check
          %p315 = pneg %p176
        $region34: #{tpu_custom_call.1} parent=11 // pred_check_branch
          %317 = sbr.rel (%p315) target = $region36
        $region35: #{tpu_custom_call.1} parent=11 // pred_region
          %s319 = ssub.s32 8192, 8192
          %320 = vsyncadd [#allocation9], %s319
          %s321 = sshll.u32 [#allocation8], 4
          %s322 = int_to_ptr.vmem [resolvable:$true] %s321
          %327 = dma.hbm_to_vmem [thread:$0]  %s6, 8192, %s322, [#allocation9], 64, 64, 4
        $region36: #{tpu_custom_call.1} parent=11 // pred_fallthru
          _
        // Predicated region
        $region37: #{tpu_custom_call.1} parent=11 // pred_check
          %p328 = pneg %p197
        $region38: #{tpu_custom_call.1} parent=11 // pred_check_branch
          %330 = sbr.rel (%p328) target = $region40
        $region39: #{tpu_custom_call.1} parent=11 // pred_region
          _
        $region40: #{tpu_custom_call.1} parent=11 // pred_fallthru
          _
        // Predicated region
        $region41: #{tpu_custom_call.1} parent=11 // pred_check
          %p331 = pneg %p218
        $region42: #{tpu_custom_call.1} parent=11 // pred_check_branch
          %333 = sbr.rel (%p331) target = $region44
        $region43: #{tpu_custom_call.1} parent=11 // pred_region
          %s335 = ssub.s32 2048, 2048
          %336 = vsyncadd [#allocation9], %s335
          %s337 = sshll.u32 [#allocation10], 4
          %s338 = int_to_ptr.vmem [resolvable:$true] %s337
          %343 = dma.hbm_to_vmem [thread:$0]  %s8, 2048, %s338, [#allocation9], 64, 64, 4
        $region44: #{tpu_custom_call.1} parent=11 // pred_fallthru
          _
        // Predicated region
        $region45: #{tpu_custom_call.1} parent=11 // pred_check
          %p344 = pneg %p239
        $region46: #{tpu_custom_call.1} parent=11 // pred_check_branch
          %346 = sbr.rel (%p344) target = $region48
        $region47: #{tpu_custom_call.1} parent=11 // pred_region
          _
        $region48: #{tpu_custom_call.1} parent=11 // pred_fallthru
          _
      $region12: #{tpu_custom_call.1} parent=5 // pred_fallthru
        _
      %p347 = scmp.lt.s32.totalorder %s24, 4
      // Predicated region
      $region49: #{tpu_custom_call.1} parent=5 // pred_check
        %p348 = pneg %p347
      $region50: #{tpu_custom_call.1} parent=5 // pred_check_branch
        %350 = sbr.rel (%p348) target = $region52
      $region51: #{tpu_custom_call.1} parent=5 // pred_region
        // Predicated region
        $region53: #{tpu_custom_call.1} parent=51 // pred_check
          %p351 = pneg %p44
        $region54: #{tpu_custom_call.1} parent=51 // pred_check_branch
          %353 = sbr.rel (%p351) target = $region56
        $region55: #{tpu_custom_call.1} parent=51 // pred_region
          %s354 = sand.u32 %s34, 1
          %s355 = scalar_lea.sflag [#allocation3], %s354
          %s356 = sand.u32 %s34, 1
          %s357 = smul.addr %s356, 64
          %s358 = scalar_lea.vmem [#allocation2], %s357
          %s359 = smul.u32 8, %s24
          %s361 = ssub.s32 1024, 1024
          %362 = vsyncadd %s355, %s361
          %s363 = smul.addr %s359, 128
          %s364 = scalar_lea.hbm %s0, %s363
          %s365 = sshll.u32 %s358, 4
          %s366 = int_to_ptr.vmem [resolvable:$true] %s365
          %371 = dma.hbm_to_vmem [thread:$0]  %s364, 1024, %s366, %s355, 128, 128, 8
        $region56: #{tpu_custom_call.1} parent=51 // pred_fallthru
          _
      $region52: #{tpu_custom_call.1} parent=5 // pred_fallthru
        _
      %p372 = scmp.le.s32.totalorder 1, %s24
      %p373 = scmp.lt.s32.totalorder %s24, 5
      %p374 = pnand %p372, %p373
      %p375 = pneg %p374
      // Predicated region
      $region57: #{tpu_custom_call.1} parent=5 // pred_check
        _
      $region58: #{tpu_custom_call.1} parent=5 // pred_check_branch
        %377 = sbr.rel (%p374) target = $region60
      $region59: #{tpu_custom_call.1} parent=5 // pred_region
        %s378 = ssub.s32 %s24, 1
        %s379 = sand.u32 %s37, 1
        %s380 = scalar_lea.sflag [#allocation3], %s379
        %s381 = sand.u32 %s37, 1
        %s382 = smul.addr %s381, 64
        %s383 = scalar_lea.vmem [#allocation2], %s382
        // Predicated region
        $region61: #{tpu_custom_call.1} parent=59 // pred_check
          %p384 = pneg %p50
        $region62: #{tpu_custom_call.1} parent=59 // pred_check_branch
          %386 = sbr.rel (%p384) target = $region64
        $region63: #{tpu_custom_call.1} parent=59 // pred_region
          %387 = dma.done %s380, 1024
        $region64: #{tpu_custom_call.1} parent=59 // pred_fallthru
          _
        // Predicated region
        $region65: #{tpu_custom_call.1} parent=59 // pred_check
          %p388 = pneg %p92
        $region66: #{tpu_custom_call.1} parent=59 // pred_check_branch
          %390 = sbr.rel (%p388) target = $region68
        $region67: #{tpu_custom_call.1} parent=59 // pred_region
          %391 = dma.done [#allocation6], 2048
        $region68: #{tpu_custom_call.1} parent=59 // pred_fallthru
          _
        // Predicated region
        $region69: #{tpu_custom_call.1} parent=59 // pred_check
          %p392 = pneg %p134
        $region70: #{tpu_custom_call.1} parent=59 // pred_check_branch
          %394 = sbr.rel (%p392) target = $region72
        $region71: #{tpu_custom_call.1} parent=59 // pred_region
          %395 = dma.done [#allocation6], 8192
        $region72: #{tpu_custom_call.1} parent=59 // pred_fallthru
          _
        // Predicated region
        $region73: #{tpu_custom_call.1} parent=59 // pred_check
          %p396 = pneg %p176
        $region74: #{tpu_custom_call.1} parent=59 // pred_check_branch
          %398 = sbr.rel (%p396) target = $region76
        $region75: #{tpu_custom_call.1} parent=59 // pred_region
          %399 = dma.done [#allocation9], 8192
        $region76: #{tpu_custom_call.1} parent=59 // pred_fallthru
          _
        // Predicated region
        $region77: #{tpu_custom_call.1} parent=59 // pred_check
          %p400 = pneg %p218
        $region78: #{tpu_custom_call.1} parent=59 // pred_check_branch
          %402 = sbr.rel (%p400) target = $region80
        $region79: #{tpu_custom_call.1} parent=59 // pred_region
          %403 = dma.done [#allocation9], 2048
        $region80: #{tpu_custom_call.1} parent=59 // pred_fallthru
          _
        %s404 = sand.u32 %s37, 1
        %s405 = scalar_lea.sflag [#allocation3], %s404
        %s406 = sand.u32 %s37, 1
        %s407 = smul.addr %s406, 64
        %s408 = scalar_lea.vmem [#allocation2], %s407
        %p409 = pneg %p50
        %p410 = pneg %p47
        %p411 = pneg %p71
        %p412 = pneg %p68
        %p413 = pneg %p92
        %p414 = pneg %p89
        %p415 = pneg %p113
        %p416 = pneg %p110
        %p417 = pneg %p134
        %p418 = pneg %p131
        %p419 = pneg %p155
        %p420 = pneg %p152
        %p421 = pneg %p176
        %p422 = pneg %p173
        %p423 = pneg %p197
        %p424 = pneg %p194
        %p425 = pneg %p218
        %p426 = pneg %p215
        %p427 = pneg %p239
        %p428 = pneg %p236
        %p429 = pneg %p265
        %p430 = pneg %p262
        %s431 = sand.u32 %s252, 1
        %s432 = scalar_lea.sflag [#allocation4], %s431
        %s433 = sand.u32 %s252, 1
        %s434 = smul.addr %s433, 64
        %s435 = scalar_lea.vmem [#allocation11], %s434
        %s436 = smul.u32 8, %s29
        %s437 = smul.u32 8, %s29
        %v439 = vld [vmem:[%s1] sm:$0xff]
        %v440 = vld [vmem:[%s1 + $0x8] sm:$0xff]
        %v441 = vld [vmem:[%s1 + $0x10] sm:$0xff]
        %v442 = vld [vmem:[%s1 + $0x18] sm:$0xff]
        %v443 = vld [vmem:[%s1 + $0x20] sm:$0xff]
        %v444 = vld [vmem:[%s1 + $0x28] sm:$0xff]
        %v445 = vld [vmem:[%s1 + $0x30] sm:$0xff]
        %v446 = vld [vmem:[%s1 + $0x38] sm:$0xff]
        %v447 = vand.u32 %v439, 65535
        %v448 = vand.u32 %v440, 65535
        %v449 = vand.u32 %v441, 65535
        %v450 = vand.u32 %v442, 65535
        %v451 = vand.u32 %v443, 65535
        %v452 = vand.u32 %v444, 65535
        %v453 = vand.u32 %v445, 65535
        %v454 = vand.u32 %v446, 65535
        %v455 = vshra.s32 %v439, 16
        %v456 = vshra.s32 %v440, 16
        %v457 = vshra.s32 %v441, 16
        %v458 = vshra.s32 %v442, 16
        %v459 = vshra.s32 %v443, 16
        %v460 = vshra.s32 %v444, 16
        %v461 = vshra.s32 %v445, 16
        %v462 = vshra.s32 %v446, 16
        %v463 = vld [vmem:[%s383] sm:$0xff]
        %v464 = vld [vmem:[%s383 + $0x8] sm:$0xff]
        %v465 = vld [vmem:[%s383 + $0x10] sm:$0xff]
        %v466 = vld [vmem:[%s383 + $0x18] sm:$0xff]
        %v467 = vld [vmem:[%s383 + $0x20] sm:$0xff]
        %v468 = vld [vmem:[%s383 + $0x28] sm:$0xff]
        %v469 = vld [vmem:[%s383 + $0x30] sm:$0xff]
        %v470 = vld [vmem:[%s383 + $0x38] sm:$0xff]
        %v471 = vpack.c.bf16 %v464, %v463
        %v472 = vpack.c.bf16 %v466, %v465
        %v473 = vpack.c.bf16 %v468, %v467
        %v474 = vpack.c.bf16 %v470, %v469
        %v475 = vld [vmem:[#allocation5] sm:$0xff]
        %v476 = vld [vmem:[#allocation5 + $0x8] sm:$0xff]
        %v477 = vld [vmem:[#allocation5 + $0x10] sm:$0xff]
        %v478 = vld [vmem:[#allocation5 + $0x18] sm:$0xff]
        %v479 = vld [vmem:[#allocation5 + $0x20] sm:$0xff]
        %v480 = vld [vmem:[#allocation5 + $0x28] sm:$0xff]
        %v481 = vld [vmem:[#allocation5 + $0x30] sm:$0xff]
        %v482 = vld [vmem:[#allocation5 + $0x38] sm:$0xff]
        %v483 = vld [vmem:[#allocation5 + $0x40] sm:$0xff]
        %v484 = vld [vmem:[#allocation5 + $0x48] sm:$0xff]
        %v485 = vld [vmem:[#allocation5 + $0x50] sm:$0xff]
        %v486 = vld [vmem:[#allocation5 + $0x58] sm:$0xff]
        %v487 = vld [vmem:[#allocation5 + $0x60] sm:$0xff]
        %v488 = vld [vmem:[#allocation5 + $0x68] sm:$0xff]
        %v489 = vld [vmem:[#allocation5 + $0x70] sm:$0xff]
        %v490 = vld [vmem:[#allocation5 + $0x78] sm:$0xff]
        %v491 = vld [vmem:[%s3] sm:$0x3]
        %v493 = vlaneseq
        %v494 = vshrl.u32 %v493, 7
        %v495 = vsub.s32 0, %v494
        %v496 = vrot.slane %v491, %v495
        %v497 = vlaneseq
        %v498 = vshrl.u32 %v497, 7
        %v499 = vsub.s32 1, %v498
        %v500 = vrot.slane %v491, %v499
        %v519 = vunpack.c.l.b16 %v475
        %v520 = vunpack.c.h.b16 %v475
        %v521 = vunpack.c.l.b16 %v476
        %v522 = vunpack.c.h.b16 %v476
        %v523 = vunpack.c.l.b16 %v477
        %v524 = vunpack.c.h.b16 %v477
        %v525 = vunpack.c.l.b16 %v478
        %v526 = vunpack.c.h.b16 %v478
        %v527 = vunpack.c.l.b16 %v479
        %v528 = vunpack.c.h.b16 %v479
        %v529 = vunpack.c.l.b16 %v480
        %v530 = vunpack.c.h.b16 %v480
        %v531 = vunpack.c.l.b16 %v481
        %v532 = vunpack.c.h.b16 %v481
        %v533 = vunpack.c.l.b16 %v482
        %v534 = vunpack.c.h.b16 %v482
        %v535 = vunpack.c.l.b16 %v483
        %v536 = vunpack.c.h.b16 %v483
        %v537 = vunpack.c.l.b16 %v484
        %v538 = vunpack.c.h.b16 %v484
        %v539 = vunpack.c.l.b16 %v485
        %v540 = vunpack.c.h.b16 %v485
        %v541 = vunpack.c.l.b16 %v486
        %v542 = vunpack.c.h.b16 %v486
        %v543 = vunpack.c.l.b16 %v487
        %v544 = vunpack.c.h.b16 %v487
        %v545 = vunpack.c.l.b16 %v488
        %v546 = vunpack.c.h.b16 %v488
        %v547 = vunpack.c.l.b16 %v489
        %v548 = vunpack.c.h.b16 %v489
        %v549 = vunpack.c.l.b16 %v490
        %v550 = vunpack.c.h.b16 %v490
        %v551 = vpack.c.b16 %v521, %v519
        %v552 = vpack.c.b16 %v522, %v520
        %v553 = vpack.c.b16 %v525, %v523
        %v554 = vpack.c.b16 %v526, %v524
        %v555 = vpack.c.b16 %v529, %v527
        %v556 = vpack.c.b16 %v530, %v528
        %v557 = vpack.c.b16 %v533, %v531
        %v558 = vpack.c.b16 %v534, %v532
        %v559 = vpack.c.b16 %v537, %v535
        %v560 = vpack.c.b16 %v538, %v536
        %v561 = vpack.c.b16 %v541, %v539
        %v562 = vpack.c.b16 %v542, %v540
        %v563 = vpack.c.b16 %v545, %v543
        %v564 = vpack.c.b16 %v546, %v544
        %v565 = vpack.c.b16 %v549, %v547
        %v566 = vpack.c.b16 %v550, %v548
        %583 = vmatprep.subr.bf16.mxu0 %v552
        %584 = vmatpush1.bf16.msra.mxu0 %v551
        %585 = vmatprep.subr.bf16.mxu0 %v554
        %586 = vmatpush1.bf16.msra.mxu0 %v553
        %587 = vmatprep.subr.bf16.mxu0 %v556
        %588 = vmatpush1.bf16.msra.mxu0 %v555
        %589 = vmatprep.subr.bf16.mxu0 %v558
        %590 = vmatpush1.bf16.msra.mxu0 %v557
        %591 = vmatprep.subr.bf16.mxu0 %v560
        %592 = vmatpush1.bf16.msra.mxu0 %v559
        %593 = vmatprep.subr.bf16.mxu0 %v562
        %594 = vmatpush1.bf16.msra.mxu0 %v561
        %595 = vmatprep.subr.bf16.mxu0 %v564
        %596 = vmatpush1.bf16.msra.mxu0 %v563
        %597 = vmatprep.subr.bf16.mxu0 %v566
        %598 = vmatpush1.bf16.msra.mxu0 %v565
        %599 = vmatprep.subr.bf16.mxu0 0
        %600 = vmatpush1.bf16.msra.mxu0 0
        %601 = vmatprep.subr.bf16.mxu0 0
        %602 = vmatpush1.bf16.msra.mxu0 0
        %603 = vmatprep.subr.bf16.mxu0 0
        %604 = vmatpush1.bf16.msra.mxu0 0
        %605 = vmatprep.subr.bf16.mxu0 0
        %606 = vmatpush1.bf16.msra.mxu0 0
        %607 = vmatprep.subr.bf16.mxu0 0
        %608 = vmatpush1.bf16.msra.mxu0 0
        %609 = vmatprep.subr.bf16.mxu0 0
        %610 = vmatpush1.bf16.msra.mxu0 0
        %611 = vmatprep.subr.bf16.mxu0 0
        %612 = vmatpush1.bf16.msra.mxu0 0
        %613 = vmatprep.subr.bf16.mxu0 0
        %614 = vmatpush1.bf16.msra.mxu0 0
        %615 = vmatprep.mubr.bf16.mxu0 0
        %616 = vmatmul.mubr.bf16.gmra.mrb[0].mxu0 %v471
        %v617 = vpop.f32.mrb[0].mxu0
        %v618 = vadd.f32 %v496, %v617
        %v619 = vpop.f32.mrb[0].mxu0
        %v620 = vadd.f32 %v500, %v619
        %v621 = vpop.f32.mrb[0].mxu0
        %v622 = vadd.f32 %v496, %v621
        %v623 = vpop.f32.mrb[0].mxu0
        %v624 = vadd.f32 %v500, %v623
        %625 = vmatprep.mubr.bf16.mxu0 0
        %626 = vmatmul.mubr.bf16.gmra.mrb[0].mxu0 %v472
        %v627 = vpop.f32.mrb[0].mxu0
        %v628 = vadd.f32 %v496, %v627
        %v629 = vpop.f32.mrb[0].mxu0
        %v630 = vadd.f32 %v500, %v629
        %v631 = vpop.f32.mrb[0].mxu0
        %v632 = vadd.f32 %v496, %v631
        %v633 = vpop.f32.mrb[0].mxu0
        %v634 = vadd.f32 %v500, %v633
        %635 = vmatprep.mubr.bf16.mxu0 0
        %636 = vmatmul.mubr.bf16.gmra.mrb[0].mxu0 %v473
        %v637 = vpop.f32.mrb[0].mxu0
        %v638 = vadd.f32 %v496, %v637
        %v639 = vpop.f32.mrb[0].mxu0
        %v640 = vadd.f32 %v500, %v639
        %v641 = vpop.f32.mrb[0].mxu0
        %v642 = vadd.f32 %v496, %v641
        %v643 = vpop.f32.mrb[0].mxu0
        %v644 = vadd.f32 %v500, %v643
        %645 = vmatprep.mubr.bf16.mxu0 0
        %646 = vmatmul.mubr.bf16.gmra.mrb[0].mxu0 %v474
        %v647 = vpop.f32.mrb[0].mxu0
        %v648 = vadd.f32 %v496, %v647
        %v649 = vpop.f32.mrb[0].mxu0
        %v650 = vadd.f32 %v500, %v649
        %v651 = vpop.f32.mrb[0].mxu0
        %v652 = vadd.f32 %v496, %v651
        %v653 = vpop.f32.mrb[0].mxu0
        %v654 = vadd.f32 %v500, %v653
        %655 = vdwg.mxu0
        %v656 = vmax.f32 %v618, 0.0
        %v657 = vmax.f32 %v620, 0.0
        %v658 = vmax.f32 %v622, 0.0
        %v659 = vmax.f32 %v624, 0.0
        %v660 = vmax.f32 %v628, 0.0
        %v661 = vmax.f32 %v630, 0.0
        %v662 = vmax.f32 %v632, 0.0
        %v663 = vmax.f32 %v634, 0.0
        %v664 = vmax.f32 %v638, 0.0
        %v665 = vmax.f32 %v640, 0.0
        %v666 = vmax.f32 %v642, 0.0
        %v667 = vmax.f32 %v644, 0.0
        %v668 = vmax.f32 %v648, 0.0
        %v669 = vmax.f32 %v650, 0.0
        %v670 = vmax.f32 %v652, 0.0
        %v671 = vmax.f32 %v654, 0.0
        %v672 = vpack.c.bf16 %v658, %v656
        %v673 = vpack.c.bf16 %v662, %v660
        %v674 = vpack.c.bf16 %v666, %v664
        %v675 = vpack.c.bf16 %v670, %v668
        %v676 = vpack.c.bf16 %v659, %v657
        %v677 = vpack.c.bf16 %v663, %v661
        %v678 = vpack.c.bf16 %v667, %v665
        %v679 = vpack.c.bf16 %v671, %v669
        %v680 = vrot.slane %v657, 5
        %v681 = vrot.slane %v659, 5
        %v682 = vrot.slane %v661, 5
        %v683 = vrot.slane %v663, 5
        %v684 = vrot.slane %v665, 5
        %v685 = vrot.slane %v667, 5
        %v686 = vrot.slane %v669, 5
        %v687 = vrot.slane %v671, 5
        %v688 = vlaneseq
        %v689 = vshrl.u32 %v688, 7
        %vm690 = vcmp.lt.s32.totalorder %v689, 3
        %v691 = vsel %vm690, %v686, %v687
        %v692 = vsel %vm690, %v685, %v686
        %v693 = vsel %vm690, %v684, %v685
        %v694 = vsel %vm690, %v683, %v684
        %v695 = vsel %vm690, %v682, %v683
        %v696 = vsel %vm690, %v681, %v682
        %v697 = vsel %vm690, %v680, %v681
        %v698 = vsel %vm690, %v687, %v680
        %v699 = vadd.s32 %v447, 4294967293
        %v700 = vadd.s32 %v448, 4294967293
        %v701 = vadd.s32 %v449, 4294967293
        %v702 = vadd.s32 %v450, 4294967293
        %v703 = vadd.s32 %v451, 4294967293
        %v704 = vadd.s32 %v452, 4294967293
        %v705 = vadd.s32 %v453, 4294967293
        %v706 = vadd.s32 %v454, 4294967293
        %vm707 = vcmp.ge.s32.totalorder %v699, 0
        %vm708 = vcmp.ge.s32.totalorder %v700, 0
        %vm709 = vcmp.ge.s32.totalorder %v701, 0
        %vm710 = vcmp.ge.s32.totalorder %v702, 0
        %vm711 = vcmp.ge.s32.totalorder %v703, 0
        %vm712 = vcmp.ge.s32.totalorder %v704, 0
        %vm713 = vcmp.ge.s32.totalorder %v705, 0
        %vm714 = vcmp.ge.s32.totalorder %v706, 0
        %v715 = vsel %vm707, 1, 0
        %v716 = vsel %vm708, 1, 0
        %v717 = vsel %vm709, 1, 0
        %v718 = vsel %vm710, 1, 0
        %v719 = vsel %vm711, 1, 0
        %v720 = vsel %vm712, 1, 0
        %v721 = vsel %vm713, 1, 0
        %v722 = vsel %vm714, 1, 0
        %723 = vset.pattern.permute.xlu0 0
        %724 = vperm.xlu0 %723, %v715
        %v725 = vpop.permute.xlu0 %724
        %726 = vset.pattern.permute.xlu0 0
        %727 = vperm.xlu0 %726, %v716
        %v728 = vpop.permute.xlu0 %727
        %729 = vset.pattern.permute.xlu0 0
        %730 = vperm.xlu0 %729, %v717
        %v731 = vpop.permute.xlu0 %730
        %732 = vset.pattern.permute.xlu0 0
        %733 = vperm.xlu0 %732, %v718
        %v734 = vpop.permute.xlu0 %733
        %735 = vset.pattern.permute.xlu0 0
        %736 = vperm.xlu0 %735, %v719
        %v737 = vpop.permute.xlu0 %736
        %738 = vset.pattern.permute.xlu0 0
        %739 = vperm.xlu0 %738, %v720
        %v740 = vpop.permute.xlu0 %739
        %741 = vset.pattern.permute.xlu0 0
        %742 = vperm.xlu0 %741, %v721
        %v743 = vpop.permute.xlu0 %742
        %744 = vset.pattern.permute.xlu0 0
        %745 = vperm.xlu0 %744, %v722
        %v746 = vpop.permute.xlu0 %745
        %vm747 = vcmp.eq.s32.totalorder %v725, 1
        %vm748 = vcmp.eq.s32.totalorder %v728, 1
        %vm749 = vcmp.eq.s32.totalorder %v731, 1
        %vm750 = vcmp.eq.s32.totalorder %v734, 1
        %vm751 = vcmp.eq.s32.totalorder %v737, 1
        %vm752 = vcmp.eq.s32.totalorder %v740, 1
        %vm753 = vcmp.eq.s32.totalorder %v743, 1
        %vm754 = vcmp.eq.s32.totalorder %v746, 1
        %v755 = vsel %vm747, %v698, 0.0
        %v756 = vsel %vm748, %v697, 0.0
        %v757 = vsel %vm749, %v696, 0.0
        %v758 = vsel %vm750, %v695, 0.0
        %v759 = vsel %vm751, %v694, 0.0
        %v760 = vsel %vm752, %v693, 0.0
        %v761 = vsel %vm753, %v692, 0.0
        %v762 = vsel %vm754, %v691, 0.0
        %v763 = vpack.c.bf16 %v756, %v755
        %v764 = vpack.c.bf16 %v758, %v757
        %v765 = vpack.c.bf16 %v760, %v759
        %v766 = vpack.c.bf16 %v762, %v761
        %v767 = vrot.slane %v657, 6
        %v768 = vrot.slane %v659, 6
        %v769 = vrot.slane %v661, 6
        %v770 = vrot.slane %v663, 6
        %v771 = vrot.slane %v665, 6
        %v772 = vrot.slane %v667, 6
        %v773 = vrot.slane %v669, 6
        %v774 = vrot.slane %v671, 6
        %vm775 = vcmp.lt.s32.totalorder %v689, 2
        %v776 = vsel %vm775, %v773, %v774
        %v777 = vsel %vm775, %v772, %v773
        %v778 = vsel %vm775, %v771, %v772
        %v779 = vsel %vm775, %v770, %v771
        %v780 = vsel %vm775, %v769, %v770
        %v781 = vsel %vm775, %v768, %v769
        %v782 = vsel %vm775, %v767, %v768
        %v783 = vsel %vm775, %v774, %v767
        %v784 = vadd.s32 %v447, 4294967294
        %v785 = vadd.s32 %v448, 4294967294
        %v786 = vadd.s32 %v449, 4294967294
        %v787 = vadd.s32 %v450, 4294967294
        %v788 = vadd.s32 %v451, 4294967294
        %v789 = vadd.s32 %v452, 4294967294
        %v790 = vadd.s32 %v453, 4294967294
        %v791 = vadd.s32 %v454, 4294967294
        %vm792 = vcmp.ge.s32.totalorder %v784, 0
        %vm793 = vcmp.ge.s32.totalorder %v785, 0
        %vm794 = vcmp.ge.s32.totalorder %v786, 0
        %vm795 = vcmp.ge.s32.totalorder %v787, 0
        %vm796 = vcmp.ge.s32.totalorder %v788, 0
        %vm797 = vcmp.ge.s32.totalorder %v789, 0
        %vm798 = vcmp.ge.s32.totalorder %v790, 0
        %vm799 = vcmp.ge.s32.totalorder %v791, 0
        %v800 = vsel %vm792, 1, 0
        %v801 = vsel %vm793, 1, 0
        %v802 = vsel %vm794, 1, 0
        %v803 = vsel %vm795, 1, 0
        %v804 = vsel %vm796, 1, 0
        %v805 = vsel %vm797, 1, 0
        %v806 = vsel %vm798, 1, 0
        %v807 = vsel %vm799, 1, 0
        %808 = vset.pattern.permute.xlu0 0
        %809 = vperm.xlu0 %808, %v800
        %v810 = vpop.permute.xlu0 %809
        %811 = vset.pattern.permute.xlu0 0
        %812 = vperm.xlu0 %811, %v801
        %v813 = vpop.permute.xlu0 %812
        %814 = vset.pattern.permute.xlu0 0
        %815 = vperm.xlu0 %814, %v802
        %v816 = vpop.permute.xlu0 %815
        %817 = vset.pattern.permute.xlu0 0
        %818 = vperm.xlu0 %817, %v803
        %v819 = vpop.permute.xlu0 %818
        %820 = vset.pattern.permute.xlu0 0
        %821 = vperm.xlu0 %820, %v804
        %v822 = vpop.permute.xlu0 %821
        %823 = vset.pattern.permute.xlu0 0
        %824 = vperm.xlu0 %823, %v805
        %v825 = vpop.permute.xlu0 %824
        %826 = vset.pattern.permute.xlu0 0
        %827 = vperm.xlu0 %826, %v806
        %v828 = vpop.permute.xlu0 %827
        %829 = vset.pattern.permute.xlu0 0
        %830 = vperm.xlu0 %829, %v807
        %v831 = vpop.permute.xlu0 %830
        %vm832 = vcmp.eq.s32.totalorder %v810, 1
        %vm833 = vcmp.eq.s32.totalorder %v813, 1
        %vm834 = vcmp.eq.s32.totalorder %v816, 1
        %vm835 = vcmp.eq.s32.totalorder %v819, 1
        %vm836 = vcmp.eq.s32.totalorder %v822, 1
        %vm837 = vcmp.eq.s32.totalorder %v825, 1
        %vm838 = vcmp.eq.s32.totalorder %v828, 1
        %vm839 = vcmp.eq.s32.totalorder %v831, 1
        %v840 = vsel %vm832, %v783, 0.0
        %v841 = vsel %vm833, %v782, 0.0
        %v842 = vsel %vm834, %v781, 0.0
        %v843 = vsel %vm835, %v780, 0.0
        %v844 = vsel %vm836, %v779, 0.0
        %v845 = vsel %vm837, %v778, 0.0
        %v846 = vsel %vm838, %v777, 0.0
        %v847 = vsel %vm839, %v776, 0.0
        %v848 = vpack.c.bf16 %v841, %v840
        %v849 = vpack.c.bf16 %v843, %v842
        %v850 = vpack.c.bf16 %v845, %v844
        %v851 = vpack.c.bf16 %v847, %v846
        %v852 = vld [vmem:[#allocation7] sm:$0xf]
        %v853 = vld [vmem:[#allocation7 + $0x4] sm:$0xf]
        %v854 = vld [vmem:[#allocation7 + $0x8] sm:$0xf]
        %v855 = vld [vmem:[#allocation7 + $0xc] sm:$0xf]
        %v856 = vld [vmem:[#allocation7 + $0x10] sm:$0xf]
        %v857 = vld [vmem:[#allocation7 + $0x14] sm:$0xf]
        %v858 = vld [vmem:[#allocation7 + $0x18] sm:$0xf]
        %v859 = vld [vmem:[#allocation7 + $0x1c] sm:$0xf]
        %v860 = vld [vmem:[#allocation7 + $0x20] sm:$0xf]
        %v861 = vld [vmem:[#allocation7 + $0x24] sm:$0xf]
        %v862 = vld [vmem:[#allocation7 + $0x28] sm:$0xf]
        %v863 = vld [vmem:[#allocation7 + $0x2c] sm:$0xf]
        %v864 = vld [vmem:[#allocation7 + $0x30] sm:$0xf]
        %v865 = vld [vmem:[#allocation7 + $0x34] sm:$0xf]
        %v866 = vld [vmem:[#allocation7 + $0x38] sm:$0xf]
        %v867 = vld [vmem:[#allocation7 + $0x3c] sm:$0xf]
        %v868 = vld [vmem:[#allocation7 + $0x40] sm:$0xf]
        %v869 = vld [vmem:[#allocation7 + $0x44] sm:$0xf]
        %v870 = vld [vmem:[#allocation7 + $0x48] sm:$0xf]
        %v871 = vld [vmem:[#allocation7 + $0x4c] sm:$0xf]
        %v872 = vld [vmem:[#allocation7 + $0x50] sm:$0xf]
        %v873 = vld [vmem:[#allocation7 + $0x54] sm:$0xf]
        %v874 = vld [vmem:[#allocation7 + $0x58] sm:$0xf]
        %v875 = vld [vmem:[#allocation7 + $0x5c] sm:$0xf]
        %v876 = vld [vmem:[#allocation7 + $0x60] sm:$0xf]
        %v877 = vld [vmem:[#allocation7 + $0x64] sm:$0xf]
        %v878 = vld [vmem:[#allocation7 + $0x68] sm:$0xf]
        %v879 = vld [vmem:[#allocation7 + $0x6c] sm:$0xf]
        %v880 = vld [vmem:[#allocation7 + $0x70] sm:$0xf]
        %v881 = vld [vmem:[#allocation7 + $0x74] sm:$0xf]
        %v882 = vld [vmem:[#allocation7 + $0x78] sm:$0xf]
        %v883 = vld [vmem:[#allocation7 + $0x7c] sm:$0xf]
        %v884 = vrot.slane %v657, 7
        %v885 = vrot.slane %v659, 7
        %v886 = vrot.slane %v661, 7
        %v887 = vrot.slane %v663, 7
        %v888 = vrot.slane %v665, 7
        %v889 = vrot.slane %v667, 7
        %v890 = vrot.slane %v669, 7
        %v891 = vrot.slane %v671, 7
        %vm892 = vcmp.lt.s32.totalorder %v689, 1
        %v893 = vsel %vm892, %v890, %v891
        %v894 = vsel %vm892, %v889, %v890
        %v895 = vsel %vm892, %v888, %v889
        %v896 = vsel %vm892, %v887, %v888
        %v897 = vsel %vm892, %v886, %v887
        %v898 = vsel %vm892, %v885, %v886
        %v899 = vsel %vm892, %v884, %v885
        %v900 = vsel %vm892, %v891, %v884
        %v901 = vadd.s32 %v447, 4294967295
        %v902 = vadd.s32 %v448, 4294967295
        %v903 = vadd.s32 %v449, 4294967295
        %v904 = vadd.s32 %v450, 4294967295
        %v905 = vadd.s32 %v451, 4294967295
        %v906 = vadd.s32 %v452, 4294967295
        %v907 = vadd.s32 %v453, 4294967295
        %v908 = vadd.s32 %v454, 4294967295
        %vm909 = vcmp.ge.s32.totalorder %v901, 0
        %vm910 = vcmp.ge.s32.totalorder %v902, 0
        %vm911 = vcmp.ge.s32.totalorder %v903, 0
        %vm912 = vcmp.ge.s32.totalorder %v904, 0
        %vm913 = vcmp.ge.s32.totalorder %v905, 0
        %vm914 = vcmp.ge.s32.totalorder %v906, 0
        %vm915 = vcmp.ge.s32.totalorder %v907, 0
        %vm916 = vcmp.ge.s32.totalorder %v908, 0
        %v917 = vsel %vm909, 1, 0
        %v918 = vsel %vm910, 1, 0
        %v919 = vsel %vm911, 1, 0
        %v920 = vsel %vm912, 1, 0
        %v921 = vsel %vm913, 1, 0
        %v922 = vsel %vm914, 1, 0
        %v923 = vsel %vm915, 1, 0
        %v924 = vsel %vm916, 1, 0
        %925 = vset.pattern.permute.xlu0 0
        %926 = vperm.xlu0 %925, %v917
        %v927 = vpop.permute.xlu0 %926
        %928 = vset.pattern.permute.xlu0 0
        %929 = vperm.xlu0 %928, %v918
        %v930 = vpop.permute.xlu0 %929
        %931 = vset.pattern.permute.xlu0 0
        %932 = vperm.xlu0 %931, %v919
        %v933 = vpop.permute.xlu0 %932
        %934 = vset.pattern.permute.xlu0 0
        %935 = vperm.xlu0 %934, %v920
        %v936 = vpop.permute.xlu0 %935
        %937 = vset.pattern.permute.xlu0 0
        %938 = vperm.xlu0 %937, %v921
        %v939 = vpop.permute.xlu0 %938
        %940 = vset.pattern.permute.xlu0 0
        %941 = vperm.xlu0 %940, %v922
        %v942 = vpop.permute.xlu0 %941
        %943 = vset.pattern.permute.xlu0 0
        %944 = vperm.xlu0 %943, %v923
        %v945 = vpop.permute.xlu0 %944
        %946 = vset.pattern.permute.xlu0 0
        %947 = vperm.xlu0 %946, %v924
        %v948 = vpop.permute.xlu0 %947
        %vm949 = vcmp.eq.s32.totalorder %v927, 1
        %vm950 = vcmp.eq.s32.totalorder %v930, 1
        %vm951 = vcmp.eq.s32.totalorder %v933, 1
        %vm952 = vcmp.eq.s32.totalorder %v936, 1
        %vm953 = vcmp.eq.s32.totalorder %v939, 1
        %vm954 = vcmp.eq.s32.totalorder %v942, 1
        %vm955 = vcmp.eq.s32.totalorder %v945, 1
        %vm956 = vcmp.eq.s32.totalorder %v948, 1
        %v957 = vsel %vm949, %v900, 0.0
        %v958 = vsel %vm950, %v899, 0.0
        %v959 = vsel %vm951, %v898, 0.0
        %v960 = vsel %vm952, %v897, 0.0
        %v961 = vsel %vm953, %v896, 0.0
        %v962 = vsel %vm954, %v895, 0.0
        %v963 = vsel %vm955, %v894, 0.0
        %v964 = vsel %vm956, %v893, 0.0
        %v965 = vpack.c.bf16 %v958, %v957
        %v966 = vpack.c.bf16 %v960, %v959
        %v967 = vpack.c.bf16 %v962, %v961
        %v968 = vpack.c.bf16 %v964, %v963
        %s969 = scalar_lea.vmem [#allocation7], 128
        %v970 = vld [vmem:[%s969] sm:$0xf]
        %v971 = vld [vmem:[%s969 + $0x4] sm:$0xf]
        %v972 = vld [vmem:[%s969 + $0x8] sm:$0xf]
        %v973 = vld [vmem:[%s969 + $0xc] sm:$0xf]
        %v974 = vld [vmem:[%s969 + $0x10] sm:$0xf]
        %v975 = vld [vmem:[%s969 + $0x14] sm:$0xf]
        %v976 = vld [vmem:[%s969 + $0x18] sm:$0xf]
        %v977 = vld [vmem:[%s969 + $0x1c] sm:$0xf]
        %v978 = vld [vmem:[%s969 + $0x20] sm:$0xf]
        %v979 = vld [vmem:[%s969 + $0x24] sm:$0xf]
        %v980 = vld [vmem:[%s969 + $0x28] sm:$0xf]
        %v981 = vld [vmem:[%s969 + $0x2c] sm:$0xf]
        %v982 = vld [vmem:[%s969 + $0x30] sm:$0xf]
        %v983 = vld [vmem:[%s969 + $0x34] sm:$0xf]
        %v984 = vld [vmem:[%s969 + $0x38] sm:$0xf]
        %v985 = vld [vmem:[%s969 + $0x3c] sm:$0xf]
        %v986 = vld [vmem:[%s969 + $0x40] sm:$0xf]
        %v987 = vld [vmem:[%s969 + $0x44] sm:$0xf]
        %v988 = vld [vmem:[%s969 + $0x48] sm:$0xf]
        %v989 = vld [vmem:[%s969 + $0x4c] sm:$0xf]
        %v990 = vld [vmem:[%s969 + $0x50] sm:$0xf]
        %v991 = vld [vmem:[%s969 + $0x54] sm:$0xf]
        %v992 = vld [vmem:[%s969 + $0x58] sm:$0xf]
        %v993 = vld [vmem:[%s969 + $0x5c] sm:$0xf]
        %v994 = vld [vmem:[%s969 + $0x60] sm:$0xf]
        %v995 = vld [vmem:[%s969 + $0x64] sm:$0xf]
        %v996 = vld [vmem:[%s969 + $0x68] sm:$0xf]
        %v997 = vld [vmem:[%s969 + $0x6c] sm:$0xf]
        %v998 = vld [vmem:[%s969 + $0x70] sm:$0xf]
        %v999 = vld [vmem:[%s969 + $0x74] sm:$0xf]
        %v1000 = vld [vmem:[%s969 + $0x78] sm:$0xf]
        %v1001 = vld [vmem:[%s969 + $0x7c] sm:$0xf]
        %v1034 = vunpack.c.l.b16 %v970
        %v1035 = vunpack.c.l.b16 %v971
        %v1036 = vunpack.c.l.b16 %v972
        %v1037 = vunpack.c.l.b16 %v973
        %v1038 = vunpack.c.l.b16 %v974
        %v1039 = vunpack.c.l.b16 %v975
        %v1040 = vunpack.c.l.b16 %v976
        %v1041 = vunpack.c.l.b16 %v977
        %v1042 = vunpack.c.l.b16 %v978
        %v1043 = vunpack.c.l.b16 %v979
        %v1044 = vunpack.c.l.b16 %v980
        %v1045 = vunpack.c.l.b16 %v981
        %v1046 = vunpack.c.l.b16 %v982
        %v1047 = vunpack.c.l.b16 %v983
        %v1048 = vunpack.c.l.b16 %v984
        %v1049 = vunpack.c.l.b16 %v985
        %v1050 = vunpack.c.l.b16 %v986
        %v1051 = vunpack.c.l.b16 %v987
        %v1052 = vunpack.c.l.b16 %v988
        %v1053 = vunpack.c.l.b16 %v989
        %v1054 = vunpack.c.l.b16 %v990
        %v1055 = vunpack.c.l.b16 %v991
        %v1056 = vunpack.c.l.b16 %v992
        %v1057 = vunpack.c.l.b16 %v993
        %v1058 = vunpack.c.l.b16 %v994
        %v1059 = vunpack.c.l.b16 %v995
        %v1060 = vunpack.c.l.b16 %v996
        %v1061 = vunpack.c.l.b16 %v997
        %v1062 = vunpack.c.l.b16 %v998
        %v1063 = vunpack.c.l.b16 %v999
        %v1064 = vunpack.c.l.b16 %v1000
        %v1065 = vunpack.c.l.b16 %v1001
        %v1066 = vpack.c.b16 %v1035, %v1034
        %v1067 = vpack.c.b16 %v1037, %v1036
        %v1068 = vpack.c.b16 %v1039, %v1038
        %v1069 = vpack.c.b16 %v1041, %v1040
        %v1070 = vpack.c.b16 %v1043, %v1042
        %v1071 = vpack.c.b16 %v1045, %v1044
        %v1072 = vpack.c.b16 %v1047, %v1046
        %v1073 = vpack.c.b16 %v1049, %v1048
        %v1074 = vpack.c.b16 %v1051, %v1050
        %v1075 = vpack.c.b16 %v1053, %v1052
        %v1076 = vpack.c.b16 %v1055, %v1054
        %v1077 = vpack.c.b16 %v1057, %v1056
        %v1078 = vpack.c.b16 %v1059, %v1058
        %v1079 = vpack.c.b16 %v1061, %v1060
        %v1080 = vpack.c.b16 %v1063, %v1062
        %v1081 = vpack.c.b16 %v1065, %v1064
        %1098 = vmatprep.subr.bf16.mxu0 0
        %1099 = vmatpush1.bf16.msra.mxu0 %v1066
        %1100 = vmatprep.subr.bf16.mxu0 0
        %1101 = vmatpush1.bf16.msra.mxu0 %v1067
        %1102 = vmatprep.subr.bf16.mxu0 0
        %1103 = vmatpush1.bf16.msra.mxu0 %v1068
        %1104 = vmatprep.subr.bf16.mxu0 0
        %1105 = vmatpush1.bf16.msra.mxu0 %v1069
        %1106 = vmatprep.subr.bf16.mxu0 0
        %1107 = vmatpush1.bf16.msra.mxu0 %v1070
        %1108 = vmatprep.subr.bf16.mxu0 0
        %1109 = vmatpush1.bf16.msra.mxu0 %v1071
        %1110 = vmatprep.subr.bf16.mxu0 0
        %1111 = vmatpush1.bf16.msra.mxu0 %v1072
        %1112 = vmatprep.subr.bf16.mxu0 0
        %1113 = vmatpush1.bf16.msra.mxu0 %v1073
        %1114 = vmatprep.subr.bf16.mxu0 0
        %1115 = vmatpush1.bf16.msra.mxu0 %v1074
        %1116 = vmatprep.subr.bf16.mxu0 0
        %1117 = vmatpush1.bf16.msra.mxu0 %v1075
        %1118 = vmatprep.subr.bf16.mxu0 0
        %1119 = vmatpush1.bf16.msra.mxu0 %v1076
        %1120 = vmatprep.subr.bf16.mxu0 0
        %1121 = vmatpush1.bf16.msra.mxu0 %v1077
        %1122 = vmatprep.subr.bf16.mxu0 0
        %1123 = vmatpush1.bf16.msra.mxu0 %v1078
        %1124 = vmatprep.subr.bf16.mxu0 0
        %1125 = vmatpush1.bf16.msra.mxu0 %v1079
        %1126 = vmatprep.subr.bf16.mxu0 0
        %1127 = vmatpush1.bf16.msra.mxu0 %v1080
        %1128 = vmatprep.subr.bf16.mxu0 0
        %1129 = vmatpush1.bf16.msra.mxu0 %v1081
        %1130 = vmatprep.mubr.bf16.mxu0 %v676
        %1131 = vmatmul.mubr.bf16.gmra.mrb[0].mxu0 %v965
        %v1132 = vpop.f32.mrb[0].mxu0
        %v1133 = vadd.f32 0.0, %v1132
        %v1134 = vpop.f32.mrb[0].mxu0
        %v1135 = vpop.f32.mrb[0].mxu0
        %v1136 = vadd.f32 0.0, %v1135
        %v1137 = vpop.f32.mrb[0].mxu0
        %1138 = vmatprep.mubr.bf16.mxu0 %v677
        %1139 = vmatmul.mubr.bf16.gmra.mrb[0].mxu0 %v966
        %v1140 = vpop.f32.mrb[0].mxu0
        %v1141 = vadd.f32 0.0, %v1140
        %v1142 = vpop.f32.mrb[0].mxu0
        %v1143 = vpop.f32.mrb[0].mxu0
        %v1144 = vadd.f32 0.0, %v1143
        %v1145 = vpop.f32.mrb[0].mxu0
        %1146 = vmatprep.mubr.bf16.mxu0 %v678
        %1147 = vmatmul.mubr.bf16.gmra.mrb[0].mxu0 %v967
        %v1148 = vpop.f32.mrb[0].mxu0
        %v1149 = vadd.f32 0.0, %v1148
        %v1150 = vpop.f32.mrb[0].mxu0
        %v1151 = vpop.f32.mrb[0].mxu0
        %v1152 = vadd.f32 0.0, %v1151
        %v1153 = vpop.f32.mrb[0].mxu0
        %1154 = vmatprep.mubr.bf16.mxu0 %v679
        %1155 = vmatmul.mubr.bf16.gmra.mrb[0].mxu0 %v968
        %v1156 = vpop.f32.mrb[0].mxu0
        %v1157 = vadd.f32 0.0, %v1156
        %v1158 = vpop.f32.mrb[0].mxu0
        %v1159 = vpop.f32.mrb[0].mxu0
        %v1160 = vadd.f32 0.0, %v1159
        %v1161 = vpop.f32.mrb[0].mxu0
        %1162 = vdwg.mxu0
        %v1195 = vunpack.c.l.b16 %v852
        %v1196 = vunpack.c.l.b16 %v853
        %v1197 = vunpack.c.l.b16 %v854
        %v1198 = vunpack.c.l.b16 %v855
        %v1199 = vunpack.c.l.b16 %v856
        %v1200 = vunpack.c.l.b16 %v857
        %v1201 = vunpack.c.l.b16 %v858
        %v1202 = vunpack.c.l.b16 %v859
        %v1203 = vunpack.c.l.b16 %v860
        %v1204 = vunpack.c.l.b16 %v861
        %v1205 = vunpack.c.l.b16 %v862
        %v1206 = vunpack.c.l.b16 %v863
        %v1207 = vunpack.c.l.b16 %v864
        %v1208 = vunpack.c.l.b16 %v865
        %v1209 = vunpack.c.l.b16 %v866
        %v1210 = vunpack.c.l.b16 %v867
        %v1211 = vunpack.c.l.b16 %v868
        %v1212 = vunpack.c.l.b16 %v869
        %v1213 = vunpack.c.l.b16 %v870
        %v1214 = vunpack.c.l.b16 %v871
        %v1215 = vunpack.c.l.b16 %v872
        %v1216 = vunpack.c.l.b16 %v873
        %v1217 = vunpack.c.l.b16 %v874
        %v1218 = vunpack.c.l.b16 %v875
        %v1219 = vunpack.c.l.b16 %v876
        %v1220 = vunpack.c.l.b16 %v877
        %v1221 = vunpack.c.l.b16 %v878
        %v1222 = vunpack.c.l.b16 %v879
        %v1223 = vunpack.c.l.b16 %v880
        %v1224 = vunpack.c.l.b16 %v881
        %v1225 = vunpack.c.l.b16 %v882
        %v1226 = vunpack.c.l.b16 %v883
        %v1227 = vpack.c.b16 %v1196, %v1195
        %v1228 = vpack.c.b16 %v1198, %v1197
        %v1229 = vpack.c.b16 %v1200, %v1199
        %v1230 = vpack.c.b16 %v1202, %v1201
        %v1231 = vpack.c.b16 %v1204, %v1203
        %v1232 = vpack.c.b16 %v1206, %v1205
        %v1233 = vpack.c.b16 %v1208, %v1207
        %v1234 = vpack.c.b16 %v1210, %v1209
        %v1235 = vpack.c.b16 %v1212, %v1211
        %v1236 = vpack.c.b16 %v1214, %v1213
        %v1237 = vpack.c.b16 %v1216, %v1215
        %v1238 = vpack.c.b16 %v1218, %v1217
        %v1239 = vpack.c.b16 %v1220, %v1219
        %v1240 = vpack.c.b16 %v1222, %v1221
        %v1241 = vpack.c.b16 %v1224, %v1223
        %v1242 = vpack.c.b16 %v1226, %v1225
        %1259 = vmatprep.subr.bf16.mxu0 0
        %1260 = vmatpush1.bf16.msra.mxu0 %v1227
        %1261 = vmatprep.subr.bf16.mxu0 0
        %1262 = vmatpush1.bf16.msra.mxu0 %v1228
        %1263 = vmatprep.subr.bf16.mxu0 0
        %1264 = vmatpush1.bf16.msra.mxu0 %v1229
        %1265 = vmatprep.subr.bf16.mxu0 0
        %1266 = vmatpush1.bf16.msra.mxu0 %v1230
        %1267 = vmatprep.subr.bf16.mxu0 0
        %1268 = vmatpush1.bf16.msra.mxu0 %v1231
        %1269 = vmatprep.subr.bf16.mxu0 0
        %1270 = vmatpush1.bf16.msra.mxu0 %v1232
        %1271 = vmatprep.subr.bf16.mxu0 0
        %1272 = vmatpush1.bf16.msra.mxu0 %v1233
        %1273 = vmatprep.subr.bf16.mxu0 0
        %1274 = vmatpush1.bf16.msra.mxu0 %v1234
        %1275 = vmatprep.subr.bf16.mxu0 0
        %1276 = vmatpush1.bf16.msra.mxu0 %v1235
        %1277 = vmatprep.subr.bf16.mxu0 0
        %1278 = vmatpush1.bf16.msra.mxu0 %v1236
        %1279 = vmatprep.subr.bf16.mxu0 0
        %1280 = vmatpush1.bf16.msra.mxu0 %v1237
        %1281 = vmatprep.subr.bf16.mxu0 0
        %1282 = vmatpush1.bf16.msra.mxu0 %v1238
        %1283 = vmatprep.subr.bf16.mxu0 0
        %1284 = vmatpush1.bf16.msra.mxu0 %v1239
        %1285 = vmatprep.subr.bf16.mxu0 0
        %1286 = vmatpush1.bf16.msra.mxu0 %v1240
        %1287 = vmatprep.subr.bf16.mxu0 0
        %1288 = vmatpush1.bf16.msra.mxu0 %v1241
        %1289 = vmatprep.subr.bf16.mxu0 0
        %1290 = vmatpush1.bf16.msra.mxu0 %v1242
        %1291 = vmatprep.mubr.bf16.mxu0 %v848
        %1292 = vmatmul.mubr.bf16.gmra.mrb[0].mxu0 %v763
        %v1293 = vpop.f32.mrb[0].mxu0
        %v1294 = vadd.f32 %v1133, %v1293
        %v1295 = vpop.f32.mrb[0].mxu0
        %v1296 = vpop.f32.mrb[0].mxu0
        %v1297 = vadd.f32 %v1136, %v1296
        %v1298 = vpop.f32.mrb[0].mxu0
        %1299 = vmatprep.mubr.bf16.mxu0 %v849
        %1300 = vmatmul.mubr.bf16.gmra.mrb[0].mxu0 %v764
        %v1301 = vpop.f32.mrb[0].mxu0
        %v1302 = vadd.f32 %v1141, %v1301
        %v1303 = vpop.f32.mrb[0].mxu0
        %v1304 = vpop.f32.mrb[0].mxu0
        %v1305 = vadd.f32 %v1144, %v1304
        %v1306 = vpop.f32.mrb[0].mxu0
        %1307 = vmatprep.mubr.bf16.mxu0 %v850
        %1308 = vmatmul.mubr.bf16.gmra.mrb[0].mxu0 %v765
        %v1309 = vpop.f32.mrb[0].mxu0
        %v1310 = vadd.f32 %v1149, %v1309
        %v1311 = vpop.f32.mrb[0].mxu0
        %v1312 = vpop.f32.mrb[0].mxu0
        %v1313 = vadd.f32 %v1152, %v1312
        %v1314 = vpop.f32.mrb[0].mxu0
        %1315 = vmatprep.mubr.bf16.mxu0 %v851
        %1316 = vmatmul.mubr.bf16.gmra.mrb[0].mxu0 %v766
        %v1317 = vpop.f32.mrb[0].mxu0
        %v1318 = vadd.f32 %v1157, %v1317
        %v1319 = vpop.f32.mrb[0].mxu0
        %v1320 = vpop.f32.mrb[0].mxu0
        %v1321 = vadd.f32 %v1160, %v1320
        %v1322 = vpop.f32.mrb[0].mxu0
        %1323 = vdwg.mxu0
        %v1324 = vrot.slane %v657, 1
        %v1325 = vrot.slane %v659, 1
        %v1326 = vrot.slane %v661, 1
        %v1327 = vrot.slane %v663, 1
        %v1328 = vrot.slane %v665, 1
        %v1329 = vrot.slane %v667, 1
        %v1330 = vrot.slane %v669, 1
        %v1331 = vrot.slane %v671, 1
        %vm1332 = vcmp.lt.s32.totalorder %v689, 7
        %v1333 = vsel %vm1332, %v1330, %v1331
        %v1334 = vsel %vm1332, %v1329, %v1330
        %v1335 = vsel %vm1332, %v1328, %v1329
        %v1336 = vsel %vm1332, %v1327, %v1328
        %v1337 = vsel %vm1332, %v1326, %v1327
        %v1338 = vsel %vm1332, %v1325, %v1326
        %v1339 = vsel %vm1332, %v1324, %v1325
        %v1340 = vsel %vm1332, %v1331, %v1324
        %v1341 = vadd.s32 %v447, 1
        %v1342 = vadd.s32 %v448, 1
        %v1343 = vadd.s32 %v449, 1
        %v1344 = vadd.s32 %v450, 1
        %v1345 = vadd.s32 %v451, 1
        %v1346 = vadd.s32 %v452, 1
        %v1347 = vadd.s32 %v453, 1
        %v1348 = vadd.s32 %v454, 1
        %vm1349 = vcmp.lt.s32.totalorder %v1341, 8
        %vm1350 = vcmp.lt.s32.totalorder %v1342, 8
        %vm1351 = vcmp.lt.s32.totalorder %v1343, 8
        %vm1352 = vcmp.lt.s32.totalorder %v1344, 8
        %vm1353 = vcmp.lt.s32.totalorder %v1345, 8
        %vm1354 = vcmp.lt.s32.totalorder %v1346, 8
        %vm1355 = vcmp.lt.s32.totalorder %v1347, 8
        %vm1356 = vcmp.lt.s32.totalorder %v1348, 8
        %v1357 = vsel %vm1349, 1, 0
        %v1358 = vsel %vm1350, 1, 0
        %v1359 = vsel %vm1351, 1, 0
        %v1360 = vsel %vm1352, 1, 0
        %v1361 = vsel %vm1353, 1, 0
        %v1362 = vsel %vm1354, 1, 0
        %v1363 = vsel %vm1355, 1, 0
        %v1364 = vsel %vm1356, 1, 0
        %1365 = vset.pattern.permute.xlu0 0
        %1366 = vperm.xlu0 %1365, %v1357
        %v1367 = vpop.permute.xlu0 %1366
        %1368 = vset.pattern.permute.xlu0 0
        %1369 = vperm.xlu0 %1368, %v1358
        %v1370 = vpop.permute.xlu0 %1369
        %1371 = vset.pattern.permute.xlu0 0
        %1372 = vperm.xlu0 %1371, %v1359
        %v1373 = vpop.permute.xlu0 %1372
        %1374 = vset.pattern.permute.xlu0 0
        %1375 = vperm.xlu0 %1374, %v1360
        %v1376 = vpop.permute.xlu0 %1375
        %1377 = vset.pattern.permute.xlu0 0
        %1378 = vperm.xlu0 %1377, %v1361
        %v1379 = vpop.permute.xlu0 %1378
        %1380 = vset.pattern.permute.xlu0 0
        %1381 = vperm.xlu0 %1380, %v1362
        %v1382 = vpop.permute.xlu0 %1381
        %1383 = vset.pattern.permute.xlu0 0
        %1384 = vperm.xlu0 %1383, %v1363
        %v1385 = vpop.permute.xlu0 %1384
        %1386 = vset.pattern.permute.xlu0 0
        %1387 = vperm.xlu0 %1386, %v1364
        %v1388 = vpop.permute.xlu0 %1387
        %vm1389 = vcmp.eq.s32.totalorder %v1367, 1
        %vm1390 = vcmp.eq.s32.totalorder %v1370, 1
        %vm1391 = vcmp.eq.s32.totalorder %v1373, 1
        %vm1392 = vcmp.eq.s32.totalorder %v1376, 1
        %vm1393 = vcmp.eq.s32.totalorder %v1379, 1
        %vm1394 = vcmp.eq.s32.totalorder %v1382, 1
        %vm1395 = vcmp.eq.s32.totalorder %v1385, 1
        %vm1396 = vcmp.eq.s32.totalorder %v1388, 1
        %v1397 = vsel %vm1389, %v1339, 0.0
        %v1398 = vsel %vm1390, %v1338, 0.0
        %v1399 = vsel %vm1391, %v1337, 0.0
        %v1400 = vsel %vm1392, %v1336, 0.0
        %v1401 = vsel %vm1393, %v1335, 0.0
        %v1402 = vsel %vm1394, %v1334, 0.0
        %v1403 = vsel %vm1395, %v1333, 0.0
        %v1404 = vsel %vm1396, %v1340, 0.0
        %v1405 = vpack.c.bf16 %v1398, %v1397
        %v1406 = vpack.c.bf16 %v1400, %v1399
        %v1407 = vpack.c.bf16 %v1402, %v1401
        %v1408 = vpack.c.bf16 %v1404, %v1403
        %v1409 = vrot.slane %v657, 2
        %v1410 = vrot.slane %v659, 2
        %v1411 = vrot.slane %v661, 2
        %v1412 = vrot.slane %v663, 2
        %v1413 = vrot.slane %v665, 2
        %v1414 = vrot.slane %v667, 2
        %v1415 = vrot.slane %v669, 2
        %v1416 = vrot.slane %v671, 2
        %vm1417 = vcmp.lt.s32.totalorder %v689, 6
        %v1418 = vsel %vm1417, %v1415, %v1416
        %v1419 = vsel %vm1417, %v1414, %v1415
        %v1420 = vsel %vm1417, %v1413, %v1414
        %v1421 = vsel %vm1417, %v1412, %v1413
        %v1422 = vsel %vm1417, %v1411, %v1412
        %v1423 = vsel %vm1417, %v1410, %v1411
        %v1424 = vsel %vm1417, %v1409, %v1410
        %v1425 = vsel %vm1417, %v1416, %v1409
        %v1426 = vadd.s32 %v447, 2
        %v1427 = vadd.s32 %v448, 2
        %v1428 = vadd.s32 %v449, 2
        %v1429 = vadd.s32 %v450, 2
        %v1430 = vadd.s32 %v451, 2
        %v1431 = vadd.s32 %v452, 2
        %v1432 = vadd.s32 %v453, 2
        %v1433 = vadd.s32 %v454, 2
        %vm1434 = vcmp.lt.s32.totalorder %v1426, 8
        %vm1435 = vcmp.lt.s32.totalorder %v1427, 8
        %vm1436 = vcmp.lt.s32.totalorder %v1428, 8
        %vm1437 = vcmp.lt.s32.totalorder %v1429, 8
        %vm1438 = vcmp.lt.s32.totalorder %v1430, 8
        %vm1439 = vcmp.lt.s32.totalorder %v1431, 8
        %vm1440 = vcmp.lt.s32.totalorder %v1432, 8
        %vm1441 = vcmp.lt.s32.totalorder %v1433, 8
        %v1442 = vsel %vm1434, 1, 0
        %v1443 = vsel %vm1435, 1, 0
        %v1444 = vsel %vm1436, 1, 0
        %v1445 = vsel %vm1437, 1, 0
        %v1446 = vsel %vm1438, 1, 0
        %v1447 = vsel %vm1439, 1, 0
        %v1448 = vsel %vm1440, 1, 0
        %v1449 = vsel %vm1441, 1, 0
        %1450 = vset.pattern.permute.xlu0 0
        %1451 = vperm.xlu0 %1450, %v1442
        %v1452 = vpop.permute.xlu0 %1451
        %1453 = vset.pattern.permute.xlu0 0
        %1454 = vperm.xlu0 %1453, %v1443
        %v1455 = vpop.permute.xlu0 %1454
        %1456 = vset.pattern.permute.xlu0 0
        %1457 = vperm.xlu0 %1456, %v1444
        %v1458 = vpop.permute.xlu0 %1457
        %1459 = vset.pattern.permute.xlu0 0
        %1460 = vperm.xlu0 %1459, %v1445
        %v1461 = vpop.permute.xlu0 %1460
        %1462 = vset.pattern.permute.xlu0 0
        %1463 = vperm.xlu0 %1462, %v1446
        %v1464 = vpop.permute.xlu0 %1463
        %1465 = vset.pattern.permute.xlu0 0
        %1466 = vperm.xlu0 %1465, %v1447
        %v1467 = vpop.permute.xlu0 %1466
        %1468 = vset.pattern.permute.xlu0 0
        %1469 = vperm.xlu0 %1468, %v1448
        %v1470 = vpop.permute.xlu0 %1469
        %1471 = vset.pattern.permute.xlu0 0
        %1472 = vperm.xlu0 %1471, %v1449
        %v1473 = vpop.permute.xlu0 %1472
        %vm1474 = vcmp.eq.s32.totalorder %v1452, 1
        %vm1475 = vcmp.eq.s32.totalorder %v1455, 1
        %vm1476 = vcmp.eq.s32.totalorder %v1458, 1
        %vm1477 = vcmp.eq.s32.totalorder %v1461, 1
        %vm1478 = vcmp.eq.s32.totalorder %v1464, 1
        %vm1479 = vcmp.eq.s32.totalorder %v1467, 1
        %vm1480 = vcmp.eq.s32.totalorder %v1470, 1
        %vm1481 = vcmp.eq.s32.totalorder %v1473, 1
        %v1482 = vsel %vm1474, %v1424, 0.0
        %v1483 = vsel %vm1475, %v1423, 0.0
        %v1484 = vsel %vm1476, %v1422, 0.0
        %v1485 = vsel %vm1477, %v1421, 0.0
        %v1486 = vsel %vm1478, %v1420, 0.0
        %v1487 = vsel %vm1479, %v1419, 0.0
        %v1488 = vsel %vm1480, %v1418, 0.0
        %v1489 = vsel %vm1481, %v1425, 0.0
        %v1490 = vpack.c.bf16 %v1483, %v1482
        %v1491 = vpack.c.bf16 %v1485, %v1484
        %v1492 = vpack.c.bf16 %v1487, %v1486
        %v1493 = vpack.c.bf16 %v1489, %v1488
        %s1494 = scalar_lea.vmem [#allocation7], 256
        %v1495 = vld [vmem:[%s1494] sm:$0xf]
        %v1496 = vld [vmem:[%s1494 + $0x4] sm:$0xf]
        %v1497 = vld [vmem:[%s1494 + $0x8] sm:$0xf]
        %v1498 = vld [vmem:[%s1494 + $0xc] sm:$0xf]
        %v1499 = vld [vmem:[%s1494 + $0x10] sm:$0xf]
        %v1500 = vld [vmem:[%s1494 + $0x14] sm:$0xf]
        %v1501 = vld [vmem:[%s1494 + $0x18] sm:$0xf]
        %v1502 = vld [vmem:[%s1494 + $0x1c] sm:$0xf]
        %v1503 = vld [vmem:[%s1494 + $0x20] sm:$0xf]
        %v1504 = vld [vmem:[%s1494 + $0x24] sm:$0xf]
        %v1505 = vld [vmem:[%s1494 + $0x28] sm:$0xf]
        %v1506 = vld [vmem:[%s1494 + $0x2c] sm:$0xf]
        %v1507 = vld [vmem:[%s1494 + $0x30] sm:$0xf]
        %v1508 = vld [vmem:[%s1494 + $0x34] sm:$0xf]
        %v1509 = vld [vmem:[%s1494 + $0x38] sm:$0xf]
        %v1510 = vld [vmem:[%s1494 + $0x3c] sm:$0xf]
        %v1511 = vld [vmem:[%s1494 + $0x40] sm:$0xf]
        %v1512 = vld [vmem:[%s1494 + $0x44] sm:$0xf]
        %v1513 = vld [vmem:[%s1494 + $0x48] sm:$0xf]
        %v1514 = vld [vmem:[%s1494 + $0x4c] sm:$0xf]
        %v1515 = vld [vmem:[%s1494 + $0x50] sm:$0xf]
        %v1516 = vld [vmem:[%s1494 + $0x54] sm:$0xf]
        %v1517 = vld [vmem:[%s1494 + $0x58] sm:$0xf]
        %v1518 = vld [vmem:[%s1494 + $0x5c] sm:$0xf]
        %v1519 = vld [vmem:[%s1494 + $0x60] sm:$0xf]
        %v1520 = vld [vmem:[%s1494 + $0x64] sm:$0xf]
        %v1521 = vld [vmem:[%s1494 + $0x68] sm:$0xf]
        %v1522 = vld [vmem:[%s1494 + $0x6c] sm:$0xf]
        %v1523 = vld [vmem:[%s1494 + $0x70] sm:$0xf]
        %v1524 = vld [vmem:[%s1494 + $0x74] sm:$0xf]
        %v1525 = vld [vmem:[%s1494 + $0x78] sm:$0xf]
        %v1526 = vld [vmem:[%s1494 + $0x7c] sm:$0xf]
        %v1559 = vunpack.c.l.b16 %v1495
        %v1560 = vunpack.c.l.b16 %v1496
        %v1561 = vunpack.c.l.b16 %v1497
        %v1562 = vunpack.c.l.b16 %v1498
        %v1563 = vunpack.c.l.b16 %v1499
        %v1564 = vunpack.c.l.b16 %v1500
        %v1565 = vunpack.c.l.b16 %v1501
        %v1566 = vunpack.c.l.b16 %v1502
        %v1567 = vunpack.c.l.b16 %v1503
        %v1568 = vunpack.c.l.b16 %v1504
        %v1569 = vunpack.c.l.b16 %v1505
        %v1570 = vunpack.c.l.b16 %v1506
        %v1571 = vunpack.c.l.b16 %v1507
        %v1572 = vunpack.c.l.b16 %v1508
        %v1573 = vunpack.c.l.b16 %v1509
        %v1574 = vunpack.c.l.b16 %v1510
        %v1575 = vunpack.c.l.b16 %v1511
        %v1576 = vunpack.c.l.b16 %v1512
        %v1577 = vunpack.c.l.b16 %v1513
        %v1578 = vunpack.c.l.b16 %v1514
        %v1579 = vunpack.c.l.b16 %v1515
        %v1580 = vunpack.c.l.b16 %v1516
        %v1581 = vunpack.c.l.b16 %v1517
        %v1582 = vunpack.c.l.b16 %v1518
        %v1583 = vunpack.c.l.b16 %v1519
        %v1584 = vunpack.c.l.b16 %v1520
        %v1585 = vunpack.c.l.b16 %v1521
        %v1586 = vunpack.c.l.b16 %v1522
        %v1587 = vunpack.c.l.b16 %v1523
        %v1588 = vunpack.c.l.b16 %v1524
        %v1589 = vunpack.c.l.b16 %v1525
        %v1590 = vunpack.c.l.b16 %v1526
        %v1591 = vpack.c.b16 %v1560, %v1559
        %v1592 = vpack.c.b16 %v1562, %v1561
        %v1593 = vpack.c.b16 %v1564, %v1563
        %v1594 = vpack.c.b16 %v1566, %v1565
        %v1595 = vpack.c.b16 %v1568, %v1567
        %v1596 = vpack.c.b16 %v1570, %v1569
        %v1597 = vpack.c.b16 %v1572, %v1571
        %v1598 = vpack.c.b16 %v1574, %v1573
        %v1599 = vpack.c.b16 %v1576, %v1575
        %v1600 = vpack.c.b16 %v1578, %v1577
        %v1601 = vpack.c.b16 %v1580, %v1579
        %v1602 = vpack.c.b16 %v1582, %v1581
        %v1603 = vpack.c.b16 %v1584, %v1583
        %v1604 = vpack.c.b16 %v1586, %v1585
        %v1605 = vpack.c.b16 %v1588, %v1587
        %v1606 = vpack.c.b16 %v1590, %v1589
        %1623 = vmatprep.subr.bf16.mxu0 0
        %1624 = vmatpush1.bf16.msra.mxu0 %v1591
        %1625 = vmatprep.subr.bf16.mxu0 0
        %1626 = vmatpush1.bf16.msra.mxu0 %v1592
        %1627 = vmatprep.subr.bf16.mxu0 0
        %1628 = vmatpush1.bf16.msra.mxu0 %v1593
        %1629 = vmatprep.subr.bf16.mxu0 0
        %1630 = vmatpush1.bf16.msra.mxu0 %v1594
        %1631 = vmatprep.subr.bf16.mxu0 0
        %1632 = vmatpush1.bf16.msra.mxu0 %v1595
        %1633 = vmatprep.subr.bf16.mxu0 0
        %1634 = vmatpush1.bf16.msra.mxu0 %v1596
        %1635 = vmatprep.subr.bf16.mxu0 0
        %1636 = vmatpush1.bf16.msra.mxu0 %v1597
        %1637 = vmatprep.subr.bf16.mxu0 0
        %1638 = vmatpush1.bf16.msra.mxu0 %v1598
        %1639 = vmatprep.subr.bf16.mxu0 0
        %1640 = vmatpush1.bf16.msra.mxu0 %v1599
        %1641 = vmatprep.subr.bf16.mxu0 0
        %1642 = vmatpush1.bf16.msra.mxu0 %v1600
        %1643 = vmatprep.subr.bf16.mxu0 0
        %1644 = vmatpush1.bf16.msra.mxu0 %v1601
        %1645 = vmatprep.subr.bf16.mxu0 0
        %1646 = vmatpush1.bf16.msra.mxu0 %v1602
        %1647 = vmatprep.subr.bf16.mxu0 0
        %1648 = vmatpush1.bf16.msra.mxu0 %v1603
        %1649 = vmatprep.subr.bf16.mxu0 0
        %1650 = vmatpush1.bf16.msra.mxu0 %v1604
        %1651 = vmatprep.subr.bf16.mxu0 0
        %1652 = vmatpush1.bf16.msra.mxu0 %v1605
        %1653 = vmatprep.subr.bf16.mxu0 0
        %1654 = vmatpush1.bf16.msra.mxu0 %v1606
        %1655 = vmatprep.mubr.bf16.mxu0 %v1490
        %1656 = vmatmul.mubr.bf16.gmra.mrb[0].mxu0 %v1405
        %v1657 = vpop.f32.mrb[0].mxu0
        %v1658 = vadd.f32 0.0, %v1657
        %v1659 = vpop.f32.mrb[0].mxu0
        %v1660 = vpop.f32.mrb[0].mxu0
        %v1661 = vadd.f32 0.0, %v1660
        %v1662 = vpop.f32.mrb[0].mxu0
        %1663 = vmatprep.mubr.bf16.mxu0 %v1491
        %1664 = vmatmul.mubr.bf16.gmra.mrb[0].mxu0 %v1406
        %v1665 = vpop.f32.mrb[0].mxu0
        %v1666 = vadd.f32 0.0, %v1665
        %v1667 = vpop.f32.mrb[0].mxu0
        %v1668 = vpop.f32.mrb[0].mxu0
        %v1669 = vadd.f32 0.0, %v1668
        %v1670 = vpop.f32.mrb[0].mxu0
        %1671 = vmatprep.mubr.bf16.mxu0 %v1492
        %1672 = vmatmul.mubr.bf16.gmra.mrb[0].mxu0 %v1407
        %v1673 = vpop.f32.mrb[0].mxu0
        %v1674 = vadd.f32 0.0, %v1673
        %v1675 = vpop.f32.mrb[0].mxu0
        %v1676 = vpop.f32.mrb[0].mxu0
        %v1677 = vadd.f32 0.0, %v1676
        %v1678 = vpop.f32.mrb[0].mxu0
        %1679 = vmatprep.mubr.bf16.mxu0 %v1493
        %1680 = vmatmul.mubr.bf16.gmra.mrb[0].mxu0 %v1408
        %v1681 = vpop.f32.mrb[0].mxu0
        %v1682 = vadd.f32 0.0, %v1681
        %v1683 = vpop.f32.mrb[0].mxu0
        %v1684 = vpop.f32.mrb[0].mxu0
        %v1685 = vadd.f32 0.0, %v1684
        %v1686 = vpop.f32.mrb[0].mxu0
        %1687 = vdwg.mxu0
        %v1688 = vadd.f32 %v1294, %v1658
        %v1689 = vadd.f32 %v1297, %v1661
        %v1690 = vadd.f32 %v1302, %v1666
        %v1691 = vadd.f32 %v1305, %v1669
        %v1692 = vadd.f32 %v1310, %v1674
        %v1693 = vadd.f32 %v1313, %v1677
        %v1694 = vadd.f32 %v1318, %v1682
        %v1695 = vadd.f32 %v1321, %v1685
        %v1696 = vrot.slane %v657, 3
        %v1697 = vrot.slane %v659, 3
        %v1698 = vrot.slane %v661, 3
        %v1699 = vrot.slane %v663, 3
        %v1700 = vrot.slane %v665, 3
        %v1701 = vrot.slane %v667, 3
        %v1702 = vrot.slane %v669, 3
        %v1703 = vrot.slane %v671, 3
        %vm1704 = vcmp.lt.s32.totalorder %v689, 5
        %v1705 = vsel %vm1704, %v1702, %v1703
        %v1706 = vsel %vm1704, %v1701, %v1702
        %v1707 = vsel %vm1704, %v1700, %v1701
        %v1708 = vsel %vm1704, %v1699, %v1700
        %v1709 = vsel %vm1704, %v1698, %v1699
        %v1710 = vsel %vm1704, %v1697, %v1698
        %v1711 = vsel %vm1704, %v1696, %v1697
        %v1712 = vsel %vm1704, %v1703, %v1696
        %v1713 = vadd.s32 %v447, 3
        %v1714 = vadd.s32 %v448, 3
        %v1715 = vadd.s32 %v449, 3
        %v1716 = vadd.s32 %v450, 3
        %v1717 = vadd.s32 %v451, 3
        %v1718 = vadd.s32 %v452, 3
        %v1719 = vadd.s32 %v453, 3
        %v1720 = vadd.s32 %v454, 3
        %vm1721 = vcmp.lt.s32.totalorder %v1713, 8
        %vm1722 = vcmp.lt.s32.totalorder %v1714, 8
        %vm1723 = vcmp.lt.s32.totalorder %v1715, 8
        %vm1724 = vcmp.lt.s32.totalorder %v1716, 8
        %vm1725 = vcmp.lt.s32.totalorder %v1717, 8
        %vm1726 = vcmp.lt.s32.totalorder %v1718, 8
        %vm1727 = vcmp.lt.s32.totalorder %v1719, 8
        %vm1728 = vcmp.lt.s32.totalorder %v1720, 8
        %v1729 = vsel %vm1721, 1, 0
        %v1730 = vsel %vm1722, 1, 0
        %v1731 = vsel %vm1723, 1, 0
        %v1732 = vsel %vm1724, 1, 0
        %v1733 = vsel %vm1725, 1, 0
        %v1734 = vsel %vm1726, 1, 0
        %v1735 = vsel %vm1727, 1, 0
        %v1736 = vsel %vm1728, 1, 0
        %1737 = vset.pattern.permute.xlu0 0
        %1738 = vperm.xlu0 %1737, %v1729
        %v1739 = vpop.permute.xlu0 %1738
        %1740 = vset.pattern.permute.xlu0 0
        %1741 = vperm.xlu0 %1740, %v1730
        %v1742 = vpop.permute.xlu0 %1741
        %1743 = vset.pattern.permute.xlu0 0
        %1744 = vperm.xlu0 %1743, %v1731
        %v1745 = vpop.permute.xlu0 %1744
        %1746 = vset.pattern.permute.xlu0 0
        %1747 = vperm.xlu0 %1746, %v1732
        %v1748 = vpop.permute.xlu0 %1747
        %1749 = vset.pattern.permute.xlu0 0
        %1750 = vperm.xlu0 %1749, %v1733
        %v1751 = vpop.permute.xlu0 %1750
        %1752 = vset.pattern.permute.xlu0 0
        %1753 = vperm.xlu0 %1752, %v1734
        %v1754 = vpop.permute.xlu0 %1753
        %1755 = vset.pattern.permute.xlu0 0
        %1756 = vperm.xlu0 %1755, %v1735
        %v1757 = vpop.permute.xlu0 %1756
        %1758 = vset.pattern.permute.xlu0 0
        %1759 = vperm.xlu0 %1758, %v1736
        %v1760 = vpop.permute.xlu0 %1759
        %vm1761 = vcmp.eq.s32.totalorder %v1739, 1
        %vm1762 = vcmp.eq.s32.totalorder %v1742, 1
        %vm1763 = vcmp.eq.s32.totalorder %v1745, 1
        %vm1764 = vcmp.eq.s32.totalorder %v1748, 1
        %vm1765 = vcmp.eq.s32.totalorder %v1751, 1
        %vm1766 = vcmp.eq.s32.totalorder %v1754, 1
        %vm1767 = vcmp.eq.s32.totalorder %v1757, 1
        %vm1768 = vcmp.eq.s32.totalorder %v1760, 1
        %v1769 = vsel %vm1761, %v1711, 0.0
        %v1770 = vsel %vm1762, %v1710, 0.0
        %v1771 = vsel %vm1763, %v1709, 0.0
        %v1772 = vsel %vm1764, %v1708, 0.0
        %v1773 = vsel %vm1765, %v1707, 0.0
        %v1774 = vsel %vm1766, %v1706, 0.0
        %v1775 = vsel %vm1767, %v1705, 0.0
        %v1776 = vsel %vm1768, %v1712, 0.0
        %v1777 = vpack.c.bf16 %v1770, %v1769
        %v1778 = vpack.c.bf16 %v1772, %v1771
        %v1779 = vpack.c.bf16 %v1774, %v1773
        %v1780 = vpack.c.bf16 %v1776, %v1775
        %s1781 = scalar_lea.vmem [#allocation7], 384
        %v1782 = vld [vmem:[%s1781] sm:$0xf]
        %v1783 = vld [vmem:[%s1781 + $0x4] sm:$0xf]
        %v1784 = vld [vmem:[%s1781 + $0x8] sm:$0xf]
        %v1785 = vld [vmem:[%s1781 + $0xc] sm:$0xf]
        %v1786 = vld [vmem:[%s1781 + $0x10] sm:$0xf]
        %v1787 = vld [vmem:[%s1781 + $0x14] sm:$0xf]
        %v1788 = vld [vmem:[%s1781 + $0x18] sm:$0xf]
        %v1789 = vld [vmem:[%s1781 + $0x1c] sm:$0xf]
        %v1790 = vld [vmem:[%s1781 + $0x20] sm:$0xf]
        %v1791 = vld [vmem:[%s1781 + $0x24] sm:$0xf]
        %v1792 = vld [vmem:[%s1781 + $0x28] sm:$0xf]
        %v1793 = vld [vmem:[%s1781 + $0x2c] sm:$0xf]
        %v1794 = vld [vmem:[%s1781 + $0x30] sm:$0xf]
        %v1795 = vld [vmem:[%s1781 + $0x34] sm:$0xf]
        %v1796 = vld [vmem:[%s1781 + $0x38] sm:$0xf]
        %v1797 = vld [vmem:[%s1781 + $0x3c] sm:$0xf]
        %v1798 = vld [vmem:[%s1781 + $0x40] sm:$0xf]
        %v1799 = vld [vmem:[%s1781 + $0x44] sm:$0xf]
        %v1800 = vld [vmem:[%s1781 + $0x48] sm:$0xf]
        %v1801 = vld [vmem:[%s1781 + $0x4c] sm:$0xf]
        %v1802 = vld [vmem:[%s1781 + $0x50] sm:$0xf]
        %v1803 = vld [vmem:[%s1781 + $0x54] sm:$0xf]
        %v1804 = vld [vmem:[%s1781 + $0x58] sm:$0xf]
        %v1805 = vld [vmem:[%s1781 + $0x5c] sm:$0xf]
        %v1806 = vld [vmem:[%s1781 + $0x60] sm:$0xf]
        %v1807 = vld [vmem:[%s1781 + $0x64] sm:$0xf]
        %v1808 = vld [vmem:[%s1781 + $0x68] sm:$0xf]
        %v1809 = vld [vmem:[%s1781 + $0x6c] sm:$0xf]
        %v1810 = vld [vmem:[%s1781 + $0x70] sm:$0xf]
        %v1811 = vld [vmem:[%s1781 + $0x74] sm:$0xf]
        %v1812 = vld [vmem:[%s1781 + $0x78] sm:$0xf]
        %v1813 = vld [vmem:[%s1781 + $0x7c] sm:$0xf]
        %v1846 = vunpack.c.l.b16 %v1782
        %v1847 = vunpack.c.l.b16 %v1783
        %v1848 = vunpack.c.l.b16 %v1784
        %v1849 = vunpack.c.l.b16 %v1785
        %v1850 = vunpack.c.l.b16 %v1786
        %v1851 = vunpack.c.l.b16 %v1787
        %v1852 = vunpack.c.l.b16 %v1788
        %v1853 = vunpack.c.l.b16 %v1789
        %v1854 = vunpack.c.l.b16 %v1790
        %v1855 = vunpack.c.l.b16 %v1791
        %v1856 = vunpack.c.l.b16 %v1792
        %v1857 = vunpack.c.l.b16 %v1793
        %v1858 = vunpack.c.l.b16 %v1794
        %v1859 = vunpack.c.l.b16 %v1795
        %v1860 = vunpack.c.l.b16 %v1796
        %v1861 = vunpack.c.l.b16 %v1797
        %v1862 = vunpack.c.l.b16 %v1798
        %v1863 = vunpack.c.l.b16 %v1799
        %v1864 = vunpack.c.l.b16 %v1800
        %v1865 = vunpack.c.l.b16 %v1801
        %v1866 = vunpack.c.l.b16 %v1802
        %v1867 = vunpack.c.l.b16 %v1803
        %v1868 = vunpack.c.l.b16 %v1804
        %v1869 = vunpack.c.l.b16 %v1805
        %v1870 = vunpack.c.l.b16 %v1806
        %v1871 = vunpack.c.l.b16 %v1807
        %v1872 = vunpack.c.l.b16 %v1808
        %v1873 = vunpack.c.l.b16 %v1809
        %v1874 = vunpack.c.l.b16 %v1810
        %v1875 = vunpack.c.l.b16 %v1811
        %v1876 = vunpack.c.l.b16 %v1812
        %v1877 = vunpack.c.l.b16 %v1813
        %v1878 = vpack.c.b16 %v1847, %v1846
        %v1879 = vpack.c.b16 %v1849, %v1848
        %v1880 = vpack.c.b16 %v1851, %v1850
        %v1881 = vpack.c.b16 %v1853, %v1852
        %v1882 = vpack.c.b16 %v1855, %v1854
        %v1883 = vpack.c.b16 %v1857, %v1856
        %v1884 = vpack.c.b16 %v1859, %v1858
        %v1885 = vpack.c.b16 %v1861, %v1860
        %v1886 = vpack.c.b16 %v1863, %v1862
        %v1887 = vpack.c.b16 %v1865, %v1864
        %v1888 = vpack.c.b16 %v1867, %v1866
        %v1889 = vpack.c.b16 %v1869, %v1868
        %v1890 = vpack.c.b16 %v1871, %v1870
        %v1891 = vpack.c.b16 %v1873, %v1872
        %v1892 = vpack.c.b16 %v1875, %v1874
        %v1893 = vpack.c.b16 %v1877, %v1876
        %1910 = vmatprep.subr.bf16.mxu0 0
        %1911 = vmatpush1.bf16.msra.mxu0 %v1878
        %1912 = vmatprep.subr.bf16.mxu0 0
        %1913 = vmatpush1.bf16.msra.mxu0 %v1879
        %1914 = vmatprep.subr.bf16.mxu0 0
        %1915 = vmatpush1.bf16.msra.mxu0 %v1880
        %1916 = vmatprep.subr.bf16.mxu0 0
        %1917 = vmatpush1.bf16.msra.mxu0 %v1881
        %1918 = vmatprep.subr.bf16.mxu0 0
        %1919 = vmatpush1.bf16.msra.mxu0 %v1882
        %1920 = vmatprep.subr.bf16.mxu0 0
        %1921 = vmatpush1.bf16.msra.mxu0 %v1883
        %1922 = vmatprep.subr.bf16.mxu0 0
        %1923 = vmatpush1.bf16.msra.mxu0 %v1884
        %1924 = vmatprep.subr.bf16.mxu0 0
        %1925 = vmatpush1.bf16.msra.mxu0 %v1885
        %1926 = vmatprep.subr.bf16.mxu0 0
        %1927 = vmatpush1.bf16.msra.mxu0 %v1886
        %1928 = vmatprep.subr.bf16.mxu0 0
        %1929 = vmatpush1.bf16.msra.mxu0 %v1887
        %1930 = vmatprep.subr.bf16.mxu0 0
        %1931 = vmatpush1.bf16.msra.mxu0 %v1888
        %1932 = vmatprep.subr.bf16.mxu0 0
        %1933 = vmatpush1.bf16.msra.mxu0 %v1889
        %1934 = vmatprep.subr.bf16.mxu0 0
        %1935 = vmatpush1.bf16.msra.mxu0 %v1890
        %1936 = vmatprep.subr.bf16.mxu0 0
        %1937 = vmatpush1.bf16.msra.mxu0 %v1891
        %1938 = vmatprep.subr.bf16.mxu0 0
        %1939 = vmatpush1.bf16.msra.mxu0 %v1892
        %1940 = vmatprep.subr.bf16.mxu0 0
        %1941 = vmatpush1.bf16.msra.mxu0 %v1893
        %1942 = vmatprep.mubr.bf16.mxu0 %v676
        %1943 = vmatmul.mubr.bf16.gmra.mrb[0].mxu0 %v1777
        %v1944 = vpop.f32.mrb[0].mxu0
        %v1945 = vadd.f32 0.0, %v1944
        %v1946 = vpop.f32.mrb[0].mxu0
        %v1947 = vpop.f32.mrb[0].mxu0
        %v1948 = vadd.f32 0.0, %v1947
        %v1949 = vpop.f32.mrb[0].mxu0
        %1950 = vmatprep.mubr.bf16.mxu0 %v677
        %1951 = vmatmul.mubr.bf16.gmra.mrb[0].mxu0 %v1778
        %v1952 = vpop.f32.mrb[0].mxu0
        %v1953 = vadd.f32 0.0, %v1952
        %v1954 = vpop.f32.mrb[0].mxu0
        %v1955 = vpop.f32.mrb[0].mxu0
        %v1956 = vadd.f32 0.0, %v1955
        %v1957 = vpop.f32.mrb[0].mxu0
        %1958 = vmatprep.mubr.bf16.mxu0 %v678
        %1959 = vmatmul.mubr.bf16.gmra.mrb[0].mxu0 %v1779
        %v1960 = vpop.f32.mrb[0].mxu0
        %v1961 = vadd.f32 0.0, %v1960
        %v1962 = vpop.f32.mrb[0].mxu0
        %v1963 = vpop.f32.mrb[0].mxu0
        %v1964 = vadd.f32 0.0, %v1963
        %v1965 = vpop.f32.mrb[0].mxu0
        %1966 = vmatprep.mubr.bf16.mxu0 %v679
        %1967 = vmatmul.mubr.bf16.gmra.mrb[0].mxu0 %v1780
        %v1968 = vpop.f32.mrb[0].mxu0
        %v1969 = vadd.f32 0.0, %v1968
        %v1970 = vpop.f32.mrb[0].mxu0
        %v1971 = vpop.f32.mrb[0].mxu0
        %v1972 = vadd.f32 0.0, %v1971
        %v1973 = vpop.f32.mrb[0].mxu0
        %1974 = vdwg.mxu0
        %v1975 = vadd.f32 %v1688, %v1945
        %v1976 = vadd.f32 %v1689, %v1948
        %v1977 = vadd.f32 %v1690, %v1953
        %v1978 = vadd.f32 %v1691, %v1956
        %v1979 = vadd.f32 %v1692, %v1961
        %v1980 = vadd.f32 %v1693, %v1964
        %v1981 = vadd.f32 %v1694, %v1969
        %v1982 = vadd.f32 %v1695, %v1972
        %v1983 = vld [vmem:[%s5] sm:$0x1]
        %v1985 = vlaneseq
        %v1986 = vshrl.u32 %v1985, 7
        %v1987 = vsub.s32 0, %v1986
        %v1988 = vrot.slane %v1983, %v1987
        %v1990 = vadd.f32 %v1975, %v1988
        %v1991 = vadd.f32 %v1976, %v1988
        %v1992 = vadd.f32 %v1977, %v1988
        %v1993 = vadd.f32 %v1978, %v1988
        %v1994 = vadd.f32 %v1979, %v1988
        %v1995 = vadd.f32 %v1980, %v1988
        %v1996 = vadd.f32 %v1981, %v1988
        %v1997 = vadd.f32 %v1982, %v1988
        %v1998 = vmax.f32 %v1990, 0.0
        %v1999 = vmax.f32 %v1991, 0.0
        %v2000 = vmax.f32 %v1992, 0.0
        %v2001 = vmax.f32 %v1993, 0.0
        %v2002 = vmax.f32 %v1994, 0.0
        %v2003 = vmax.f32 %v1995, 0.0
        %v2004 = vmax.f32 %v1996, 0.0
        %v2005 = vmax.f32 %v1997, 0.0
        %v2006 = vpack.c.bf16 %v1999, %v1998
        %v2007 = vpack.c.bf16 %v2001, %v2000
        %v2008 = vpack.c.bf16 %v2003, %v2002
        %v2009 = vpack.c.bf16 %v2005, %v2004
        %v2010 = vadd.s32 %v455, 4294967293
        %v2011 = vadd.s32 %v456, 4294967293
        %v2012 = vadd.s32 %v457, 4294967293
        %v2013 = vadd.s32 %v458, 4294967293
        %v2014 = vadd.s32 %v459, 4294967293
        %v2015 = vadd.s32 %v460, 4294967293
        %v2016 = vadd.s32 %v461, 4294967293
        %v2017 = vadd.s32 %v462, 4294967293
        %vm2018 = vcmp.ge.s32.totalorder %v2010, 0
        %vm2019 = vcmp.ge.s32.totalorder %v2011, 0
        %vm2020 = vcmp.ge.s32.totalorder %v2012, 0
        %vm2021 = vcmp.ge.s32.totalorder %v2013, 0
        %vm2022 = vcmp.ge.s32.totalorder %v2014, 0
        %vm2023 = vcmp.ge.s32.totalorder %v2015, 0
        %vm2024 = vcmp.ge.s32.totalorder %v2016, 0
        %vm2025 = vcmp.ge.s32.totalorder %v2017, 0
        %v2026 = vsel %vm2018, 1, 0
        %v2027 = vsel %vm2019, 1, 0
        %v2028 = vsel %vm2020, 1, 0
        %v2029 = vsel %vm2021, 1, 0
        %v2030 = vsel %vm2022, 1, 0
        %v2031 = vsel %vm2023, 1, 0
        %v2032 = vsel %vm2024, 1, 0
        %v2033 = vsel %vm2025, 1, 0
        %2034 = vset.pattern.permute.xlu0 0
        %2035 = vperm.xlu0 %2034, %v2026
        %v2036 = vpop.permute.xlu0 %2035
        %2037 = vset.pattern.permute.xlu0 0
        %2038 = vperm.xlu0 %2037, %v2027
        %v2039 = vpop.permute.xlu0 %2038
        %2040 = vset.pattern.permute.xlu0 0
        %2041 = vperm.xlu0 %2040, %v2028
        %v2042 = vpop.permute.xlu0 %2041
        %2043 = vset.pattern.permute.xlu0 0
        %2044 = vperm.xlu0 %2043, %v2029
        %v2045 = vpop.permute.xlu0 %2044
        %2046 = vset.pattern.permute.xlu0 0
        %2047 = vperm.xlu0 %2046, %v2030
        %v2048 = vpop.permute.xlu0 %2047
        %2049 = vset.pattern.permute.xlu0 0
        %2050 = vperm.xlu0 %2049, %v2031
        %v2051 = vpop.permute.xlu0 %2050
        %2052 = vset.pattern.permute.xlu0 0
        %2053 = vperm.xlu0 %2052, %v2032
        %v2054 = vpop.permute.xlu0 %2053
        %2055 = vset.pattern.permute.xlu0 0
        %2056 = vperm.xlu0 %2055, %v2033
        %v2057 = vpop.permute.xlu0 %2056
        %vm2058 = vcmp.eq.s32.totalorder %v2036, 1
        %vm2059 = vcmp.eq.s32.totalorder %v2039, 1
        %vm2060 = vcmp.eq.s32.totalorder %v2042, 1
        %vm2061 = vcmp.eq.s32.totalorder %v2045, 1
        %vm2062 = vcmp.eq.s32.totalorder %v2048, 1
        %vm2063 = vcmp.eq.s32.totalorder %v2051, 1
        %vm2064 = vcmp.eq.s32.totalorder %v2054, 1
        %vm2065 = vcmp.eq.s32.totalorder %v2057, 1
        %v2066 = vsel %vm2058, %v2003, 0.0
        %v2067 = vsel %vm2059, %v2004, 0.0
        %v2068 = vsel %vm2060, %v2005, 0.0
        %v2069 = vsel %vm2061, %v1998, 0.0
        %v2070 = vsel %vm2062, %v1999, 0.0
        %v2071 = vsel %vm2063, %v2000, 0.0
        %v2072 = vsel %vm2064, %v2001, 0.0
        %v2073 = vsel %vm2065, %v2002, 0.0
        %v2074 = vpack.c.bf16 %v2067, %v2066
        %v2075 = vpack.c.bf16 %v2069, %v2068
        %v2076 = vpack.c.bf16 %v2071, %v2070
        %v2077 = vpack.c.bf16 %v2073, %v2072
        %v2078 = vadd.s32 %v455, 4294967294
        %v2079 = vadd.s32 %v456, 4294967294
        %v2080 = vadd.s32 %v457, 4294967294
        %v2081 = vadd.s32 %v458, 4294967294
        %v2082 = vadd.s32 %v459, 4294967294
        %v2083 = vadd.s32 %v460, 4294967294
        %v2084 = vadd.s32 %v461, 4294967294
        %v2085 = vadd.s32 %v462, 4294967294
        %vm2086 = vcmp.ge.s32.totalorder %v2078, 0
        %vm2087 = vcmp.ge.s32.totalorder %v2079, 0
        %vm2088 = vcmp.ge.s32.totalorder %v2080, 0
        %vm2089 = vcmp.ge.s32.totalorder %v2081, 0
        %vm2090 = vcmp.ge.s32.totalorder %v2082, 0
        %vm2091 = vcmp.ge.s32.totalorder %v2083, 0
        %vm2092 = vcmp.ge.s32.totalorder %v2084, 0
        %vm2093 = vcmp.ge.s32.totalorder %v2085, 0
        %v2094 = vsel %vm2086, 1, 0
        %v2095 = vsel %vm2087, 1, 0
        %v2096 = vsel %vm2088, 1, 0
        %v2097 = vsel %vm2089, 1, 0
        %v2098 = vsel %vm2090, 1, 0
        %v2099 = vsel %vm2091, 1, 0
        %v2100 = vsel %vm2092, 1, 0
        %v2101 = vsel %vm2093, 1, 0
        %2102 = vset.pattern.permute.xlu0 0
        %2103 = vperm.xlu0 %2102, %v2094
        %v2104 = vpop.permute.xlu0 %2103
        %2105 = vset.pattern.permute.xlu0 0
        %2106 = vperm.xlu0 %2105, %v2095
        %v2107 = vpop.permute.xlu0 %2106
        %2108 = vset.pattern.permute.xlu0 0
        %2109 = vperm.xlu0 %2108, %v2096
        %v2110 = vpop.permute.xlu0 %2109
        %2111 = vset.pattern.permute.xlu0 0
        %2112 = vperm.xlu0 %2111, %v2097
        %v2113 = vpop.permute.xlu0 %2112
        %2114 = vset.pattern.permute.xlu0 0
        %2115 = vperm.xlu0 %2114, %v2098
        %v2116 = vpop.permute.xlu0 %2115
        %2117 = vset.pattern.permute.xlu0 0
        %2118 = vperm.xlu0 %2117, %v2099
        %v2119 = vpop.permute.xlu0 %2118
        %2120 = vset.pattern.permute.xlu0 0
        %2121 = vperm.xlu0 %2120, %v2100
        %v2122 = vpop.permute.xlu0 %2121
        %2123 = vset.pattern.permute.xlu0 0
        %2124 = vperm.xlu0 %2123, %v2101
        %v2125 = vpop.permute.xlu0 %2124
        %vm2126 = vcmp.eq.s32.totalorder %v2104, 1
        %vm2127 = vcmp.eq.s32.totalorder %v2107, 1
        %vm2128 = vcmp.eq.s32.totalorder %v2110, 1
        %vm2129 = vcmp.eq.s32.totalorder %v2113, 1
        %vm2130 = vcmp.eq.s32.totalorder %v2116, 1
        %vm2131 = vcmp.eq.s32.totalorder %v2119, 1
        %vm2132 = vcmp.eq.s32.totalorder %v2122, 1
        %vm2133 = vcmp.eq.s32.totalorder %v2125, 1
        %v2134 = vsel %vm2126, %v2004, 0.0
        %v2135 = vsel %vm2127, %v2005, 0.0
        %v2136 = vsel %vm2128, %v1998, 0.0
        %v2137 = vsel %vm2129, %v1999, 0.0
        %v2138 = vsel %vm2130, %v2000, 0.0
        %v2139 = vsel %vm2131, %v2001, 0.0
        %v2140 = vsel %vm2132, %v2002, 0.0
        %v2141 = vsel %vm2133, %v2003, 0.0
        %v2142 = vpack.c.bf16 %v2135, %v2134
        %v2143 = vpack.c.bf16 %v2137, %v2136
        %v2144 = vpack.c.bf16 %v2139, %v2138
        %v2145 = vpack.c.bf16 %v2141, %v2140
        %v2146 = vld [vmem:[#allocation8] sm:$0xf]
        %v2147 = vld [vmem:[#allocation8 + $0x4] sm:$0xf]
        %v2148 = vld [vmem:[#allocation8 + $0x8] sm:$0xf]
        %v2149 = vld [vmem:[#allocation8 + $0xc] sm:$0xf]
        %v2150 = vld [vmem:[#allocation8 + $0x10] sm:$0xf]
        %v2151 = vld [vmem:[#allocation8 + $0x14] sm:$0xf]
        %v2152 = vld [vmem:[#allocation8 + $0x18] sm:$0xf]
        %v2153 = vld [vmem:[#allocation8 + $0x1c] sm:$0xf]
        %v2154 = vld [vmem:[#allocation8 + $0x20] sm:$0xf]
        %v2155 = vld [vmem:[#allocation8 + $0x24] sm:$0xf]
        %v2156 = vld [vmem:[#allocation8 + $0x28] sm:$0xf]
        %v2157 = vld [vmem:[#allocation8 + $0x2c] sm:$0xf]
        %v2158 = vld [vmem:[#allocation8 + $0x30] sm:$0xf]
        %v2159 = vld [vmem:[#allocation8 + $0x34] sm:$0xf]
        %v2160 = vld [vmem:[#allocation8 + $0x38] sm:$0xf]
        %v2161 = vld [vmem:[#allocation8 + $0x3c] sm:$0xf]
        %v2162 = vld [vmem:[#allocation8 + $0x40] sm:$0xf]
        %v2163 = vld [vmem:[#allocation8 + $0x44] sm:$0xf]
        %v2164 = vld [vmem:[#allocation8 + $0x48] sm:$0xf]
        %v2165 = vld [vmem:[#allocation8 + $0x4c] sm:$0xf]
        %v2166 = vld [vmem:[#allocation8 + $0x50] sm:$0xf]
        %v2167 = vld [vmem:[#allocation8 + $0x54] sm:$0xf]
        %v2168 = vld [vmem:[#allocation8 + $0x58] sm:$0xf]
        %v2169 = vld [vmem:[#allocation8 + $0x5c] sm:$0xf]
        %v2170 = vld [vmem:[#allocation8 + $0x60] sm:$0xf]
        %v2171 = vld [vmem:[#allocation8 + $0x64] sm:$0xf]
        %v2172 = vld [vmem:[#allocation8 + $0x68] sm:$0xf]
        %v2173 = vld [vmem:[#allocation8 + $0x6c] sm:$0xf]
        %v2174 = vld [vmem:[#allocation8 + $0x70] sm:$0xf]
        %v2175 = vld [vmem:[#allocation8 + $0x74] sm:$0xf]
        %v2176 = vld [vmem:[#allocation8 + $0x78] sm:$0xf]
        %v2177 = vld [vmem:[#allocation8 + $0x7c] sm:$0xf]
        %v2178 = vadd.s32 %v455, 4294967295
        %v2179 = vadd.s32 %v456, 4294967295
        %v2180 = vadd.s32 %v457, 4294967295
        %v2181 = vadd.s32 %v458, 4294967295
        %v2182 = vadd.s32 %v459, 4294967295
        %v2183 = vadd.s32 %v460, 4294967295
        %v2184 = vadd.s32 %v461, 4294967295
        %v2185 = vadd.s32 %v462, 4294967295
        %vm2186 = vcmp.ge.s32.totalorder %v2178, 0
        %vm2187 = vcmp.ge.s32.totalorder %v2179, 0
        %vm2188 = vcmp.ge.s32.totalorder %v2180, 0
        %vm2189 = vcmp.ge.s32.totalorder %v2181, 0
        %vm2190 = vcmp.ge.s32.totalorder %v2182, 0
        %vm2191 = vcmp.ge.s32.totalorder %v2183, 0
        %vm2192 = vcmp.ge.s32.totalorder %v2184, 0
        %vm2193 = vcmp.ge.s32.totalorder %v2185, 0
        %v2194 = vsel %vm2186, 1, 0
        %v2195 = vsel %vm2187, 1, 0
        %v2196 = vsel %vm2188, 1, 0
        %v2197 = vsel %vm2189, 1, 0
        %v2198 = vsel %vm2190, 1, 0
        %v2199 = vsel %vm2191, 1, 0
        %v2200 = vsel %vm2192, 1, 0
        %v2201 = vsel %vm2193, 1, 0
        %2202 = vset.pattern.permute.xlu0 0
        %2203 = vperm.xlu0 %2202, %v2194
        %v2204 = vpop.permute.xlu0 %2203
        %2205 = vset.pattern.permute.xlu0 0
        %2206 = vperm.xlu0 %2205, %v2195
        %v2207 = vpop.permute.xlu0 %2206
        %2208 = vset.pattern.permute.xlu0 0
        %2209 = vperm.xlu0 %2208, %v2196
        %v2210 = vpop.permute.xlu0 %2209
        %2211 = vset.pattern.permute.xlu0 0
        %2212 = vperm.xlu0 %2211, %v2197
        %v2213 = vpop.permute.xlu0 %2212
        %2214 = vset.pattern.permute.xlu0 0
        %2215 = vperm.xlu0 %2214, %v2198
        %v2216 = vpop.permute.xlu0 %2215
        %2217 = vset.pattern.permute.xlu0 0
        %2218 = vperm.xlu0 %2217, %v2199
        %v2219 = vpop.permute.xlu0 %2218
        %2220 = vset.pattern.permute.xlu0 0
        %2221 = vperm.xlu0 %2220, %v2200
        %v2222 = vpop.permute.xlu0 %2221
        %2223 = vset.pattern.permute.xlu0 0
        %2224 = vperm.xlu0 %2223, %v2201
        %v2225 = vpop.permute.xlu0 %2224
        %vm2226 = vcmp.eq.s32.totalorder %v2204, 1
        %vm2227 = vcmp.eq.s32.totalorder %v2207, 1
        %vm2228 = vcmp.eq.s32.totalorder %v2210, 1
        %vm2229 = vcmp.eq.s32.totalorder %v2213, 1
        %vm2230 = vcmp.eq.s32.totalorder %v2216, 1
        %vm2231 = vcmp.eq.s32.totalorder %v2219, 1
        %vm2232 = vcmp.eq.s32.totalorder %v2222, 1
        %vm2233 = vcmp.eq.s32.totalorder %v2225, 1
        %v2234 = vsel %vm2226, %v2005, 0.0
        %v2235 = vsel %vm2227, %v1998, 0.0
        %v2236 = vsel %vm2228, %v1999, 0.0
        %v2237 = vsel %vm2229, %v2000, 0.0
        %v2238 = vsel %vm2230, %v2001, 0.0
        %v2239 = vsel %vm2231, %v2002, 0.0
        %v2240 = vsel %vm2232, %v2003, 0.0
        %v2241 = vsel %vm2233, %v2004, 0.0
        %v2242 = vpack.c.bf16 %v2235, %v2234
        %v2243 = vpack.c.bf16 %v2237, %v2236
        %v2244 = vpack.c.bf16 %v2239, %v2238
        %v2245 = vpack.c.bf16 %v2241, %v2240
        %s2246 = scalar_lea.vmem [#allocation8], 128
        %v2247 = vld [vmem:[%s2246] sm:$0xf]
        %v2248 = vld [vmem:[%s2246 + $0x4] sm:$0xf]
        %v2249 = vld [vmem:[%s2246 + $0x8] sm:$0xf]
        %v2250 = vld [vmem:[%s2246 + $0xc] sm:$0xf]
        %v2251 = vld [vmem:[%s2246 + $0x10] sm:$0xf]
        %v2252 = vld [vmem:[%s2246 + $0x14] sm:$0xf]
        %v2253 = vld [vmem:[%s2246 + $0x18] sm:$0xf]
        %v2254 = vld [vmem:[%s2246 + $0x1c] sm:$0xf]
        %v2255 = vld [vmem:[%s2246 + $0x20] sm:$0xf]
        %v2256 = vld [vmem:[%s2246 + $0x24] sm:$0xf]
        %v2257 = vld [vmem:[%s2246 + $0x28] sm:$0xf]
        %v2258 = vld [vmem:[%s2246 + $0x2c] sm:$0xf]
        %v2259 = vld [vmem:[%s2246 + $0x30] sm:$0xf]
        %v2260 = vld [vmem:[%s2246 + $0x34] sm:$0xf]
        %v2261 = vld [vmem:[%s2246 + $0x38] sm:$0xf]
        %v2262 = vld [vmem:[%s2246 + $0x3c] sm:$0xf]
        %v2263 = vld [vmem:[%s2246 + $0x40] sm:$0xf]
        %v2264 = vld [vmem:[%s2246 + $0x44] sm:$0xf]
        %v2265 = vld [vmem:[%s2246 + $0x48] sm:$0xf]
        %v2266 = vld [vmem:[%s2246 + $0x4c] sm:$0xf]
        %v2267 = vld [vmem:[%s2246 + $0x50] sm:$0xf]
        %v2268 = vld [vmem:[%s2246 + $0x54] sm:$0xf]
        %v2269 = vld [vmem:[%s2246 + $0x58] sm:$0xf]
        %v2270 = vld [vmem:[%s2246 + $0x5c] sm:$0xf]
        %v2271 = vld [vmem:[%s2246 + $0x60] sm:$0xf]
        %v2272 = vld [vmem:[%s2246 + $0x64] sm:$0xf]
        %v2273 = vld [vmem:[%s2246 + $0x68] sm:$0xf]
        %v2274 = vld [vmem:[%s2246 + $0x6c] sm:$0xf]
        %v2275 = vld [vmem:[%s2246 + $0x70] sm:$0xf]
        %v2276 = vld [vmem:[%s2246 + $0x74] sm:$0xf]
        %v2277 = vld [vmem:[%s2246 + $0x78] sm:$0xf]
        %v2278 = vld [vmem:[%s2246 + $0x7c] sm:$0xf]
        %v2311 = vunpack.c.l.b16 %v2247
        %v2312 = vunpack.c.l.b16 %v2248
        %v2313 = vunpack.c.l.b16 %v2249
        %v2314 = vunpack.c.l.b16 %v2250
        %v2315 = vunpack.c.l.b16 %v2251
        %v2316 = vunpack.c.l.b16 %v2252
        %v2317 = vunpack.c.l.b16 %v2253
        %v2318 = vunpack.c.l.b16 %v2254
        %v2319 = vunpack.c.l.b16 %v2255
        %v2320 = vunpack.c.l.b16 %v2256
        %v2321 = vunpack.c.l.b16 %v2257
        %v2322 = vunpack.c.l.b16 %v2258
        %v2323 = vunpack.c.l.b16 %v2259
        %v2324 = vunpack.c.l.b16 %v2260
        %v2325 = vunpack.c.l.b16 %v2261
        %v2326 = vunpack.c.l.b16 %v2262
        %v2327 = vunpack.c.l.b16 %v2263
        %v2328 = vunpack.c.l.b16 %v2264
        %v2329 = vunpack.c.l.b16 %v2265
        %v2330 = vunpack.c.l.b16 %v2266
        %v2331 = vunpack.c.l.b16 %v2267
        %v2332 = vunpack.c.l.b16 %v2268
        %v2333 = vunpack.c.l.b16 %v2269
        %v2334 = vunpack.c.l.b16 %v2270
        %v2335 = vunpack.c.l.b16 %v2271
        %v2336 = vunpack.c.l.b16 %v2272
        %v2337 = vunpack.c.l.b16 %v2273
        %v2338 = vunpack.c.l.b16 %v2274
        %v2339 = vunpack.c.l.b16 %v2275
        %v2340 = vunpack.c.l.b16 %v2276
        %v2341 = vunpack.c.l.b16 %v2277
        %v2342 = vunpack.c.l.b16 %v2278
        %v2343 = vpack.c.b16 %v2312, %v2311
        %v2344 = vpack.c.b16 %v2314, %v2313
        %v2345 = vpack.c.b16 %v2316, %v2315
        %v2346 = vpack.c.b16 %v2318, %v2317
        %v2347 = vpack.c.b16 %v2320, %v2319
        %v2348 = vpack.c.b16 %v2322, %v2321
        %v2349 = vpack.c.b16 %v2324, %v2323
        %v2350 = vpack.c.b16 %v2326, %v2325
        %v2351 = vpack.c.b16 %v2328, %v2327
        %v2352 = vpack.c.b16 %v2330, %v2329
        %v2353 = vpack.c.b16 %v2332, %v2331
        %v2354 = vpack.c.b16 %v2334, %v2333
        %v2355 = vpack.c.b16 %v2336, %v2335
        %v2356 = vpack.c.b16 %v2338, %v2337
        %v2357 = vpack.c.b16 %v2340, %v2339
        %v2358 = vpack.c.b16 %v2342, %v2341
        %2375 = vmatprep.subr.bf16.mxu0 0
        %2376 = vmatpush1.bf16.msra.mxu0 %v2343
        %2377 = vmatprep.subr.bf16.mxu0 0
        %2378 = vmatpush1.bf16.msra.mxu0 %v2344
        %2379 = vmatprep.subr.bf16.mxu0 0
        %2380 = vmatpush1.bf16.msra.mxu0 %v2345
        %2381 = vmatprep.subr.bf16.mxu0 0
        %2382 = vmatpush1.bf16.msra.mxu0 %v2346
        %2383 = vmatprep.subr.bf16.mxu0 0
        %2384 = vmatpush1.bf16.msra.mxu0 %v2347
        %2385 = vmatprep.subr.bf16.mxu0 0
        %2386 = vmatpush1.bf16.msra.mxu0 %v2348
        %2387 = vmatprep.subr.bf16.mxu0 0
        %2388 = vmatpush1.bf16.msra.mxu0 %v2349
        %2389 = vmatprep.subr.bf16.mxu0 0
        %2390 = vmatpush1.bf16.msra.mxu0 %v2350
        %2391 = vmatprep.subr.bf16.mxu0 0
        %2392 = vmatpush1.bf16.msra.mxu0 %v2351
        %2393 = vmatprep.subr.bf16.mxu0 0
        %2394 = vmatpush1.bf16.msra.mxu0 %v2352
        %2395 = vmatprep.subr.bf16.mxu0 0
        %2396 = vmatpush1.bf16.msra.mxu0 %v2353
        %2397 = vmatprep.subr.bf16.mxu0 0
        %2398 = vmatpush1.bf16.msra.mxu0 %v2354
        %2399 = vmatprep.subr.bf16.mxu0 0
        %2400 = vmatpush1.bf16.msra.mxu0 %v2355
        %2401 = vmatprep.subr.bf16.mxu0 0
        %2402 = vmatpush1.bf16.msra.mxu0 %v2356
        %2403 = vmatprep.subr.bf16.mxu0 0
        %2404 = vmatpush1.bf16.msra.mxu0 %v2357
        %2405 = vmatprep.subr.bf16.mxu0 0
        %2406 = vmatpush1.bf16.msra.mxu0 %v2358
        %2407 = vmatprep.mubr.bf16.mxu0 %v2006
        %2408 = vmatmul.mubr.bf16.gmra.mrb[0].mxu0 %v2242
        %v2409 = vpop.f32.mrb[0].mxu0
        %v2410 = vadd.f32 0.0, %v2409
        %v2411 = vpop.f32.mrb[0].mxu0
        %v2412 = vpop.f32.mrb[0].mxu0
        %v2413 = vadd.f32 0.0, %v2412
        %v2414 = vpop.f32.mrb[0].mxu0
        %2415 = vmatprep.mubr.bf16.mxu0 %v2007
        %2416 = vmatmul.mubr.bf16.gmra.mrb[0].mxu0 %v2243
        %v2417 = vpop.f32.mrb[0].mxu0
        %v2418 = vadd.f32 0.0, %v2417
        %v2419 = vpop.f32.mrb[0].mxu0
        %v2420 = vpop.f32.mrb[0].mxu0
        %v2421 = vadd.f32 0.0, %v2420
        %v2422 = vpop.f32.mrb[0].mxu0
        %2423 = vmatprep.mubr.bf16.mxu0 %v2008
        %2424 = vmatmul.mubr.bf16.gmra.mrb[0].mxu0 %v2244
        %v2425 = vpop.f32.mrb[0].mxu0
        %v2426 = vadd.f32 0.0, %v2425
        %v2427 = vpop.f32.mrb[0].mxu0
        %v2428 = vpop.f32.mrb[0].mxu0
        %v2429 = vadd.f32 0.0, %v2428
        %v2430 = vpop.f32.mrb[0].mxu0
        %2431 = vmatprep.mubr.bf16.mxu0 %v2009
        %2432 = vmatmul.mubr.bf16.gmra.mrb[0].mxu0 %v2245
        %v2433 = vpop.f32.mrb[0].mxu0
        %v2434 = vadd.f32 0.0, %v2433
        %v2435 = vpop.f32.mrb[0].mxu0
        %v2436 = vpop.f32.mrb[0].mxu0
        %v2437 = vadd.f32 0.0, %v2436
        %v2438 = vpop.f32.mrb[0].mxu0
        %2439 = vdwg.mxu0
        %v2472 = vunpack.c.l.b16 %v2146
        %v2473 = vunpack.c.l.b16 %v2147
        %v2474 = vunpack.c.l.b16 %v2148
        %v2475 = vunpack.c.l.b16 %v2149
        %v2476 = vunpack.c.l.b16 %v2150
        %v2477 = vunpack.c.l.b16 %v2151
        %v2478 = vunpack.c.l.b16 %v2152
        %v2479 = vunpack.c.l.b16 %v2153
        %v2480 = vunpack.c.l.b16 %v2154
        %v2481 = vunpack.c.l.b16 %v2155
        %v2482 = vunpack.c.l.b16 %v2156
        %v2483 = vunpack.c.l.b16 %v2157
        %v2484 = vunpack.c.l.b16 %v2158
        %v2485 = vunpack.c.l.b16 %v2159
        %v2486 = vunpack.c.l.b16 %v2160
        %v2487 = vunpack.c.l.b16 %v2161
        %v2488 = vunpack.c.l.b16 %v2162
        %v2489 = vunpack.c.l.b16 %v2163
        %v2490 = vunpack.c.l.b16 %v2164
        %v2491 = vunpack.c.l.b16 %v2165
        %v2492 = vunpack.c.l.b16 %v2166
        %v2493 = vunpack.c.l.b16 %v2167
        %v2494 = vunpack.c.l.b16 %v2168
        %v2495 = vunpack.c.l.b16 %v2169
        %v2496 = vunpack.c.l.b16 %v2170
        %v2497 = vunpack.c.l.b16 %v2171
        %v2498 = vunpack.c.l.b16 %v2172
        %v2499 = vunpack.c.l.b16 %v2173
        %v2500 = vunpack.c.l.b16 %v2174
        %v2501 = vunpack.c.l.b16 %v2175
        %v2502 = vunpack.c.l.b16 %v2176
        %v2503 = vunpack.c.l.b16 %v2177
        %v2504 = vpack.c.b16 %v2473, %v2472
        %v2505 = vpack.c.b16 %v2475, %v2474
        %v2506 = vpack.c.b16 %v2477, %v2476
        %v2507 = vpack.c.b16 %v2479, %v2478
        %v2508 = vpack.c.b16 %v2481, %v2480
        %v2509 = vpack.c.b16 %v2483, %v2482
        %v2510 = vpack.c.b16 %v2485, %v2484
        %v2511 = vpack.c.b16 %v2487, %v2486
        %v2512 = vpack.c.b16 %v2489, %v2488
        %v2513 = vpack.c.b16 %v2491, %v2490
        %v2514 = vpack.c.b16 %v2493, %v2492
        %v2515 = vpack.c.b16 %v2495, %v2494
        %v2516 = vpack.c.b16 %v2497, %v2496
        %v2517 = vpack.c.b16 %v2499, %v2498
        %v2518 = vpack.c.b16 %v2501, %v2500
        %v2519 = vpack.c.b16 %v2503, %v2502
        %2536 = vmatprep.subr.bf16.mxu0 0
        %2537 = vmatpush1.bf16.msra.mxu0 %v2504
        %2538 = vmatprep.subr.bf16.mxu0 0
        %2539 = vmatpush1.bf16.msra.mxu0 %v2505
        %2540 = vmatprep.subr.bf16.mxu0 0
        %2541 = vmatpush1.bf16.msra.mxu0 %v2506
        %2542 = vmatprep.subr.bf16.mxu0 0
        %2543 = vmatpush1.bf16.msra.mxu0 %v2507
        %2544 = vmatprep.subr.bf16.mxu0 0
        %2545 = vmatpush1.bf16.msra.mxu0 %v2508
        %2546 = vmatprep.subr.bf16.mxu0 0
        %2547 = vmatpush1.bf16.msra.mxu0 %v2509
        %2548 = vmatprep.subr.bf16.mxu0 0
        %2549 = vmatpush1.bf16.msra.mxu0 %v2510
        %2550 = vmatprep.subr.bf16.mxu0 0
        %2551 = vmatpush1.bf16.msra.mxu0 %v2511
        %2552 = vmatprep.subr.bf16.mxu0 0
        %2553 = vmatpush1.bf16.msra.mxu0 %v2512
        %2554 = vmatprep.subr.bf16.mxu0 0
        %2555 = vmatpush1.bf16.msra.mxu0 %v2513
        %2556 = vmatprep.subr.bf16.mxu0 0
        %2557 = vmatpush1.bf16.msra.mxu0 %v2514
        %2558 = vmatprep.subr.bf16.mxu0 0
        %2559 = vmatpush1.bf16.msra.mxu0 %v2515
        %2560 = vmatprep.subr.bf16.mxu0 0
        %2561 = vmatpush1.bf16.msra.mxu0 %v2516
        %2562 = vmatprep.subr.bf16.mxu0 0
        %2563 = vmatpush1.bf16.msra.mxu0 %v2517
        %2564 = vmatprep.subr.bf16.mxu0 0
        %2565 = vmatpush1.bf16.msra.mxu0 %v2518
        %2566 = vmatprep.subr.bf16.mxu0 0
        %2567 = vmatpush1.bf16.msra.mxu0 %v2519
        %2568 = vmatprep.mubr.bf16.mxu0 %v2142
        %2569 = vmatmul.mubr.bf16.gmra.mrb[0].mxu0 %v2074
        %v2570 = vpop.f32.mrb[0].mxu0
        %v2571 = vadd.f32 %v2410, %v2570
        %v2572 = vpop.f32.mrb[0].mxu0
        %v2573 = vpop.f32.mrb[0].mxu0
        %v2574 = vadd.f32 %v2413, %v2573
        %v2575 = vpop.f32.mrb[0].mxu0
        %2576 = vmatprep.mubr.bf16.mxu0 %v2143
        %2577 = vmatmul.mubr.bf16.gmra.mrb[0].mxu0 %v2075
        %v2578 = vpop.f32.mrb[0].mxu0
        %v2579 = vadd.f32 %v2418, %v2578
        %v2580 = vpop.f32.mrb[0].mxu0
        %v2581 = vpop.f32.mrb[0].mxu0
        %v2582 = vadd.f32 %v2421, %v2581
        %v2583 = vpop.f32.mrb[0].mxu0
        %2584 = vmatprep.mubr.bf16.mxu0 %v2144
        %2585 = vmatmul.mubr.bf16.gmra.mrb[0].mxu0 %v2076
        %v2586 = vpop.f32.mrb[0].mxu0
        %v2587 = vadd.f32 %v2426, %v2586
        %v2588 = vpop.f32.mrb[0].mxu0
        %v2589 = vpop.f32.mrb[0].mxu0
        %v2590 = vadd.f32 %v2429, %v2589
        %v2591 = vpop.f32.mrb[0].mxu0
        %2592 = vmatprep.mubr.bf16.mxu0 %v2145
        %2593 = vmatmul.mubr.bf16.gmra.mrb[0].mxu0 %v2077
        %v2594 = vpop.f32.mrb[0].mxu0
        %v2595 = vadd.f32 %v2434, %v2594
        %v2596 = vpop.f32.mrb[0].mxu0
        %v2597 = vpop.f32.mrb[0].mxu0
        %v2598 = vadd.f32 %v2437, %v2597
        %v2599 = vpop.f32.mrb[0].mxu0
        %2600 = vdwg.mxu0
        %v2601 = vadd.s32 %v455, 1
        %v2602 = vadd.s32 %v456, 1
        %v2603 = vadd.s32 %v457, 1
        %v2604 = vadd.s32 %v458, 1
        %v2605 = vadd.s32 %v459, 1
        %v2606 = vadd.s32 %v460, 1
        %v2607 = vadd.s32 %v461, 1
        %v2608 = vadd.s32 %v462, 1
        %vm2609 = vcmp.lt.s32.totalorder %v2601, 8
        %vm2610 = vcmp.lt.s32.totalorder %v2602, 8
        %vm2611 = vcmp.lt.s32.totalorder %v2603, 8
        %vm2612 = vcmp.lt.s32.totalorder %v2604, 8
        %vm2613 = vcmp.lt.s32.totalorder %v2605, 8
        %vm2614 = vcmp.lt.s32.totalorder %v2606, 8
        %vm2615 = vcmp.lt.s32.totalorder %v2607, 8
        %vm2616 = vcmp.lt.s32.totalorder %v2608, 8
        %v2617 = vsel %vm2609, 1, 0
        %v2618 = vsel %vm2610, 1, 0
        %v2619 = vsel %vm2611, 1, 0
        %v2620 = vsel %vm2612, 1, 0
        %v2621 = vsel %vm2613, 1, 0
        %v2622 = vsel %vm2614, 1, 0
        %v2623 = vsel %vm2615, 1, 0
        %v2624 = vsel %vm2616, 1, 0
        %2625 = vset.pattern.permute.xlu0 0
        %2626 = vperm.xlu0 %2625, %v2617
        %v2627 = vpop.permute.xlu0 %2626
        %2628 = vset.pattern.permute.xlu0 0
        %2629 = vperm.xlu0 %2628, %v2618
        %v2630 = vpop.permute.xlu0 %2629
        %2631 = vset.pattern.permute.xlu0 0
        %2632 = vperm.xlu0 %2631, %v2619
        %v2633 = vpop.permute.xlu0 %2632
        %2634 = vset.pattern.permute.xlu0 0
        %2635 = vperm.xlu0 %2634, %v2620
        %v2636 = vpop.permute.xlu0 %2635
        %2637 = vset.pattern.permute.xlu0 0
        %2638 = vperm.xlu0 %2637, %v2621
        %v2639 = vpop.permute.xlu0 %2638
        %2640 = vset.pattern.permute.xlu0 0
        %2641 = vperm.xlu0 %2640, %v2622
        %v2642 = vpop.permute.xlu0 %2641
        %2643 = vset.pattern.permute.xlu0 0
        %2644 = vperm.xlu0 %2643, %v2623
        %v2645 = vpop.permute.xlu0 %2644
        %2646 = vset.pattern.permute.xlu0 0
        %2647 = vperm.xlu0 %2646, %v2624
        %v2648 = vpop.permute.xlu0 %2647
        %vm2649 = vcmp.eq.s32.totalorder %v2627, 1
        %vm2650 = vcmp.eq.s32.totalorder %v2630, 1
        %vm2651 = vcmp.eq.s32.totalorder %v2633, 1
        %vm2652 = vcmp.eq.s32.totalorder %v2636, 1
        %vm2653 = vcmp.eq.s32.totalorder %v2639, 1
        %vm2654 = vcmp.eq.s32.totalorder %v2642, 1
        %vm2655 = vcmp.eq.s32.totalorder %v2645, 1
        %vm2656 = vcmp.eq.s32.totalorder %v2648, 1
        %v2657 = vsel %vm2649, %v1999, 0.0
        %v2658 = vsel %vm2650, %v2000, 0.0
        %v2659 = vsel %vm2651, %v2001, 0.0
        %v2660 = vsel %vm2652, %v2002, 0.0
        %v2661 = vsel %vm2653, %v2003, 0.0
        %v2662 = vsel %vm2654, %v2004, 0.0
        %v2663 = vsel %vm2655, %v2005, 0.0
        %v2664 = vsel %vm2656, %v1998, 0.0
        %v2665 = vpack.c.bf16 %v2658, %v2657
        %v2666 = vpack.c.bf16 %v2660, %v2659
        %v2667 = vpack.c.bf16 %v2662, %v2661
        %v2668 = vpack.c.bf16 %v2664, %v2663
        %v2669 = vadd.s32 %v455, 2
        %v2670 = vadd.s32 %v456, 2
        %v2671 = vadd.s32 %v457, 2
        %v2672 = vadd.s32 %v458, 2
        %v2673 = vadd.s32 %v459, 2
        %v2674 = vadd.s32 %v460, 2
        %v2675 = vadd.s32 %v461, 2
        %v2676 = vadd.s32 %v462, 2
        %vm2677 = vcmp.lt.s32.totalorder %v2669, 8
        %vm2678 = vcmp.lt.s32.totalorder %v2670, 8
        %vm2679 = vcmp.lt.s32.totalorder %v2671, 8
        %vm2680 = vcmp.lt.s32.totalorder %v2672, 8
        %vm2681 = vcmp.lt.s32.totalorder %v2673, 8
        %vm2682 = vcmp.lt.s32.totalorder %v2674, 8
        %vm2683 = vcmp.lt.s32.totalorder %v2675, 8
        %vm2684 = vcmp.lt.s32.totalorder %v2676, 8
        %v2685 = vsel %vm2677, 1, 0
        %v2686 = vsel %vm2678, 1, 0
        %v2687 = vsel %vm2679, 1, 0
        %v2688 = vsel %vm2680, 1, 0
        %v2689 = vsel %vm2681, 1, 0
        %v2690 = vsel %vm2682, 1, 0
        %v2691 = vsel %vm2683, 1, 0
        %v2692 = vsel %vm2684, 1, 0
        %2693 = vset.pattern.permute.xlu0 0
        %2694 = vperm.xlu0 %2693, %v2685
        %v2695 = vpop.permute.xlu0 %2694
        %2696 = vset.pattern.permute.xlu0 0
        %2697 = vperm.xlu0 %2696, %v2686
        %v2698 = vpop.permute.xlu0 %2697
        %2699 = vset.pattern.permute.xlu0 0
        %2700 = vperm.xlu0 %2699, %v2687
        %v2701 = vpop.permute.xlu0 %2700
        %2702 = vset.pattern.permute.xlu0 0
        %2703 = vperm.xlu0 %2702, %v2688
        %v2704 = vpop.permute.xlu0 %2703
        %2705 = vset.pattern.permute.xlu0 0
        %2706 = vperm.xlu0 %2705, %v2689
        %v2707 = vpop.permute.xlu0 %2706
        %2708 = vset.pattern.permute.xlu0 0
        %2709 = vperm.xlu0 %2708, %v2690
        %v2710 = vpop.permute.xlu0 %2709
        %2711 = vset.pattern.permute.xlu0 0
        %2712 = vperm.xlu0 %2711, %v2691
        %v2713 = vpop.permute.xlu0 %2712
        %2714 = vset.pattern.permute.xlu0 0
        %2715 = vperm.xlu0 %2714, %v2692
        %v2716 = vpop.permute.xlu0 %2715
        %vm2717 = vcmp.eq.s32.totalorder %v2695, 1
        %vm2718 = vcmp.eq.s32.totalorder %v2698, 1
        %vm2719 = vcmp.eq.s32.totalorder %v2701, 1
        %vm2720 = vcmp.eq.s32.totalorder %v2704, 1
        %vm2721 = vcmp.eq.s32.totalorder %v2707, 1
        %vm2722 = vcmp.eq.s32.totalorder %v2710, 1
        %vm2723 = vcmp.eq.s32.totalorder %v2713, 1
        %vm2724 = vcmp.eq.s32.totalorder %v2716, 1
        %v2725 = vsel %vm2717, %v2000, 0.0
        %v2726 = vsel %vm2718, %v2001, 0.0
        %v2727 = vsel %vm2719, %v2002, 0.0
        %v2728 = vsel %vm2720, %v2003, 0.0
        %v2729 = vsel %vm2721, %v2004, 0.0
        %v2730 = vsel %vm2722, %v2005, 0.0
        %v2731 = vsel %vm2723, %v1998, 0.0
        %v2732 = vsel %vm2724, %v1999, 0.0
        %v2733 = vpack.c.bf16 %v2726, %v2725
        %v2734 = vpack.c.bf16 %v2728, %v2727
        %v2735 = vpack.c.bf16 %v2730, %v2729
        %v2736 = vpack.c.bf16 %v2732, %v2731
        %s2737 = scalar_lea.vmem [#allocation8], 256
        %v2738 = vld [vmem:[%s2737] sm:$0xf]
        %v2739 = vld [vmem:[%s2737 + $0x4] sm:$0xf]
        %v2740 = vld [vmem:[%s2737 + $0x8] sm:$0xf]
        %v2741 = vld [vmem:[%s2737 + $0xc] sm:$0xf]
        %v2742 = vld [vmem:[%s2737 + $0x10] sm:$0xf]
        %v2743 = vld [vmem:[%s2737 + $0x14] sm:$0xf]
        %v2744 = vld [vmem:[%s2737 + $0x18] sm:$0xf]
        %v2745 = vld [vmem:[%s2737 + $0x1c] sm:$0xf]
        %v2746 = vld [vmem:[%s2737 + $0x20] sm:$0xf]
        %v2747 = vld [vmem:[%s2737 + $0x24] sm:$0xf]
        %v2748 = vld [vmem:[%s2737 + $0x28] sm:$0xf]
        %v2749 = vld [vmem:[%s2737 + $0x2c] sm:$0xf]
        %v2750 = vld [vmem:[%s2737 + $0x30] sm:$0xf]
        %v2751 = vld [vmem:[%s2737 + $0x34] sm:$0xf]
        %v2752 = vld [vmem:[%s2737 + $0x38] sm:$0xf]
        %v2753 = vld [vmem:[%s2737 + $0x3c] sm:$0xf]
        %v2754 = vld [vmem:[%s2737 + $0x40] sm:$0xf]
        %v2755 = vld [vmem:[%s2737 + $0x44] sm:$0xf]
        %v2756 = vld [vmem:[%s2737 + $0x48] sm:$0xf]
        %v2757 = vld [vmem:[%s2737 + $0x4c] sm:$0xf]
        %v2758 = vld [vmem:[%s2737 + $0x50] sm:$0xf]
        %v2759 = vld [vmem:[%s2737 + $0x54] sm:$0xf]
        %v2760 = vld [vmem:[%s2737 + $0x58] sm:$0xf]
        %v2761 = vld [vmem:[%s2737 + $0x5c] sm:$0xf]
        %v2762 = vld [vmem:[%s2737 + $0x60] sm:$0xf]
        %v2763 = vld [vmem:[%s2737 + $0x64] sm:$0xf]
        %v2764 = vld [vmem:[%s2737 + $0x68] sm:$0xf]
        %v2765 = vld [vmem:[%s2737 + $0x6c] sm:$0xf]
        %v2766 = vld [vmem:[%s2737 + $0x70] sm:$0xf]
        %v2767 = vld [vmem:[%s2737 + $0x74] sm:$0xf]
        %v2768 = vld [vmem:[%s2737 + $0x78] sm:$0xf]
        %v2769 = vld [vmem:[%s2737 + $0x7c] sm:$0xf]
        %v2802 = vunpack.c.l.b16 %v2738
        %v2803 = vunpack.c.l.b16 %v2739
        %v2804 = vunpack.c.l.b16 %v2740
        %v2805 = vunpack.c.l.b16 %v2741
        %v2806 = vunpack.c.l.b16 %v2742
        %v2807 = vunpack.c.l.b16 %v2743
        %v2808 = vunpack.c.l.b16 %v2744
        %v2809 = vunpack.c.l.b16 %v2745
        %v2810 = vunpack.c.l.b16 %v2746
        %v2811 = vunpack.c.l.b16 %v2747
        %v2812 = vunpack.c.l.b16 %v2748
        %v2813 = vunpack.c.l.b16 %v2749
        %v2814 = vunpack.c.l.b16 %v2750
        %v2815 = vunpack.c.l.b16 %v2751
        %v2816 = vunpack.c.l.b16 %v2752
        %v2817 = vunpack.c.l.b16 %v2753
        %v2818 = vunpack.c.l.b16 %v2754
        %v2819 = vunpack.c.l.b16 %v2755
        %v2820 = vunpack.c.l.b16 %v2756
        %v2821 = vunpack.c.l.b16 %v2757
        %v2822 = vunpack.c.l.b16 %v2758
        %v2823 = vunpack.c.l.b16 %v2759
        %v2824 = vunpack.c.l.b16 %v2760
        %v2825 = vunpack.c.l.b16 %v2761
        %v2826 = vunpack.c.l.b16 %v2762
        %v2827 = vunpack.c.l.b16 %v2763
        %v2828 = vunpack.c.l.b16 %v2764
        %v2829 = vunpack.c.l.b16 %v2765
        %v2830 = vunpack.c.l.b16 %v2766
        %v2831 = vunpack.c.l.b16 %v2767
        %v2832 = vunpack.c.l.b16 %v2768
        %v2833 = vunpack.c.l.b16 %v2769
        %v2834 = vpack.c.b16 %v2803, %v2802
        %v2835 = vpack.c.b16 %v2805, %v2804
        %v2836 = vpack.c.b16 %v2807, %v2806
        %v2837 = vpack.c.b16 %v2809, %v2808
        %v2838 = vpack.c.b16 %v2811, %v2810
        %v2839 = vpack.c.b16 %v2813, %v2812
        %v2840 = vpack.c.b16 %v2815, %v2814
        %v2841 = vpack.c.b16 %v2817, %v2816
        %v2842 = vpack.c.b16 %v2819, %v2818
        %v2843 = vpack.c.b16 %v2821, %v2820
        %v2844 = vpack.c.b16 %v2823, %v2822
        %v2845 = vpack.c.b16 %v2825, %v2824
        %v2846 = vpack.c.b16 %v2827, %v2826
        %v2847 = vpack.c.b16 %v2829, %v2828
        %v2848 = vpack.c.b16 %v2831, %v2830
        %v2849 = vpack.c.b16 %v2833, %v2832
        %2866 = vmatprep.subr.bf16.mxu0 0
        %2867 = vmatpush1.bf16.msra.mxu0 %v2834
        %2868 = vmatprep.subr.bf16.mxu0 0
        %2869 = vmatpush1.bf16.msra.mxu0 %v2835
        %2870 = vmatprep.subr.bf16.mxu0 0
        %2871 = vmatpush1.bf16.msra.mxu0 %v2836
        %2872 = vmatprep.subr.bf16.mxu0 0
        %2873 = vmatpush1.bf16.msra.mxu0 %v2837
        %2874 = vmatprep.subr.bf16.mxu0 0
        %2875 = vmatpush1.bf16.msra.mxu0 %v2838
        %2876 = vmatprep.subr.bf16.mxu0 0
        %2877 = vmatpush1.bf16.msra.mxu0 %v2839
        %2878 = vmatprep.subr.bf16.mxu0 0
        %2879 = vmatpush1.bf16.msra.mxu0 %v2840
        %2880 = vmatprep.subr.bf16.mxu0 0
        %2881 = vmatpush1.bf16.msra.mxu0 %v2841
        %2882 = vmatprep.subr.bf16.mxu0 0
        %2883 = vmatpush1.bf16.msra.mxu0 %v2842
        %2884 = vmatprep.subr.bf16.mxu0 0
        %2885 = vmatpush1.bf16.msra.mxu0 %v2843
        %2886 = vmatprep.subr.bf16.mxu0 0
        %2887 = vmatpush1.bf16.msra.mxu0 %v2844
        %2888 = vmatprep.subr.bf16.mxu0 0
        %2889 = vmatpush1.bf16.msra.mxu0 %v2845
        %2890 = vmatprep.subr.bf16.mxu0 0
        %2891 = vmatpush1.bf16.msra.mxu0 %v2846
        %2892 = vmatprep.subr.bf16.mxu0 0
        %2893 = vmatpush1.bf16.msra.mxu0 %v2847
        %2894 = vmatprep.subr.bf16.mxu0 0
        %2895 = vmatpush1.bf16.msra.mxu0 %v2848
        %2896 = vmatprep.subr.bf16.mxu0 0
        %2897 = vmatpush1.bf16.msra.mxu0 %v2849
        %2898 = vmatprep.mubr.bf16.mxu0 %v2733
        %2899 = vmatmul.mubr.bf16.gmra.mrb[0].mxu0 %v2665
        %v2900 = vpop.f32.mrb[0].mxu0
        %v2901 = vadd.f32 0.0, %v2900
        %v2902 = vpop.f32.mrb[0].mxu0
        %v2903 = vpop.f32.mrb[0].mxu0
        %v2904 = vadd.f32 0.0, %v2903
        %v2905 = vpop.f32.mrb[0].mxu0
        %2906 = vmatprep.mubr.bf16.mxu0 %v2734
        %2907 = vmatmul.mubr.bf16.gmra.mrb[0].mxu0 %v2666
        %v2908 = vpop.f32.mrb[0].mxu0
        %v2909 = vadd.f32 0.0, %v2908
        %v2910 = vpop.f32.mrb[0].mxu0
        %v2911 = vpop.f32.mrb[0].mxu0
        %v2912 = vadd.f32 0.0, %v2911
        %v2913 = vpop.f32.mrb[0].mxu0
        %2914 = vmatprep.mubr.bf16.mxu0 %v2735
        %2915 = vmatmul.mubr.bf16.gmra.mrb[0].mxu0 %v2667
        %v2916 = vpop.f32.mrb[0].mxu0
        %v2917 = vadd.f32 0.0, %v2916
        %v2918 = vpop.f32.mrb[0].mxu0
        %v2919 = vpop.f32.mrb[0].mxu0
        %v2920 = vadd.f32 0.0, %v2919
        %v2921 = vpop.f32.mrb[0].mxu0
        %2922 = vmatprep.mubr.bf16.mxu0 %v2736
        %2923 = vmatmul.mubr.bf16.gmra.mrb[0].mxu0 %v2668
        %v2924 = vpop.f32.mrb[0].mxu0
        %v2925 = vadd.f32 0.0, %v2924
        %v2926 = vpop.f32.mrb[0].mxu0
        %v2927 = vpop.f32.mrb[0].mxu0
        %v2928 = vadd.f32 0.0, %v2927
        %v2929 = vpop.f32.mrb[0].mxu0
        %2930 = vdwg.mxu0
        %v2931 = vadd.f32 %v2571, %v2901
        %v2932 = vadd.f32 %v2574, %v2904
        %v2933 = vadd.f32 %v2579, %v2909
        %v2934 = vadd.f32 %v2582, %v2912
        %v2935 = vadd.f32 %v2587, %v2917
        %v2936 = vadd.f32 %v2590, %v2920
        %v2937 = vadd.f32 %v2595, %v2925
        %v2938 = vadd.f32 %v2598, %v2928
        %v2939 = vadd.s32 %v455, 3
        %v2940 = vadd.s32 %v456, 3
        %v2941 = vadd.s32 %v457, 3
        %v2942 = vadd.s32 %v458, 3
        %v2943 = vadd.s32 %v459, 3
        %v2944 = vadd.s32 %v460, 3
        %v2945 = vadd.s32 %v461, 3
        %v2946 = vadd.s32 %v462, 3
        %vm2947 = vcmp.lt.s32.totalorder %v2939, 8
        %vm2948 = vcmp.lt.s32.totalorder %v2940, 8
        %vm2949 = vcmp.lt.s32.totalorder %v2941, 8
        %vm2950 = vcmp.lt.s32.totalorder %v2942, 8
        %vm2951 = vcmp.lt.s32.totalorder %v2943, 8
        %vm2952 = vcmp.lt.s32.totalorder %v2944, 8
        %vm2953 = vcmp.lt.s32.totalorder %v2945, 8
        %vm2954 = vcmp.lt.s32.totalorder %v2946, 8
        %v2955 = vsel %vm2947, 1, 0
        %v2956 = vsel %vm2948, 1, 0
        %v2957 = vsel %vm2949, 1, 0
        %v2958 = vsel %vm2950, 1, 0
        %v2959 = vsel %vm2951, 1, 0
        %v2960 = vsel %vm2952, 1, 0
        %v2961 = vsel %vm2953, 1, 0
        %v2962 = vsel %vm2954, 1, 0
        %2963 = vset.pattern.permute.xlu0 0
        %2964 = vperm.xlu0 %2963, %v2955
        %v2965 = vpop.permute.xlu0 %2964
        %2966 = vset.pattern.permute.xlu0 0
        %2967 = vperm.xlu0 %2966, %v2956
        %v2968 = vpop.permute.xlu0 %2967
        %2969 = vset.pattern.permute.xlu0 0
        %2970 = vperm.xlu0 %2969, %v2957
        %v2971 = vpop.permute.xlu0 %2970
        %2972 = vset.pattern.permute.xlu0 0
        %2973 = vperm.xlu0 %2972, %v2958
        %v2974 = vpop.permute.xlu0 %2973
        %2975 = vset.pattern.permute.xlu0 0
        %2976 = vperm.xlu0 %2975, %v2959
        %v2977 = vpop.permute.xlu0 %2976
        %2978 = vset.pattern.permute.xlu0 0
        %2979 = vperm.xlu0 %2978, %v2960
        %v2980 = vpop.permute.xlu0 %2979
        %2981 = vset.pattern.permute.xlu0 0
        %2982 = vperm.xlu0 %2981, %v2961
        %v2983 = vpop.permute.xlu0 %2982
        %2984 = vset.pattern.permute.xlu0 0
        %2985 = vperm.xlu0 %2984, %v2962
        %v2986 = vpop.permute.xlu0 %2985
        %vm2987 = vcmp.eq.s32.totalorder %v2965, 1
        %vm2988 = vcmp.eq.s32.totalorder %v2968, 1
        %vm2989 = vcmp.eq.s32.totalorder %v2971, 1
        %vm2990 = vcmp.eq.s32.totalorder %v2974, 1
        %vm2991 = vcmp.eq.s32.totalorder %v2977, 1
        %vm2992 = vcmp.eq.s32.totalorder %v2980, 1
        %vm2993 = vcmp.eq.s32.totalorder %v2983, 1
        %vm2994 = vcmp.eq.s32.totalorder %v2986, 1
        %v2995 = vsel %vm2987, %v2001, 0.0
        %v2996 = vsel %vm2988, %v2002, 0.0
        %v2997 = vsel %vm2989, %v2003, 0.0
        %v2998 = vsel %vm2990, %v2004, 0.0
        %v2999 = vsel %vm2991, %v2005, 0.0
        %v3000 = vsel %vm2992, %v1998, 0.0
        %v3001 = vsel %vm2993, %v1999, 0.0
        %v3002 = vsel %vm2994, %v2000, 0.0
        %v3003 = vpack.c.bf16 %v2996, %v2995
        %v3004 = vpack.c.bf16 %v2998, %v2997
        %v3005 = vpack.c.bf16 %v3000, %v2999
        %v3006 = vpack.c.bf16 %v3002, %v3001
        %s3007 = scalar_lea.vmem [#allocation8], 384
        %v3008 = vld [vmem:[%s3007] sm:$0xf]
        %v3009 = vld [vmem:[%s3007 + $0x4] sm:$0xf]
        %v3010 = vld [vmem:[%s3007 + $0x8] sm:$0xf]
        %v3011 = vld [vmem:[%s3007 + $0xc] sm:$0xf]
        %v3012 = vld [vmem:[%s3007 + $0x10] sm:$0xf]
        %v3013 = vld [vmem:[%s3007 + $0x14] sm:$0xf]
        %v3014 = vld [vmem:[%s3007 + $0x18] sm:$0xf]
        %v3015 = vld [vmem:[%s3007 + $0x1c] sm:$0xf]
        %v3016 = vld [vmem:[%s3007 + $0x20] sm:$0xf]
        %v3017 = vld [vmem:[%s3007 + $0x24] sm:$0xf]
        %v3018 = vld [vmem:[%s3007 + $0x28] sm:$0xf]
        %v3019 = vld [vmem:[%s3007 + $0x2c] sm:$0xf]
        %v3020 = vld [vmem:[%s3007 + $0x30] sm:$0xf]
        %v3021 = vld [vmem:[%s3007 + $0x34] sm:$0xf]
        %v3022 = vld [vmem:[%s3007 + $0x38] sm:$0xf]
        %v3023 = vld [vmem:[%s3007 + $0x3c] sm:$0xf]
        %v3024 = vld [vmem:[%s3007 + $0x40] sm:$0xf]
        %v3025 = vld [vmem:[%s3007 + $0x44] sm:$0xf]
        %v3026 = vld [vmem:[%s3007 + $0x48] sm:$0xf]
        %v3027 = vld [vmem:[%s3007 + $0x4c] sm:$0xf]
        %v3028 = vld [vmem:[%s3007 + $0x50] sm:$0xf]
        %v3029 = vld [vmem:[%s3007 + $0x54] sm:$0xf]
        %v3030 = vld [vmem:[%s3007 + $0x58] sm:$0xf]
        %v3031 = vld [vmem:[%s3007 + $0x5c] sm:$0xf]
        %v3032 = vld [vmem:[%s3007 + $0x60] sm:$0xf]
        %v3033 = vld [vmem:[%s3007 + $0x64] sm:$0xf]
        %v3034 = vld [vmem:[%s3007 + $0x68] sm:$0xf]
        %v3035 = vld [vmem:[%s3007 + $0x6c] sm:$0xf]
        %v3036 = vld [vmem:[%s3007 + $0x70] sm:$0xf]
        %v3037 = vld [vmem:[%s3007 + $0x74] sm:$0xf]
        %v3038 = vld [vmem:[%s3007 + $0x78] sm:$0xf]
        %v3039 = vld [vmem:[%s3007 + $0x7c] sm:$0xf]
        %v3072 = vunpack.c.l.b16 %v3008
        %v3073 = vunpack.c.l.b16 %v3009
        %v3074 = vunpack.c.l.b16 %v3010
        %v3075 = vunpack.c.l.b16 %v3011
        %v3076 = vunpack.c.l.b16 %v3012
        %v3077 = vunpack.c.l.b16 %v3013
        %v3078 = vunpack.c.l.b16 %v3014
        %v3079 = vunpack.c.l.b16 %v3015
        %v3080 = vunpack.c.l.b16 %v3016
        %v3081 = vunpack.c.l.b16 %v3017
        %v3082 = vunpack.c.l.b16 %v3018
        %v3083 = vunpack.c.l.b16 %v3019
        %v3084 = vunpack.c.l.b16 %v3020
        %v3085 = vunpack.c.l.b16 %v3021
        %v3086 = vunpack.c.l.b16 %v3022
        %v3087 = vunpack.c.l.b16 %v3023
        %v3088 = vunpack.c.l.b16 %v3024
        %v3089 = vunpack.c.l.b16 %v3025
        %v3090 = vunpack.c.l.b16 %v3026
        %v3091 = vunpack.c.l.b16 %v3027
        %v3092 = vunpack.c.l.b16 %v3028
        %v3093 = vunpack.c.l.b16 %v3029
        %v3094 = vunpack.c.l.b16 %v3030
        %v3095 = vunpack.c.l.b16 %v3031
        %v3096 = vunpack.c.l.b16 %v3032
        %v3097 = vunpack.c.l.b16 %v3033
        %v3098 = vunpack.c.l.b16 %v3034
        %v3099 = vunpack.c.l.b16 %v3035
        %v3100 = vunpack.c.l.b16 %v3036
        %v3101 = vunpack.c.l.b16 %v3037
        %v3102 = vunpack.c.l.b16 %v3038
        %v3103 = vunpack.c.l.b16 %v3039
        %v3104 = vpack.c.b16 %v3073, %v3072
        %v3105 = vpack.c.b16 %v3075, %v3074
        %v3106 = vpack.c.b16 %v3077, %v3076
        %v3107 = vpack.c.b16 %v3079, %v3078
        %v3108 = vpack.c.b16 %v3081, %v3080
        %v3109 = vpack.c.b16 %v3083, %v3082
        %v3110 = vpack.c.b16 %v3085, %v3084
        %v3111 = vpack.c.b16 %v3087, %v3086
        %v3112 = vpack.c.b16 %v3089, %v3088
        %v3113 = vpack.c.b16 %v3091, %v3090
        %v3114 = vpack.c.b16 %v3093, %v3092
        %v3115 = vpack.c.b16 %v3095, %v3094
        %v3116 = vpack.c.b16 %v3097, %v3096
        %v3117 = vpack.c.b16 %v3099, %v3098
        %v3118 = vpack.c.b16 %v3101, %v3100
        %v3119 = vpack.c.b16 %v3103, %v3102
        %3136 = vmatprep.subr.bf16.mxu0 0
        %3137 = vmatpush1.bf16.msra.mxu0 %v3104
        %3138 = vmatprep.subr.bf16.mxu0 0
        %3139 = vmatpush1.bf16.msra.mxu0 %v3105
        %3140 = vmatprep.subr.bf16.mxu0 0
        %3141 = vmatpush1.bf16.msra.mxu0 %v3106
        %3142 = vmatprep.subr.bf16.mxu0 0
        %3143 = vmatpush1.bf16.msra.mxu0 %v3107
        %3144 = vmatprep.subr.bf16.mxu0 0
        %3145 = vmatpush1.bf16.msra.mxu0 %v3108
        %3146 = vmatprep.subr.bf16.mxu0 0
        %3147 = vmatpush1.bf16.msra.mxu0 %v3109
        %3148 = vmatprep.subr.bf16.mxu0 0
        %3149 = vmatpush1.bf16.msra.mxu0 %v3110
        %3150 = vmatprep.subr.bf16.mxu0 0
        %3151 = vmatpush1.bf16.msra.mxu0 %v3111
        %3152 = vmatprep.subr.bf16.mxu0 0
        %3153 = vmatpush1.bf16.msra.mxu0 %v3112
        %3154 = vmatprep.subr.bf16.mxu0 0
        %3155 = vmatpush1.bf16.msra.mxu0 %v3113
        %3156 = vmatprep.subr.bf16.mxu0 0
        %3157 = vmatpush1.bf16.msra.mxu0 %v3114
        %3158 = vmatprep.subr.bf16.mxu0 0
        %3159 = vmatpush1.bf16.msra.mxu0 %v3115
        %3160 = vmatprep.subr.bf16.mxu0 0
        %3161 = vmatpush1.bf16.msra.mxu0 %v3116
        %3162 = vmatprep.subr.bf16.mxu0 0
        %3163 = vmatpush1.bf16.msra.mxu0 %v3117
        %3164 = vmatprep.subr.bf16.mxu0 0
        %3165 = vmatpush1.bf16.msra.mxu0 %v3118
        %3166 = vmatprep.subr.bf16.mxu0 0
        %3167 = vmatpush1.bf16.msra.mxu0 %v3119
        %3168 = vmatprep.mubr.bf16.mxu0 %v2006
        %3169 = vmatmul.mubr.bf16.gmra.mrb[0].mxu0 %v3003
        %v3170 = vpop.f32.mrb[0].mxu0
        %v3171 = vadd.f32 0.0, %v3170
        %v3172 = vpop.f32.mrb[0].mxu0
        %v3173 = vpop.f32.mrb[0].mxu0
        %v3174 = vadd.f32 0.0, %v3173
        %v3175 = vpop.f32.mrb[0].mxu0
        %3176 = vmatprep.mubr.bf16.mxu0 %v2007
        %3177 = vmatmul.mubr.bf16.gmra.mrb[0].mxu0 %v3004
        %v3178 = vpop.f32.mrb[0].mxu0
        %v3179 = vadd.f32 0.0, %v3178
        %v3180 = vpop.f32.mrb[0].mxu0
        %v3181 = vpop.f32.mrb[0].mxu0
        %v3182 = vadd.f32 0.0, %v3181
        %v3183 = vpop.f32.mrb[0].mxu0
        %3184 = vmatprep.mubr.bf16.mxu0 %v2008
        %3185 = vmatmul.mubr.bf16.gmra.mrb[0].mxu0 %v3005
        %v3186 = vpop.f32.mrb[0].mxu0
        %v3187 = vadd.f32 0.0, %v3186
        %v3188 = vpop.f32.mrb[0].mxu0
        %v3189 = vpop.f32.mrb[0].mxu0
        %v3190 = vadd.f32 0.0, %v3189
        %v3191 = vpop.f32.mrb[0].mxu0
        %3192 = vmatprep.mubr.bf16.mxu0 %v2009
        %3193 = vmatmul.mubr.bf16.gmra.mrb[0].mxu0 %v3006
        %v3194 = vpop.f32.mrb[0].mxu0
        %v3195 = vadd.f32 0.0, %v3194
        %v3196 = vpop.f32.mrb[0].mxu0
        %v3197 = vpop.f32.mrb[0].mxu0
        %v3198 = vadd.f32 0.0, %v3197
        %v3199 = vpop.f32.mrb[0].mxu0
        %3200 = vdwg.mxu0
        %v3201 = vadd.f32 %v2931, %v3171
        %v3202 = vadd.f32 %v2932, %v3174
        %v3203 = vadd.f32 %v2933, %v3179
        %v3204 = vadd.f32 %v2934, %v3182
        %v3205 = vadd.f32 %v2935, %v3187
        %v3206 = vadd.f32 %v2936, %v3190
        %v3207 = vadd.f32 %v2937, %v3195
        %v3208 = vadd.f32 %v2938, %v3198
        %v3209 = vld [vmem:[%s7] sm:$0x1]
        %v3211 = vlaneseq
        %v3212 = vshrl.u32 %v3211, 7
        %v3213 = vsub.s32 0, %v3212
        %v3214 = vrot.slane %v3209, %v3213
        %v3216 = vadd.f32 %v3201, %v3214
        %v3217 = vadd.f32 %v3202, %v3214
        %v3218 = vadd.f32 %v3203, %v3214
        %v3219 = vadd.f32 %v3204, %v3214
        %v3220 = vadd.f32 %v3205, %v3214
        %v3221 = vadd.f32 %v3206, %v3214
        %v3222 = vadd.f32 %v3207, %v3214
        %v3223 = vadd.f32 %v3208, %v3214
        %v3224 = vmax.f32 %v3216, 0.0
        %v3225 = vmax.f32 %v3217, 0.0
        %v3226 = vmax.f32 %v3218, 0.0
        %v3227 = vmax.f32 %v3219, 0.0
        %v3228 = vmax.f32 %v3220, 0.0
        %v3229 = vmax.f32 %v3221, 0.0
        %v3230 = vmax.f32 %v3222, 0.0
        %v3231 = vmax.f32 %v3223, 0.0
        %v3232 = vpack.c.bf16 %v3225, %v3224
        %v3233 = vpack.c.bf16 %v3227, %v3226
        %v3234 = vpack.c.bf16 %v3229, %v3228
        %v3235 = vpack.c.bf16 %v3231, %v3230
        %v3236 = vld [vmem:[#allocation10] sm:$0xf]
        %v3237 = vld [vmem:[#allocation10 + $0x4] sm:$0xf]
        %v3238 = vld [vmem:[#allocation10 + $0x8] sm:$0xf]
        %v3239 = vld [vmem:[#allocation10 + $0xc] sm:$0xf]
        %v3240 = vld [vmem:[#allocation10 + $0x10] sm:$0xf]
        %v3241 = vld [vmem:[#allocation10 + $0x14] sm:$0xf]
        %v3242 = vld [vmem:[#allocation10 + $0x18] sm:$0xf]
        %v3243 = vld [vmem:[#allocation10 + $0x1c] sm:$0xf]
        %v3244 = vld [vmem:[#allocation10 + $0x20] sm:$0xf]
        %v3245 = vld [vmem:[#allocation10 + $0x24] sm:$0xf]
        %v3246 = vld [vmem:[#allocation10 + $0x28] sm:$0xf]
        %v3247 = vld [vmem:[#allocation10 + $0x2c] sm:$0xf]
        %v3248 = vld [vmem:[#allocation10 + $0x30] sm:$0xf]
        %v3249 = vld [vmem:[#allocation10 + $0x34] sm:$0xf]
        %v3250 = vld [vmem:[#allocation10 + $0x38] sm:$0xf]
        %v3251 = vld [vmem:[#allocation10 + $0x3c] sm:$0xf]
        %v3252 = vld [vmem:[#allocation10 + $0x40] sm:$0xf]
        %v3253 = vld [vmem:[#allocation10 + $0x44] sm:$0xf]
        %v3254 = vld [vmem:[#allocation10 + $0x48] sm:$0xf]
        %v3255 = vld [vmem:[#allocation10 + $0x4c] sm:$0xf]
        %v3256 = vld [vmem:[#allocation10 + $0x50] sm:$0xf]
        %v3257 = vld [vmem:[#allocation10 + $0x54] sm:$0xf]
        %v3258 = vld [vmem:[#allocation10 + $0x58] sm:$0xf]
        %v3259 = vld [vmem:[#allocation10 + $0x5c] sm:$0xf]
        %v3260 = vld [vmem:[#allocation10 + $0x60] sm:$0xf]
        %v3261 = vld [vmem:[#allocation10 + $0x64] sm:$0xf]
        %v3262 = vld [vmem:[#allocation10 + $0x68] sm:$0xf]
        %v3263 = vld [vmem:[#allocation10 + $0x6c] sm:$0xf]
        %v3264 = vld [vmem:[#allocation10 + $0x70] sm:$0xf]
        %v3265 = vld [vmem:[#allocation10 + $0x74] sm:$0xf]
        %v3266 = vld [vmem:[#allocation10 + $0x78] sm:$0xf]
        %v3267 = vld [vmem:[#allocation10 + $0x7c] sm:$0xf]
        %v3268 = vld [vmem:[%s9] sm:$0x1]
        %v3270 = vlaneseq
        %v3271 = vshrl.u32 %v3270, 7
        %v3272 = vsub.s32 0, %v3271
        %v3273 = vrot.slane %v3268, %v3272
        %v3307 = vunpack.c.l.b16 %v3236
        %v3308 = vunpack.c.l.b16 %v3237
        %v3309 = vunpack.c.l.b16 %v3238
        %v3310 = vunpack.c.l.b16 %v3239
        %v3311 = vunpack.c.l.b16 %v3240
        %v3312 = vunpack.c.l.b16 %v3241
        %v3313 = vunpack.c.l.b16 %v3242
        %v3314 = vunpack.c.l.b16 %v3243
        %v3315 = vunpack.c.l.b16 %v3244
        %v3316 = vunpack.c.l.b16 %v3245
        %v3317 = vunpack.c.l.b16 %v3246
        %v3318 = vunpack.c.l.b16 %v3247
        %v3319 = vunpack.c.l.b16 %v3248
        %v3320 = vunpack.c.l.b16 %v3249
        %v3321 = vunpack.c.l.b16 %v3250
        %v3322 = vunpack.c.l.b16 %v3251
        %v3323 = vunpack.c.l.b16 %v3252
        %v3324 = vunpack.c.l.b16 %v3253
        %v3325 = vunpack.c.l.b16 %v3254
        %v3326 = vunpack.c.l.b16 %v3255
        %v3327 = vunpack.c.l.b16 %v3256
        %v3328 = vunpack.c.l.b16 %v3257
        %v3329 = vunpack.c.l.b16 %v3258
        %v3330 = vunpack.c.l.b16 %v3259
        %v3331 = vunpack.c.l.b16 %v3260
        %v3332 = vunpack.c.l.b16 %v3261
        %v3333 = vunpack.c.l.b16 %v3262
        %v3334 = vunpack.c.l.b16 %v3263
        %v3335 = vunpack.c.l.b16 %v3264
        %v3336 = vunpack.c.l.b16 %v3265
        %v3337 = vunpack.c.l.b16 %v3266
        %v3338 = vunpack.c.l.b16 %v3267
        %v3339 = vpack.c.b16 %v3308, %v3307
        %v3340 = vpack.c.b16 %v3310, %v3309
        %v3341 = vpack.c.b16 %v3312, %v3311
        %v3342 = vpack.c.b16 %v3314, %v3313
        %v3343 = vpack.c.b16 %v3316, %v3315
        %v3344 = vpack.c.b16 %v3318, %v3317
        %v3345 = vpack.c.b16 %v3320, %v3319
        %v3346 = vpack.c.b16 %v3322, %v3321
        %v3347 = vpack.c.b16 %v3324, %v3323
        %v3348 = vpack.c.b16 %v3326, %v3325
        %v3349 = vpack.c.b16 %v3328, %v3327
        %v3350 = vpack.c.b16 %v3330, %v3329
        %v3351 = vpack.c.b16 %v3332, %v3331
        %v3352 = vpack.c.b16 %v3334, %v3333
        %v3353 = vpack.c.b16 %v3336, %v3335
        %v3354 = vpack.c.b16 %v3338, %v3337
        %3371 = vmatprep.subr.bf16.mxu0 0
        %3372 = vmatpush1.bf16.msra.mxu0 %v3339
        %3373 = vmatprep.subr.bf16.mxu0 0
        %3374 = vmatpush1.bf16.msra.mxu0 %v3340
        %3375 = vmatprep.subr.bf16.mxu0 0
        %3376 = vmatpush1.bf16.msra.mxu0 %v3341
        %3377 = vmatprep.subr.bf16.mxu0 0
        %3378 = vmatpush1.bf16.msra.mxu0 %v3342
        %3379 = vmatprep.subr.bf16.mxu0 0
        %3380 = vmatpush1.bf16.msra.mxu0 %v3343
        %3381 = vmatprep.subr.bf16.mxu0 0
        %3382 = vmatpush1.bf16.msra.mxu0 %v3344
        %3383 = vmatprep.subr.bf16.mxu0 0
        %3384 = vmatpush1.bf16.msra.mxu0 %v3345
        %3385 = vmatprep.subr.bf16.mxu0 0
        %3386 = vmatpush1.bf16.msra.mxu0 %v3346
        %3387 = vmatprep.subr.bf16.mxu0 0
        %3388 = vmatpush1.bf16.msra.mxu0 %v3347
        %3389 = vmatprep.subr.bf16.mxu0 0
        %3390 = vmatpush1.bf16.msra.mxu0 %v3348
        %3391 = vmatprep.subr.bf16.mxu0 0
        %3392 = vmatpush1.bf16.msra.mxu0 %v3349
        %3393 = vmatprep.subr.bf16.mxu0 0
        %3394 = vmatpush1.bf16.msra.mxu0 %v3350
        %3395 = vmatprep.subr.bf16.mxu0 0
        %3396 = vmatpush1.bf16.msra.mxu0 %v3351
        %3397 = vmatprep.subr.bf16.mxu0 0
        %3398 = vmatpush1.bf16.msra.mxu0 %v3352
        %3399 = vmatprep.subr.bf16.mxu0 0
        %3400 = vmatpush1.bf16.msra.mxu0 %v3353
        %3401 = vmatprep.subr.bf16.mxu0 0
        %3402 = vmatpush1.bf16.msra.mxu0 %v3354
        %3403 = vmatprep.mubr.bf16.mxu0 %v3232
        %3404 = vmatmul.mubr.bf16.gmra.mrb[0].mxu0 %v672
        %v3405 = vpop.f32.mrb[0].mxu0
        %v3406 = vadd.f32 %v3273, %v3405
        %v3407 = vpop.f32.mrb[0].mxu0
        %v3408 = vpop.f32.mrb[0].mxu0
        %v3409 = vadd.f32 %v3273, %v3408
        %v3410 = vpop.f32.mrb[0].mxu0
        %3411 = vmatprep.mubr.bf16.mxu0 %v3233
        %3412 = vmatmul.mubr.bf16.gmra.mrb[0].mxu0 %v673
        %v3413 = vpop.f32.mrb[0].mxu0
        %v3414 = vadd.f32 %v3273, %v3413
        %v3415 = vpop.f32.mrb[0].mxu0
        %v3416 = vpop.f32.mrb[0].mxu0
        %v3417 = vadd.f32 %v3273, %v3416
        %v3418 = vpop.f32.mrb[0].mxu0
        %3419 = vmatprep.mubr.bf16.mxu0 %v3234
        %3420 = vmatmul.mubr.bf16.gmra.mrb[0].mxu0 %v674
        %v3421 = vpop.f32.mrb[0].mxu0
        %v3422 = vadd.f32 %v3273, %v3421
        %v3423 = vpop.f32.mrb[0].mxu0
        %v3424 = vpop.f32.mrb[0].mxu0
        %v3425 = vadd.f32 %v3273, %v3424
        %v3426 = vpop.f32.mrb[0].mxu0
        %3427 = vmatprep.mubr.bf16.mxu0 %v3235
        %3428 = vmatmul.mubr.bf16.gmra.mrb[0].mxu0 %v675
        %v3429 = vpop.f32.mrb[0].mxu0
        %v3430 = vadd.f32 %v3273, %v3429
        %v3431 = vpop.f32.mrb[0].mxu0
        %v3432 = vpop.f32.mrb[0].mxu0
        %v3433 = vadd.f32 %v3273, %v3432
        %v3434 = vpop.f32.mrb[0].mxu0
        %3435 = vdwg.mxu0
        %v3436 = vmul.f32 %v3406, 0.1
        %v3437 = vmul.f32 %v3409, 0.1
        %v3438 = vmul.f32 %v3414, 0.1
        %v3439 = vmul.f32 %v3417, 0.1
        %v3440 = vmul.f32 %v3422, 0.1
        %v3441 = vmul.f32 %v3425, 0.1
        %v3442 = vmul.f32 %v3430, 0.1
        %v3443 = vmul.f32 %v3433, 0.1
        %v3444 = vadd.f32 %v3436, %v463
        %v3445 = vadd.f32 %v3437, %v464
        %v3446 = vadd.f32 %v3438, %v465
        %v3447 = vadd.f32 %v3439, %v466
        %v3448 = vadd.f32 %v3440, %v467
        %v3449 = vadd.f32 %v3441, %v468
        %v3450 = vadd.f32 %v3442, %v469
        %v3451 = vadd.f32 %v3443, %v470
        %v3452 = vmax.f32 %v3444, 0.0
        %v3453 = vmax.f32 %v3445, 0.0
        %v3454 = vmax.f32 %v3446, 0.0
        %v3455 = vmax.f32 %v3447, 0.0
        %v3456 = vmax.f32 %v3448, 0.0
        %v3457 = vmax.f32 %v3449, 0.0
        %v3458 = vmax.f32 %v3450, 0.0
        %v3459 = vmax.f32 %v3451, 0.0
        %3460 = vst [vmem:[%s435] sm:$0xff] %v3452
        %3461 = vst [vmem:[%s435 + $0x8] sm:$0xff] %v3453
        %3462 = vst [vmem:[%s435 + $0x10] sm:$0xff] %v3454
        %3463 = vst [vmem:[%s435 + $0x18] sm:$0xff] %v3455
        %3464 = vst [vmem:[%s435 + $0x20] sm:$0xff] %v3456
        %3465 = vst [vmem:[%s435 + $0x28] sm:$0xff] %v3457
        %3466 = vst [vmem:[%s435 + $0x30] sm:$0xff] %v3458
        %3467 = vst [vmem:[%s435 + $0x38] sm:$0xff] %v3459
        %s3468 = sand.u32 %s252, 1
        %s3469 = scalar_lea.sflag [#allocation4], %s3468
        %s3470 = sand.u32 %s252, 1
        %s3471 = smul.addr %s3470, 64
        %s3472 = scalar_lea.vmem [#allocation11], %s3471
        // Predicated region
        $region81: #{tpu_custom_call.1} parent=59 // pred_check
          %p3473 = pneg %p262
        $region82: #{tpu_custom_call.1} parent=59 // pred_check_branch
          %3475 = sbr.rel (%p3473) target = $region84
        $region83: #{tpu_custom_call.1} parent=59 // pred_region
          %s3476 = smul.u32 8, %s29
          %s3478 = ssub.s32 1024, 1024
          %3479 = vsyncadd %s3469, %s3478
          %s3480 = smul.addr %s3476, 128
          %s3481 = scalar_lea.hbm %s10, %s3480
          %s3482 = sshll.u32 %s3472, 4
          %s3483 = int_to_ptr.vmem [resolvable:$true] %s3482
          %3488 = dma.vmem_to_hbm [thread:$0]  %s3483, 1024, %s3481, %s3469, 128, 128, 8
        $region84: #{tpu_custom_call.1} parent=59 // pred_fallthru
          _
      $region60: #{tpu_custom_call.1} parent=5 // pred_fallthru
        _
      %p3489 = scmp.le.s32.totalorder 2, %s24
      // Predicated region
      $region85: #{tpu_custom_call.1} parent=5 // pred_check
        %p3490 = pneg %p3489
      $region86: #{tpu_custom_call.1} parent=5 // pred_check_branch
        %3492 = sbr.rel (%p3490) target = $region88
      $region87: #{tpu_custom_call.1} parent=5 // pred_region
        %s3493 = ssub.s32 %s24, 2
        // Predicated region
        $region89: #{tpu_custom_call.1} parent=87 // pred_check
          %p3494 = pneg %p268
        $region90: #{tpu_custom_call.1} parent=87 // pred_check_branch
          %3496 = sbr.rel (%p3494) target = $region92
        $region91: #{tpu_custom_call.1} parent=87 // pred_region
          %s3497 = sand.u32 %s253, 1
          %s3498 = scalar_lea.sflag [#allocation4], %s3497
          %s3499 = sand.u32 %s253, 1
          %s3500 = smul.addr %s3499, 64
          %s3501 = scalar_lea.vmem [#allocation11], %s3500
          %3502 = dma.done %s3498, 1024
        $region92: #{tpu_custom_call.1} parent=87 // pred_fallthru
          _
      $region88: #{tpu_custom_call.1} parent=5 // pred_fallthru
        _
    $region6: #{tpu_custom_call.1} parent=1 // loop_footer
      %s28 = sadd.s32 1, %s24
    $region7: #{tpu_custom_call.1} parent=1 // loop_footer_branch
      %23 = sbr.rel target = $region3
    $region8: #{tpu_custom_call.1} parent=1 // loop_exit
      _
    %3503 = vsyncpa [#allocation3], 1
    %s3504 = scalar_lea.sflag [#allocation3], 1
    %3505 = vsyncpa %s3504, 1
    %3506 = vsyncpa [#allocation6], 1
    %3507 = vsyncpa [#allocation9], 1
    %3508 = vsyncpa [#allocation4], 1
    %s3509 = scalar_lea.sflag [#allocation4], 1
    %3510 = vsyncpa %s3509, 1

</llo_original>
